<compile_context>
chip_gen: v6e
topology: v6e:2x2x1
jax: 0.10.0
libtpu: 0.0.40
codegen_flags: <defaults>
</compile_context>

<pallas_src>
import jax
import jax.numpy as jnp
from jax.experimental import pallas as pl
from jax.experimental.pallas import tpu as pltpu


# --------------------------------------------------------------------------
# Fused kernel over BB bags per grid step:
#   H      = embed(patches)                      # linear AlexNet stand-in
#   a1     = tanh(H @ Wa1 + ba1)                 # Conv1d(1024,256,1) + Tanh
#   logits = sum(a1 * wa2_row, -1) + ba2         # Conv1d(256,1,1) on VPU/XLU
#   A      = softmax(logits over bag axis)       # F.softmax(A, dim=2)
#   M      = A^T @ H   (per bag)                 # torch.bmm(A, out^T)
# (fc1 is applied outside the kernel on the lane-dense pooled embeddings.)
# --------------------------------------------------------------------------
def _mil_fused_kernel(x_ref, w_emb_ref, b_emb_ref, wa1_ref, ba1_ref,
                      wa2_ref, ba2_ref, m_ref):
    bb, bag, dp = x_ref.shape
    D = w_emb_ref.shape[1]

    # ---- patch embedding: in-kernel bf16 cast (VPU, hidden under MXU work),
    # one combined (bb*bag, dp) @ (dp, D) MXU matmul with f32 accumulation.
    x = x_ref[...].reshape(bb * bag, dp).astype(jnp.bfloat16)
    h = (jnp.dot(x, w_emb_ref[...], preferred_element_type=jnp.float32)
         + b_emb_ref[...])                                   # (bb*bag, D) f32

    # ---- attention hidden layer (bf16 MXU, f32 accumulate, f32 tanh on EUP)
    a1 = jnp.tanh(
        jnp.dot(h.astype(jnp.bfloat16), wa1_ref[...],
                preferred_element_type=jnp.float32)
        + ba1_ref[...])                                      # (bb*bag, HID)

    # ---- N=1 Conv1d(256,1,1): VPU multiply + lane (XLU) reduce, not MXU ----
    logits = (jnp.sum(a1 * wa2_ref[...], axis=-1, keepdims=True)
              + ba2_ref[0])                                  # (bb*bag, 1) f32
    logits = logits.reshape(bb, bag, 1)

    # ---- softmax over the bag axis, per bag group (exact normalization) ----
    mmax = jnp.max(logits, axis=1, keepdims=True)
    e = jnp.exp(logits - mmax)
    att = e / jnp.sum(e, axis=1, keepdims=True)              # (bb, bag, 1)

    # ---- attention-weighted bag pooling (sublane reduce; bag is small) -----
    # TODO(synk): for bag >= 128 switch to an MXU matmul att^T @ h per bag.
    h3 = h.reshape(bb, bag, D)
    m_ref[0] = jnp.sum(att * h3, axis=1)                     # (bb, D) f32


def _pick_bb(batch, bag, target_rows=256):
    """Bags per grid step: fill the MXU M dim (up to ~256 rows) while keeping
    live f32 intermediates bounded and batch % BB == 0."""
    bb = max(1, min(batch, target_rows // max(bag, 1)))
    while batch % bb:
        bb -= 1
    return bb


def mil_network_forward(x, params, *, target_rows=256):
    """x: (batch, bag, C, H, W) float32 -> (batch, classes) float32."""
    batch, bag = x.shape[0], x.shape[1]
    dp = x.shape[2] * x.shape[3] * x.shape[4]
    D = params["w_emb"].shape[1]
    HID = params["wa1"].shape[1]

    # f32 patches go straight into the kernel (reshape is a free view; the
    # bf16 cast happens in-kernel to avoid an extra HBM round trip).
    x_flat = x.reshape(batch, bag, dp)

    # bf16 MXU operands for the two big matmuls; biases / VPU math stay f32.
    w_emb = params["w_emb"].astype(jnp.bfloat16)
    wa1 = params["wa1"].astype(jnp.bfloat16)
    wa2_row = params["wa2"].reshape(1, HID).astype(jnp.float32)  # VPU operand
    ba2 = params["ba2"].reshape(1).astype(jnp.float32)           # 1-D SMEM

    bb = _pick_bb(batch, bag, target_rows)
    n_steps = batch // bb
    # TODO(synk): on v7x (2 TCs) prefer BB such that n_steps >= 4 when batch
    # allows it, so each core gets >= 2 steps and the patch DMA is pipelined.

    flops = 2 * batch * bag * (dp * D + D * HID + HID + D)
    transcendentals = batch * bag * (HID + 1)                # tanh + exp
    bytes_accessed = (x_flat.size * 4 + w_emb.size * 2 + wa1.size * 2
                      + params["b_emb"].size * 4 + params["ba1"].size * 4
                      + wa2_row.size * 4 + 4 + batch * D * 4)

    pooled = pl.pallas_call(
        _mil_fused_kernel,
        out_shape=jax.ShapeDtypeStruct((n_steps, bb, D), jnp.float32),
        grid_spec=pltpu.PrefetchScalarGridSpec(
            num_scalar_prefetch=0,
            grid=(n_steps,),
            in_specs=[
                pl.BlockSpec((bb, bag, dp), lambda i: (i, 0, 0)),   # patches f32
                pl.BlockSpec((dp, D), lambda i: (0, 0)),            # w_emb (resident)
                pl.BlockSpec((1, D), lambda i: (0, 0)),             # b_emb
                pl.BlockSpec((D, HID), lambda i: (0, 0)),           # wa1 (resident)
                pl.BlockSpec((1, HID), lambda i: (0, 0)),           # ba1
                pl.BlockSpec((1, HID), lambda i: (0, 0)),           # wa2 row
                pl.BlockSpec(memory_space=pltpu.MemorySpace.SMEM),  # ba2 scalar
            ],
            out_specs=pl.BlockSpec((1, bb, D), lambda i: (i, 0, 0)),
        ),
        compiler_params=pltpu.CompilerParams(
            dimension_semantics=("parallel",)),
        cost_estimate=pl.CostEstimate(
            flops=flops,
            transcendentals=transcendentals,
            bytes_accessed=bytes_accessed),
    )(x_flat, w_emb, params["b_emb"], wa1, params["ba1"], wa2_row, ba2)

    M = pooled.reshape(batch, D)                             # lane-dense pooled bags
    # fc1 outside the kernel: one well-shaped (batch, 1024) @ (1024, classes)
    # matmul; avoids a masked classes=4 store inside the kernel.
    return jnp.dot(M, params["wfc"]) + params["bfc"]


# --------------------------------------------------------------------------
# Pure-JAX reference with the same bf16-operand / f32-accumulate semantics.
# --------------------------------------------------------------------------
def mil_network_reference(x, params):
    batch, bag = x.shape[0], x.shape[1]
    dp = x.shape[2] * x.shape[3] * x.shape[4]
    x_flat = x.reshape(batch * bag, dp).astype(jnp.bfloat16)
    h = (jnp.dot(x_flat, params["w_emb"].astype(jnp.bfloat16),
                 preferred_element_type=jnp.float32) + params["b_emb"])
    a1 = jnp.tanh(
        jnp.dot(h.astype(jnp.bfloat16), params["wa1"].astype(jnp.bfloat16),
                preferred_element_type=jnp.float32) + params["ba1"])
    logits = (jnp.sum(a1 * params["wa2"].reshape(1, -1), axis=-1)
              + params["ba2"][0, 0]).reshape(batch, bag)
    att = jax.nn.softmax(logits, axis=-1)
    M = jnp.einsum("bl,bld->bd", att, h.reshape(batch, bag, -1))
    return jnp.dot(M, params["wfc"]) + params["bfc"]


if __name__ == "__main__":
    batch_size, bag_size = 2, 8
    C, Hs, Ws = 3, 16, 16
    classes = 4
    D, HID = 1024, 256
    dp = C * Hs * Ws                                         # 768 (lane-aligned)

    key = jax.random.PRNGKey(0)
    ks = jax.random.split(key, 9)
    x = jax.random.normal(ks[0], (batch_size, bag_size, C, Hs, Ws), jnp.float32)

    params = {
        "w_emb": 0.02 * jax.random.normal(ks[1], (dp, D), jnp.float32),
        "b_emb": 0.02 * jax.random.normal(ks[2], (1, D), jnp.float32),
        "wa1":   0.02 * jax.random.normal(ks[3], (D, HID), jnp.float32),
        "ba1":   0.02 * jax.random.normal(ks[4], (1, HID), jnp.float32),
        "wa2":   0.02 * jax.random.normal(ks[5], (HID, 1), jnp.float32),
        "ba2":   0.02 * jax.random.normal(ks[6], (1, 1), jnp.float32),
        "wfc":   0.02 * jax.random.normal(ks[7], (D, classes), jnp.float32),
        "bfc":   0.02 * jax.random.normal(ks[8], (1, classes), jnp.float32),
    }

    out = mil_network_forward(x, params)
    out = jax.block_until_ready(out)

    ref = mil_network_reference(x, params)
    assert out.shape == (batch_size, classes)
    assert jnp.allclose(out, ref, atol=3e-3, rtol=3e-3), (
        f"max abs err {jnp.max(jnp.abs(out - ref))}")
    print("KERNEL_OK")
</pallas_src>

<mosaic_0001>
module attributes {stable_mosaic.version = 11 : i64} {
  func.func @_mil_fused_kernel(%arg0: i32, %arg1: memref<2x8x768xf32, #tpu.memory_space<vmem>>, %arg2: memref<768x1024xbf16, #tpu.memory_space<vmem>>, %arg3: memref<1x1024xf32, #tpu.memory_space<vmem>>, %arg4: memref<1024x256xbf16, #tpu.memory_space<vmem>>, %arg5: memref<1x256xf32, #tpu.memory_space<vmem>>, %arg6: memref<1x256xf32, #tpu.memory_space<vmem>>, %arg7: memref<1xf32, #tpu.memory_space<smem>>, %arg8: memref<1x2x1024xf32, #tpu.memory_space<vmem>>) attributes {dimension_semantics = [#tpu.dimension_semantics<parallel>], iteration_bounds = array<i64: 1>, scalar_prefetch = 0 : i64, scratch_operands = 0 : i64, tpu.core_type = #tpu.core_type<tc>, window_params = [{transform_indices = @transform_0, window_bounds = array<i64: 2, 8, 768>}, {pipeline_mode = #tpu.pipeline_mode<synchronous>, transform_indices = @transform_1, window_bounds = array<i64: 768, 1024>}, {pipeline_mode = #tpu.pipeline_mode<synchronous>, transform_indices = @transform_2, window_bounds = array<i64: 1, 1024>}, {pipeline_mode = #tpu.pipeline_mode<synchronous>, transform_indices = @transform_3, window_bounds = array<i64: 1024, 256>}, {pipeline_mode = #tpu.pipeline_mode<synchronous>, transform_indices = @transform_4, window_bounds = array<i64: 1, 256>}, {pipeline_mode = #tpu.pipeline_mode<synchronous>, transform_indices = @transform_5, window_bounds = array<i64: 1, 256>}, {transform_indices = @transform_6, window_bounds = array<i64: 1>}, {transform_indices = @transform_7, window_bounds = array<i64: 1, 2, 1024>}]} {
    %c0 = arith.constant 0 : index
    %c0_0 = arith.constant 0 : index
    %c0_1 = arith.constant 0 : index
    %0 = vector.load %arg1[%c0, %c0_0, %c0_1] : memref<2x8x768xf32, #tpu.memory_space<vmem>>, vector<2x8x768xf32>
    %1 = vector.shape_cast %0 : vector<2x8x768xf32> to vector<16x768xf32>
    %2 = arith.truncf %1 : vector<16x768xf32> to vector<16x768xbf16>
    %c0_2 = arith.constant 0 : index
    %c0_3 = arith.constant 0 : index
    %3 = vector.load %arg2[%c0_2, %c0_3] : memref<768x1024xbf16, #tpu.memory_space<vmem>>, vector<768x1024xbf16>
    %cst = arith.constant dense<0.000000e+00> : vector<16x1024xf32>
    %4 = tpu.matmul %2, %3, %cst {dimension_numbers = #tpu.dot_dimension_numbers<[1], [0], [0], [1], [0, 0, 1, 1], [], []>} : vector<16x768xbf16>, vector<768x1024xbf16>, vector<16x1024xf32> -> vector<16x1024xf32>
    %c0_4 = arith.constant 0 : index
    %c0_5 = arith.constant 0 : index
    %5 = vector.load %arg3[%c0_4, %c0_5] : memref<1x1024xf32, #tpu.memory_space<vmem>>, vector<1x1024xf32>
    %6 = vector.broadcast %5 : vector<1x1024xf32> to vector<16x1024xf32>
    %7 = arith.addf %4, %6 : vector<16x1024xf32>
    %8 = arith.truncf %7 : vector<16x1024xf32> to vector<16x1024xbf16>
    %c0_6 = arith.constant 0 : index
    %c0_7 = arith.constant 0 : index
    %9 = vector.load %arg4[%c0_6, %c0_7] : memref<1024x256xbf16, #tpu.memory_space<vmem>>, vector<1024x256xbf16>
    %cst_8 = arith.constant dense<0.000000e+00> : vector<16x256xf32>
    %10 = tpu.matmul %8, %9, %cst_8 {dimension_numbers = #tpu.dot_dimension_numbers<[1], [0], [0], [1], [0, 0, 1, 1], [], []>} : vector<16x1024xbf16>, vector<1024x256xbf16>, vector<16x256xf32> -> vector<16x256xf32>
    %c0_9 = arith.constant 0 : index
    %c0_10 = arith.constant 0 : index
    %11 = vector.load %arg5[%c0_9, %c0_10] : memref<1x256xf32, #tpu.memory_space<vmem>>, vector<1x256xf32>
    %12 = vector.broadcast %11 : vector<1x256xf32> to vector<16x256xf32>
    %13 = arith.addf %10, %12 : vector<16x256xf32>
    %14 = math.tanh %13 : vector<16x256xf32>
    %c0_11 = arith.constant 0 : index
    %c0_12 = arith.constant 0 : index
    %15 = vector.load %arg6[%c0_11, %c0_12] : memref<1x256xf32, #tpu.memory_space<vmem>>, vector<1x256xf32>
    %16 = vector.broadcast %15 : vector<1x256xf32> to vector<16x256xf32>
    %17 = arith.mulf %14, %16 : vector<16x256xf32>
    %cst_13 = arith.constant dense<0.000000e+00> : vector<16xf32>
    %18 = vector.multi_reduction <add>, %17, %cst_13 [1] : vector<16x256xf32> to vector<16xf32>
    %19 = vector.shape_cast %18 : vector<16xf32> to vector<16x1xf32>
    %c0_14 = arith.constant 0 : index
    %20 = memref.load %arg7[%c0_14] : memref<1xf32, #tpu.memory_space<smem>>
    %21 = vector.broadcast %20 : f32 to vector<16x1xf32>
    %22 = arith.addf %19, %21 : vector<16x1xf32>
    %23 = vector.shape_cast %22 : vector<16x1xf32> to vector<2x8x1xf32>
    %cst_15 = arith.constant dense<0xFF800000> : vector<2x1xf32>
    %24 = vector.multi_reduction <maximumf>, %23, %cst_15 [1] : vector<2x8x1xf32> to vector<2x1xf32>
    %25 = vector.shape_cast %24 : vector<2x1xf32> to vector<2x1x1xf32>
    %26 = vector.broadcast %25 : vector<2x1x1xf32> to vector<2x8x1xf32>
    %27 = arith.subf %23, %26 : vector<2x8x1xf32>
    %28 = math.exp %27 : vector<2x8x1xf32>
    %cst_16 = arith.constant dense<0.000000e+00> : vector<2x1xf32>
    %29 = vector.multi_reduction <add>, %28, %cst_16 [1] : vector<2x8x1xf32> to vector<2x1xf32>
    %30 = vector.shape_cast %29 : vector<2x1xf32> to vector<2x1x1xf32>
    %31 = vector.broadcast %30 : vector<2x1x1xf32> to vector<2x8x1xf32>
    %32 = arith.divf %28, %31 : vector<2x8x1xf32>
    %33 = vector.shape_cast %7 : vector<16x1024xf32> to vector<2x8x1024xf32>
    %34 = vector.broadcast %32 : vector<2x8x1xf32> to vector<2x8x1024xf32>
    %35 = arith.mulf %34, %33 : vector<2x8x1024xf32>
    %cst_17 = arith.constant dense<0.000000e+00> : vector<2x1024xf32>
    %36 = vector.multi_reduction <add>, %35, %cst_17 [1] : vector<2x8x1024xf32> to vector<2x1024xf32>
    %c0_18 = arith.constant 0 : index
    %c0_19 = arith.constant 0 : index
    %c0_20 = arith.constant 0 : index
    %37 = vector.load %arg8[%c0_18, %c0_19, %c0_20] : memref<1x2x1024xf32, #tpu.memory_space<vmem>>, vector<1x2x1024xf32>
    %38 = vector.shape_cast %37 : vector<1x2x1024xf32> to vector<2x1024xf32>
    %39 = vector.shape_cast %36 : vector<2x1024xf32> to vector<1x2x1024xf32>
    tpu.vector_store %arg8[%c0_18, %c0_19, %c0_20], %39 {strides = array<i32>} : memref<1x2x1024xf32, #tpu.memory_space<vmem>>, vector<1x2x1024xf32>,
    return
  }
  func.func @transform_0(%arg0: i32) -> (i32, i32, i32) {
    %c0_i32 = arith.constant 0 : i32
    %c0_i32_0 = arith.constant 0 : i32
    %c0_i32_1 = arith.constant 0 : i32
    return %arg0, %c0_i32, %c0_i32_0 : i32, i32, i32
  }
  func.func @transform_1(%arg0: i32) -> (i32, i32) {
    %c0_i32 = arith.constant 0 : i32
    %c0_i32_0 = arith.constant 0 : i32
    %c0_i32_1 = arith.constant 0 : i32
    return %c0_i32, %c0_i32_0 : i32, i32
  }
  func.func @transform_2(%arg0: i32) -> (i32, i32) {
    %c0_i32 = arith.constant 0 : i32
    %c0_i32_0 = arith.constant 0 : i32
    %c0_i32_1 = arith.constant 0 : i32
    return %c0_i32, %c0_i32_0 : i32, i32
  }
  func.func @transform_3(%arg0: i32) -> (i32, i32) {
    %c0_i32 = arith.constant 0 : i32
    %c0_i32_0 = arith.constant 0 : i32
    %c0_i32_1 = arith.constant 0 : i32
    return %c0_i32, %c0_i32_0 : i32, i32
  }
  func.func @transform_4(%arg0: i32) -> (i32, i32) {
    %c0_i32 = arith.constant 0 : i32
    %c0_i32_0 = arith.constant 0 : i32
    %c0_i32_1 = arith.constant 0 : i32
    return %c0_i32, %c0_i32_0 : i32, i32
  }
  func.func @transform_5(%arg0: i32) -> (i32, i32) {
    %c0_i32 = arith.constant 0 : i32
    %c0_i32_0 = arith.constant 0 : i32
    %c0_i32_1 = arith.constant 0 : i32
    return %c0_i32, %c0_i32_0 : i32, i32
  }
  func.func @transform_6(%arg0: i32) -> i32 {
    %c0_i32 = arith.constant 0 : i32
    %c0_i32_0 = arith.constant 0 : i32
    return %c0_i32 : i32
  }
  func.func @transform_7(%arg0: i32) -> (i32, i32, i32) {
    %c0_i32 = arith.constant 0 : i32
    %c0_i32_0 = arith.constant 0 : i32
    %c0_i32_1 = arith.constant 0 : i32
    return %arg0, %c0_i32, %c0_i32_0 : i32, i32, i32
  }
}

</mosaic_0001>

<llo_original>
// kernel: tpu_custom_call.1
$region0: #{tpu_custom_call.1}
  #allocation0 [shape = 'u32[]', space=smem, size = 0x4, offset = 0x4, fixed_abs, tag = 'smem constant byte address 0x4 - core index']
  #allocation1 [shape = 'u32[144,128]{1,0:T(1,128)}', space=vmem, size = 0x12000, scoped, tag = 'internal scratch']
  #allocation2 [shape = 'f32[1]{0:T(128)S(6)}', space=smem, size = 0x200, scoped, tag = 'scoped memory for tpu_custom_call.1']
  %s0 = inlined_call_operand.hbm [shape: f32[2,8,768], index: 0, kind: input, shape index: {}]
  %s1 = inlined_call_operand.hbm [shape: bf16[768,1024], index: 1, kind: input, shape index: {}]
  %s2 = inlined_call_operand.hbm [shape: f32[1,1024], index: 2, kind: input, shape index: {}]
  %s3 = inlined_call_operand.hbm [shape: bf16[1024,256], index: 3, kind: input, shape index: {}]
  %s4 = inlined_call_operand.hbm [shape: f32[1,256], index: 4, kind: input, shape index: {}]
  %s5 = inlined_call_operand.hbm [shape: f32[1,256], index: 5, kind: input, shape index: {}]
  %s6 = inlined_call_operand.<no memory space> [shape: f32[1], index: 6, kind: input, shape index: {}]
  %s7 = inlined_call_operand.hbm [shape: f32[1,2,1024], index: 7, kind: output, shape index: {}]
  %s8 = sld [smem:[#allocation0]]
  $region62: #{tpu_custom_call.1} parent=0
    _
  %s10 = ssub.s32 1, %s8
  %s11 = scalar_select 0, %s10, %s8
  %12 = sst [smem:[#allocation2]] %s6
  $region1: #{tpu_custom_call.1} parent=0
    #allocation3 [shape = 'u8[49152]{0}', space=vmem, size = 0xc000, scoped, tag = 'input window, operand 0, single buffered']
    #allocation4 [shape = 's32[1]{0}', space=sflag, size = 0x4, scoped, tag = 'scoped memory for tpu_custom_call.1']
    #allocation5 [shape = 's32[1]{0}', space=sflag, size = 0x4, scoped, tag = 'scoped memory for tpu_custom_call.1']
    #allocation6 [shape = 'u8[1572864]{0}', space=vmem, size = 0x180000, scoped, tag = 'input window, operand 1, single buffered']
    #allocation7 [shape = 's32[1]{0}', space=sflag, size = 0x4, scoped, tag = 'scoped memory for tpu_custom_call.1']
    #allocation8 [shape = 'u8[4096]{0}', space=vmem, size = 0x1000, scoped, tag = 'input window, operand 2, single buffered']
    #allocation9 [shape = 'u8[524288]{0}', space=vmem, size = 0x80000, scoped, tag = 'input window, operand 3, single buffered']
    #allocation10 [shape = 's32[1]{0}', space=sflag, size = 0x4, scoped, tag = 'scoped memory for tpu_custom_call.1']
    #allocation11 [shape = 'u8[1024]{0}', space=vmem, size = 0x400, scoped, tag = 'input window, operand 4, single buffered']
    #allocation12 [shape = 'u8[1024]{0}', space=vmem, size = 0x400, scoped, tag = 'input window, operand 5, single buffered']
    #allocation13 [shape = 's32[1]{0}', space=sflag, size = 0x4, scoped, tag = 'scoped memory for tpu_custom_call.1']
    #allocation14 [shape = 'u8[8192]{0}', space=vmem, size = 0x2000, scoped, tag = 'output window, operand 0, single buffered']
    %13 = vsyncpa [#allocation4], 0
    %14 = vsyncpa [#allocation7], 0
    %15 = vsyncpa [#allocation10], 0
    %16 = vsyncpa [#allocation13], 0
    %17 = vsyncpa [#allocation5], 0
    // Predicated region
    $region2: #{tpu_custom_call.1} parent=1 // pred_check
      _
    $region3: #{tpu_custom_call.1} parent=1 // pred_check_branch
      %19 = sbr.rel (0) target = $region5
    $region4: #{tpu_custom_call.1} parent=1 // pred_region
      %s21 = ssub.s32 1536, 1536
      %22 = vsyncadd [#allocation4], %s21
      %s23 = sshll.u32 [#allocation3], 4
      %s24 = int_to_ptr.vmem [resolvable:$true] %s23
      %29 = dma.hbm_to_vmem [thread:$0]  %s0, 1536, %s24, [#allocation4], 768, 768, 48
    $region5: #{tpu_custom_call.1} parent=1 // pred_fallthru
      _
    // Predicated region
    $region6: #{tpu_custom_call.1} parent=1 // pred_check
      _
    $region7: #{tpu_custom_call.1} parent=1 // pred_check_branch
      %31 = sbr.rel (0) target = $region9
    $region8: #{tpu_custom_call.1} parent=1 // pred_region
      %s33 = ssub.s32 49152, 49152
      %34 = vsyncadd [#allocation7], %s33
      %s35 = sshll.u32 [#allocation6], 4
      %s36 = int_to_ptr.vmem [resolvable:$true] %s35
      %41 = dma.hbm_to_vmem [thread:$0]  %s1, 49152, %s36, [#allocation7], 512, 512, 32
    $region9: #{tpu_custom_call.1} parent=1 // pred_fallthru
      _
    // Predicated region
    $region10: #{tpu_custom_call.1} parent=1 // pred_check
      _
    $region11: #{tpu_custom_call.1} parent=1 // pred_check_branch
      %43 = sbr.rel (0) target = $region13
    $region12: #{tpu_custom_call.1} parent=1 // pred_region
      %s45 = ssub.s32 128, 128
      %46 = vsyncadd [#allocation7], %s45
      %s48 = sshll.u32 [#allocation8], 4
      %s49 = int_to_ptr.vmem [resolvable:$true] %s48
      %51 = dma.hbm_to_vmem [thread:$0]  %s2, 128, %s49, [#allocation7]
    $region13: #{tpu_custom_call.1} parent=1 // pred_fallthru
      _
    // Predicated region
    $region14: #{tpu_custom_call.1} parent=1 // pred_check
      _
    $region15: #{tpu_custom_call.1} parent=1 // pred_check_branch
      %53 = sbr.rel (0) target = $region17
    $region16: #{tpu_custom_call.1} parent=1 // pred_region
      %s55 = ssub.s32 16384, 16384
      %56 = vsyncadd [#allocation10], %s55
      %s57 = sshll.u32 [#allocation9], 4
      %s58 = int_to_ptr.vmem [resolvable:$true] %s57
      %63 = dma.hbm_to_vmem [thread:$0]  %s3, 16384, %s58, [#allocation10], 128, 128, 8
    $region17: #{tpu_custom_call.1} parent=1 // pred_fallthru
      _
    // Predicated region
    $region18: #{tpu_custom_call.1} parent=1 // pred_check
      _
    $region19: #{tpu_custom_call.1} parent=1 // pred_check_branch
      %65 = sbr.rel (0) target = $region21
    $region20: #{tpu_custom_call.1} parent=1 // pred_region
      %s67 = ssub.s32 32, 32
      %68 = vsyncadd [#allocation10], %s67
      %s70 = sshll.u32 [#allocation11], 4
      %s71 = int_to_ptr.vmem [resolvable:$true] %s70
      %73 = dma.hbm_to_vmem [thread:$0]  %s4, 32, %s71, [#allocation10]
    $region21: #{tpu_custom_call.1} parent=1 // pred_fallthru
      _
    // Predicated region
    $region22: #{tpu_custom_call.1} parent=1 // pred_check
      _
    $region23: #{tpu_custom_call.1} parent=1 // pred_check_branch
      %75 = sbr.rel (0) target = $region25
    $region24: #{tpu_custom_call.1} parent=1 // pred_region
      %s77 = ssub.s32 32, 32
      %78 = vsyncadd [#allocation13], %s77
      %s80 = sshll.u32 [#allocation12], 4
      %s81 = int_to_ptr.vmem [resolvable:$true] %s80
      %83 = dma.hbm_to_vmem [thread:$0]  %s5, 32, %s81, [#allocation13]
    $region25: #{tpu_custom_call.1} parent=1 // pred_fallthru
      _
    // Predicated region
    $region26: #{tpu_custom_call.1} parent=1 // pred_check
      _
    $region27: #{tpu_custom_call.1} parent=1 // pred_check_branch
      %85 = sbr.rel (0) target = $region29
    $region28: #{tpu_custom_call.1} parent=1 // pred_region
      _
    $region29: #{tpu_custom_call.1} parent=1 // pred_fallthru
      _
    // Predicated region
    $region30: #{tpu_custom_call.1} parent=1 // pred_check
      _
    $region31: #{tpu_custom_call.1} parent=1 // pred_check_branch
      %87 = sbr.rel (0) target = $region33
    $region32: #{tpu_custom_call.1} parent=1 // pred_region
      %88 = dma.done [#allocation4], 1536
    $region33: #{tpu_custom_call.1} parent=1 // pred_fallthru
      _
    // Predicated region
    $region34: #{tpu_custom_call.1} parent=1 // pred_check
      _
    $region35: #{tpu_custom_call.1} parent=1 // pred_check_branch
      %90 = sbr.rel (0) target = $region37
    $region36: #{tpu_custom_call.1} parent=1 // pred_region
      %91 = dma.done [#allocation7], 49152
    $region37: #{tpu_custom_call.1} parent=1 // pred_fallthru
      _
    // Predicated region
    $region38: #{tpu_custom_call.1} parent=1 // pred_check
      _
    $region39: #{tpu_custom_call.1} parent=1 // pred_check_branch
      %93 = sbr.rel (0) target = $region41
    $region40: #{tpu_custom_call.1} parent=1 // pred_region
      %94 = dma.done [#allocation7], 128
    $region41: #{tpu_custom_call.1} parent=1 // pred_fallthru
      _
    // Predicated region
    $region42: #{tpu_custom_call.1} parent=1 // pred_check
      _
    $region43: #{tpu_custom_call.1} parent=1 // pred_check_branch
      %96 = sbr.rel (0) target = $region45
    $region44: #{tpu_custom_call.1} parent=1 // pred_region
      %97 = dma.done [#allocation10], 16384
    $region45: #{tpu_custom_call.1} parent=1 // pred_fallthru
      _
    // Predicated region
    $region46: #{tpu_custom_call.1} parent=1 // pred_check
      _
    $region47: #{tpu_custom_call.1} parent=1 // pred_check_branch
      %99 = sbr.rel (0) target = $region49
    $region48: #{tpu_custom_call.1} parent=1 // pred_region
      %100 = dma.done [#allocation10], 32
    $region49: #{tpu_custom_call.1} parent=1 // pred_fallthru
      _
    // Predicated region
    $region50: #{tpu_custom_call.1} parent=1 // pred_check
      _
    $region51: #{tpu_custom_call.1} parent=1 // pred_check_branch
      %102 = sbr.rel (0) target = $region53
    $region52: #{tpu_custom_call.1} parent=1 // pred_region
      %103 = dma.done [#allocation13], 32
    $region53: #{tpu_custom_call.1} parent=1 // pred_fallthru
      _
    %v104 = vld [vmem:[#allocation3] sm:$0xff]
    %v105 = vld [vmem:[#allocation3 + $0x8] sm:$0xff]
    %v106 = vld [vmem:[#allocation3 + $0x10] sm:$0xff]
    %v107 = vld [vmem:[#allocation3 + $0x18] sm:$0xff]
    %v108 = vld [vmem:[#allocation3 + $0x20] sm:$0xff]
    %v109 = vld [vmem:[#allocation3 + $0x28] sm:$0xff]
    %v110 = vld [vmem:[#allocation3 + $0x30] sm:$0xff]
    %v111 = vld [vmem:[#allocation3 + $0x38] sm:$0xff]
    %v112 = vld [vmem:[#allocation3 + $0x40] sm:$0xff]
    %v113 = vld [vmem:[#allocation3 + $0x48] sm:$0xff]
    %v114 = vld [vmem:[#allocation3 + $0x50] sm:$0xff]
    %v115 = vld [vmem:[#allocation3 + $0x58] sm:$0xff]
    %v116 = vpack.c.bf16 %v110, %v104
    %v117 = vpack.c.bf16 %v111, %v105
    %v118 = vpack.c.bf16 %v112, %v106
    %v119 = vpack.c.bf16 %v113, %v107
    %v120 = vpack.c.bf16 %v114, %v108
    %v121 = vpack.c.bf16 %v115, %v109
    %v122 = vld [vmem:[#allocation6] sm:$0xff]
    %v123 = vld [vmem:[#allocation6 + $0x8] sm:$0xff]
    %v124 = vld [vmem:[#allocation6 + $0x10] sm:$0xff]
    %v125 = vld [vmem:[#allocation6 + $0x18] sm:$0xff]
    %v126 = vld [vmem:[#allocation6 + $0x20] sm:$0xff]
    %v127 = vld [vmem:[#allocation6 + $0x28] sm:$0xff]
    %v128 = vld [vmem:[#allocation6 + $0x30] sm:$0xff]
    %v129 = vld [vmem:[#allocation6 + $0x38] sm:$0xff]
    %v130 = vld [vmem:[#allocation6 + $0x40] sm:$0xff]
    %v131 = vld [vmem:[#allocation6 + $0x48] sm:$0xff]
    %v132 = vld [vmem:[#allocation6 + $0x50] sm:$0xff]
    %v133 = vld [vmem:[#allocation6 + $0x58] sm:$0xff]
    %v134 = vld [vmem:[#allocation6 + $0x60] sm:$0xff]
    %v135 = vld [vmem:[#allocation6 + $0x68] sm:$0xff]
    %v136 = vld [vmem:[#allocation6 + $0x70] sm:$0xff]
    %v137 = vld [vmem:[#allocation6 + $0x78] sm:$0xff]
    %v138 = vld [vmem:[#allocation6 + $0x80] sm:$0xff]
    %v139 = vld [vmem:[#allocation6 + $0x88] sm:$0xff]
    %v140 = vld [vmem:[#allocation6 + $0x90] sm:$0xff]
    %v141 = vld [vmem:[#allocation6 + $0x98] sm:$0xff]
    %v142 = vld [vmem:[#allocation6 + $0xa0] sm:$0xff]
    %v143 = vld [vmem:[#allocation6 + $0xa8] sm:$0xff]
    %v144 = vld [vmem:[#allocation6 + $0xb0] sm:$0xff]
    %v145 = vld [vmem:[#allocation6 + $0xb8] sm:$0xff]
    %v146 = vld [vmem:[#allocation6 + $0xc0] sm:$0xff]
    %v147 = vld [vmem:[#allocation6 + $0xc8] sm:$0xff]
    %v148 = vld [vmem:[#allocation6 + $0xd0] sm:$0xff]
    %v149 = vld [vmem:[#allocation6 + $0xd8] sm:$0xff]
    %v150 = vld [vmem:[#allocation6 + $0xe0] sm:$0xff]
    %v151 = vld [vmem:[#allocation6 + $0xe8] sm:$0xff]
    %v152 = vld [vmem:[#allocation6 + $0xf0] sm:$0xff]
    %v153 = vld [vmem:[#allocation6 + $0xf8] sm:$0xff]
    %v154 = vld [vmem:[#allocation6 + $0x100] sm:$0xff]
    %v155 = vld [vmem:[#allocation6 + $0x108] sm:$0xff]
    %v156 = vld [vmem:[#allocation6 + $0x110] sm:$0xff]
    %v157 = vld [vmem:[#allocation6 + $0x118] sm:$0xff]
    %v158 = vld [vmem:[#allocation6 + $0x120] sm:$0xff]
    %v159 = vld [vmem:[#allocation6 + $0x128] sm:$0xff]
    %v160 = vld [vmem:[#allocation6 + $0x130] sm:$0xff]
    %v161 = vld [vmem:[#allocation6 + $0x138] sm:$0xff]
    %v162 = vld [vmem:[#allocation6 + $0x140] sm:$0xff]
    %v163 = vld [vmem:[#allocation6 + $0x148] sm:$0xff]
    %v164 = vld [vmem:[#allocation6 + $0x150] sm:$0xff]
    %v165 = vld [vmem:[#allocation6 + $0x158] sm:$0xff]
    %v166 = vld [vmem:[#allocation6 + $0x160] sm:$0xff]
    %v167 = vld [vmem:[#allocation6 + $0x168] sm:$0xff]
    %v168 = vld [vmem:[#allocation6 + $0x170] sm:$0xff]
    %v169 = vld [vmem:[#allocation6 + $0x178] sm:$0xff]
    %v170 = vld [vmem:[#allocation6 + $0x180] sm:$0xff]
    %v171 = vld [vmem:[#allocation6 + $0x188] sm:$0xff]
    %v172 = vld [vmem:[#allocation6 + $0x190] sm:$0xff]
    %v173 = vld [vmem:[#allocation6 + $0x198] sm:$0xff]
    %v174 = vld [vmem:[#allocation6 + $0x1a0] sm:$0xff]
    %v175 = vld [vmem:[#allocation6 + $0x1a8] sm:$0xff]
    %v176 = vld [vmem:[#allocation6 + $0x1b0] sm:$0xff]
    %v177 = vld [vmem:[#allocation6 + $0x1b8] sm:$0xff]
    %v178 = vld [vmem:[#allocation6 + $0x1c0] sm:$0xff]
    %v179 = vld [vmem:[#allocation6 + $0x1c8] sm:$0xff]
    %v180 = vld [vmem:[#allocation6 + $0x1d0] sm:$0xff]
    %v181 = vld [vmem:[#allocation6 + $0x1d8] sm:$0xff]
    %v182 = vld [vmem:[#allocation6 + $0x1e0] sm:$0xff]
    %v183 = vld [vmem:[#allocation6 + $0x1e8] sm:$0xff]
    %v184 = vld [vmem:[#allocation6 + $0x1f0] sm:$0xff]
    %v185 = vld [vmem:[#allocation6 + $0x1f8] sm:$0xff]
    %v186 = vld [vmem:[#allocation6 + $0x200] sm:$0xff]
    %v187 = vld [vmem:[#allocation6 + $0x208] sm:$0xff]
    %v188 = vld [vmem:[#allocation6 + $0x210] sm:$0xff]
    %v189 = vld [vmem:[#allocation6 + $0x218] sm:$0xff]
    %v190 = vld [vmem:[#allocation6 + $0x220] sm:$0xff]
    %v191 = vld [vmem:[#allocation6 + $0x228] sm:$0xff]
    %v192 = vld [vmem:[#allocation6 + $0x230] sm:$0xff]
    %v193 = vld [vmem:[#allocation6 + $0x238] sm:$0xff]
    %v194 = vld [vmem:[#allocation6 + $0x240] sm:$0xff]
    %v195 = vld [vmem:[#allocation6 + $0x248] sm:$0xff]
    %v196 = vld [vmem:[#allocation6 + $0x250] sm:$0xff]
    %v197 = vld [vmem:[#allocation6 + $0x258] sm:$0xff]
    %v198 = vld [vmem:[#allocation6 + $0x260] sm:$0xff]
    %v199 = vld [vmem:[#allocation6 + $0x268] sm:$0xff]
    %v200 = vld [vmem:[#allocation6 + $0x270] sm:$0xff]
    %v201 = vld [vmem:[#allocation6 + $0x278] sm:$0xff]
    %v202 = vld [vmem:[#allocation6 + $0x280] sm:$0xff]
    %v203 = vld [vmem:[#allocation6 + $0x288] sm:$0xff]
    %v204 = vld [vmem:[#allocation6 + $0x290] sm:$0xff]
    %v205 = vld [vmem:[#allocation6 + $0x298] sm:$0xff]
    %v206 = vld [vmem:[#allocation6 + $0x2a0] sm:$0xff]
    %v207 = vld [vmem:[#allocation6 + $0x2a8] sm:$0xff]
    %v208 = vld [vmem:[#allocation6 + $0x2b0] sm:$0xff]
    %v209 = vld [vmem:[#allocation6 + $0x2b8] sm:$0xff]
    %v210 = vld [vmem:[#allocation6 + $0x2c0] sm:$0xff]
    %v211 = vld [vmem:[#allocation6 + $0x2c8] sm:$0xff]
    %v212 = vld [vmem:[#allocation6 + $0x2d0] sm:$0xff]
    %v213 = vld [vmem:[#allocation6 + $0x2d8] sm:$0xff]
    %v214 = vld [vmem:[#allocation6 + $0x2e0] sm:$0xff]
    %v215 = vld [vmem:[#allocation6 + $0x2e8] sm:$0xff]
    %v216 = vld [vmem:[#allocation6 + $0x2f0] sm:$0xff]
    %v217 = vld [vmem:[#allocation6 + $0x2f8] sm:$0xff]
    %v218 = vld [vmem:[#allocation6 + $0x300] sm:$0xff]
    %v219 = vld [vmem:[#allocation6 + $0x308] sm:$0xff]
    %v220 = vld [vmem:[#allocation6 + $0x310] sm:$0xff]
    %v221 = vld [vmem:[#allocation6 + $0x318] sm:$0xff]
    %v222 = vld [vmem:[#allocation6 + $0x320] sm:$0xff]
    %v223 = vld [vmem:[#allocation6 + $0x328] sm:$0xff]
    %v224 = vld [vmem:[#allocation6 + $0x330] sm:$0xff]
    %v225 = vld [vmem:[#allocation6 + $0x338] sm:$0xff]
    %v226 = vld [vmem:[#allocation6 + $0x340] sm:$0xff]
    %v227 = vld [vmem:[#allocation6 + $0x348] sm:$0xff]
    %v228 = vld [vmem:[#allocation6 + $0x350] sm:$0xff]
    %v229 = vld [vmem:[#allocation6 + $0x358] sm:$0xff]
    %v230 = vld [vmem:[#allocation6 + $0x360] sm:$0xff]
    %v231 = vld [vmem:[#allocation6 + $0x368] sm:$0xff]
    %v232 = vld [vmem:[#allocation6 + $0x370] sm:$0xff]
    %v233 = vld [vmem:[#allocation6 + $0x378] sm:$0xff]
    %v234 = vld [vmem:[#allocation6 + $0x380] sm:$0xff]
    %v235 = vld [vmem:[#allocation6 + $0x388] sm:$0xff]
    %v236 = vld [vmem:[#allocation6 + $0x390] sm:$0xff]
    %v237 = vld [vmem:[#allocation6 + $0x398] sm:$0xff]
    %v238 = vld [vmem:[#allocation6 + $0x3a0] sm:$0xff]
    %v239 = vld [vmem:[#allocation6 + $0x3a8] sm:$0xff]
    %v240 = vld [vmem:[#allocation6 + $0x3b0] sm:$0xff]
    %v241 = vld [vmem:[#allocation6 + $0x3b8] sm:$0xff]
    %v242 = vld [vmem:[#allocation6 + $0x3c0] sm:$0xff]
    %v243 = vld [vmem:[#allocation6 + $0x3c8] sm:$0xff]
    %v244 = vld [vmem:[#allocation6 + $0x3d0] sm:$0xff]
    %v245 = vld [vmem:[#allocation6 + $0x3d8] sm:$0xff]
    %v246 = vld [vmem:[#allocation6 + $0x3e0] sm:$0xff]
    %v247 = vld [vmem:[#allocation6 + $0x3e8] sm:$0xff]
    %v248 = vld [vmem:[#allocation6 + $0x3f0] sm:$0xff]
    %v249 = vld [vmem:[#allocation6 + $0x3f8] sm:$0xff]
    %v250 = vld [vmem:[#allocation6 + $0x400] sm:$0xff]
    %v251 = vld [vmem:[#allocation6 + $0x408] sm:$0xff]
    %v252 = vld [vmem:[#allocation6 + $0x410] sm:$0xff]
    %v253 = vld [vmem:[#allocation6 + $0x418] sm:$0xff]
    %v254 = vld [vmem:[#allocation6 + $0x420] sm:$0xff]
    %v255 = vld [vmem:[#allocation6 + $0x428] sm:$0xff]
    %v256 = vld [vmem:[#allocation6 + $0x430] sm:$0xff]
    %v257 = vld [vmem:[#allocation6 + $0x438] sm:$0xff]
    %v258 = vld [vmem:[#allocation6 + $0x440] sm:$0xff]
    %v259 = vld [vmem:[#allocation6 + $0x448] sm:$0xff]
    %v260 = vld [vmem:[#allocation6 + $0x450] sm:$0xff]
    %v261 = vld [vmem:[#allocation6 + $0x458] sm:$0xff]
    %v262 = vld [vmem:[#allocation6 + $0x460] sm:$0xff]
    %v263 = vld [vmem:[#allocation6 + $0x468] sm:$0xff]
    %v264 = vld [vmem:[#allocation6 + $0x470] sm:$0xff]
    %v265 = vld [vmem:[#allocation6 + $0x478] sm:$0xff]
    %v266 = vld [vmem:[#allocation6 + $0x480] sm:$0xff]
    %v267 = vld [vmem:[#allocation6 + $0x488] sm:$0xff]
    %v268 = vld [vmem:[#allocation6 + $0x490] sm:$0xff]
    %v269 = vld [vmem:[#allocation6 + $0x498] sm:$0xff]
    %v270 = vld [vmem:[#allocation6 + $0x4a0] sm:$0xff]
    %v271 = vld [vmem:[#allocation6 + $0x4a8] sm:$0xff]
    %v272 = vld [vmem:[#allocation6 + $0x4b0] sm:$0xff]
    %v273 = vld [vmem:[#allocation6 + $0x4b8] sm:$0xff]
    %v274 = vld [vmem:[#allocation6 + $0x4c0] sm:$0xff]
    %v275 = vld [vmem:[#allocation6 + $0x4c8] sm:$0xff]
    %v276 = vld [vmem:[#allocation6 + $0x4d0] sm:$0xff]
    %v277 = vld [vmem:[#allocation6 + $0x4d8] sm:$0xff]
    %v278 = vld [vmem:[#allocation6 + $0x4e0] sm:$0xff]
    %v279 = vld [vmem:[#allocation6 + $0x4e8] sm:$0xff]
    %v280 = vld [vmem:[#allocation6 + $0x4f0] sm:$0xff]
    %v281 = vld [vmem:[#allocation6 + $0x4f8] sm:$0xff]
    %v282 = vld [vmem:[#allocation6 + $0x500] sm:$0xff]
    %v283 = vld [vmem:[#allocation6 + $0x508] sm:$0xff]
    %v284 = vld [vmem:[#allocation6 + $0x510] sm:$0xff]
    %v285 = vld [vmem:[#allocation6 + $0x518] sm:$0xff]
    %v286 = vld [vmem:[#allocation6 + $0x520] sm:$0xff]
    %v287 = vld [vmem:[#allocation6 + $0x528] sm:$0xff]
    %v288 = vld [vmem:[#allocation6 + $0x530] sm:$0xff]
    %v289 = vld [vmem:[#allocation6 + $0x538] sm:$0xff]
    %v290 = vld [vmem:[#allocation6 + $0x540] sm:$0xff]
    %v291 = vld [vmem:[#allocation6 + $0x548] sm:$0xff]
    %v292 = vld [vmem:[#allocation6 + $0x550] sm:$0xff]
    %v293 = vld [vmem:[#allocation6 + $0x558] sm:$0xff]
    %v294 = vld [vmem:[#allocation6 + $0x560] sm:$0xff]
    %v295 = vld [vmem:[#allocation6 + $0x568] sm:$0xff]
    %v296 = vld [vmem:[#allocation6 + $0x570] sm:$0xff]
    %v297 = vld [vmem:[#allocation6 + $0x578] sm:$0xff]
    %v298 = vld [vmem:[#allocation6 + $0x580] sm:$0xff]
    %v299 = vld [vmem:[#allocation6 + $0x588] sm:$0xff]
    %v300 = vld [vmem:[#allocation6 + $0x590] sm:$0xff]
    %v301 = vld [vmem:[#allocation6 + $0x598] sm:$0xff]
    %v302 = vld [vmem:[#allocation6 + $0x5a0] sm:$0xff]
    %v303 = vld [vmem:[#allocation6 + $0x5a8] sm:$0xff]
    %v304 = vld [vmem:[#allocation6 + $0x5b0] sm:$0xff]
    %v305 = vld [vmem:[#allocation6 + $0x5b8] sm:$0xff]
    %v306 = vld [vmem:[#allocation6 + $0x5c0] sm:$0xff]
    %v307 = vld [vmem:[#allocation6 + $0x5c8] sm:$0xff]
    %v308 = vld [vmem:[#allocation6 + $0x5d0] sm:$0xff]
    %v309 = vld [vmem:[#allocation6 + $0x5d8] sm:$0xff]
    %v310 = vld [vmem:[#allocation6 + $0x5e0] sm:$0xff]
    %v311 = vld [vmem:[#allocation6 + $0x5e8] sm:$0xff]
    %v312 = vld [vmem:[#allocation6 + $0x5f0] sm:$0xff]
    %v313 = vld [vmem:[#allocation6 + $0x5f8] sm:$0xff]
    %v314 = vld [vmem:[#allocation6 + $0x600] sm:$0xff]
    %v315 = vld [vmem:[#allocation6 + $0x608] sm:$0xff]
    %v316 = vld [vmem:[#allocation6 + $0x610] sm:$0xff]
    %v317 = vld [vmem:[#allocation6 + $0x618] sm:$0xff]
    %v318 = vld [vmem:[#allocation6 + $0x620] sm:$0xff]
    %v319 = vld [vmem:[#allocation6 + $0x628] sm:$0xff]
    %v320 = vld [vmem:[#allocation6 + $0x630] sm:$0xff]
    %v321 = vld [vmem:[#allocation6 + $0x638] sm:$0xff]
    %v322 = vld [vmem:[#allocation6 + $0x640] sm:$0xff]
    %v323 = vld [vmem:[#allocation6 + $0x648] sm:$0xff]
    %v324 = vld [vmem:[#allocation6 + $0x650] sm:$0xff]
    %v325 = vld [vmem:[#allocation6 + $0x658] sm:$0xff]
    %v326 = vld [vmem:[#allocation6 + $0x660] sm:$0xff]
    %v327 = vld [vmem:[#allocation6 + $0x668] sm:$0xff]
    %v328 = vld [vmem:[#allocation6 + $0x670] sm:$0xff]
    %v329 = vld [vmem:[#allocation6 + $0x678] sm:$0xff]
    %v330 = vld [vmem:[#allocation6 + $0x680] sm:$0xff]
    %v331 = vld [vmem:[#allocation6 + $0x688] sm:$0xff]
    %v332 = vld [vmem:[#allocation6 + $0x690] sm:$0xff]
    %v333 = vld [vmem:[#allocation6 + $0x698] sm:$0xff]
    %v334 = vld [vmem:[#allocation6 + $0x6a0] sm:$0xff]
    %v335 = vld [vmem:[#allocation6 + $0x6a8] sm:$0xff]
    %v336 = vld [vmem:[#allocation6 + $0x6b0] sm:$0xff]
    %v337 = vld [vmem:[#allocation6 + $0x6b8] sm:$0xff]
    %v338 = vld [vmem:[#allocation6 + $0x6c0] sm:$0xff]
    %v339 = vld [vmem:[#allocation6 + $0x6c8] sm:$0xff]
    %v340 = vld [vmem:[#allocation6 + $0x6d0] sm:$0xff]
    %v341 = vld [vmem:[#allocation6 + $0x6d8] sm:$0xff]
    %v342 = vld [vmem:[#allocation6 + $0x6e0] sm:$0xff]
    %v343 = vld [vmem:[#allocation6 + $0x6e8] sm:$0xff]
    %v344 = vld [vmem:[#allocation6 + $0x6f0] sm:$0xff]
    %v345 = vld [vmem:[#allocation6 + $0x6f8] sm:$0xff]
    %v346 = vld [vmem:[#allocation6 + $0x700] sm:$0xff]
    %v347 = vld [vmem:[#allocation6 + $0x708] sm:$0xff]
    %v348 = vld [vmem:[#allocation6 + $0x710] sm:$0xff]
    %v349 = vld [vmem:[#allocation6 + $0x718] sm:$0xff]
    %v350 = vld [vmem:[#allocation6 + $0x720] sm:$0xff]
    %v351 = vld [vmem:[#allocation6 + $0x728] sm:$0xff]
    %v352 = vld [vmem:[#allocation6 + $0x730] sm:$0xff]
    %v353 = vld [vmem:[#allocation6 + $0x738] sm:$0xff]
    %v354 = vld [vmem:[#allocation6 + $0x740] sm:$0xff]
    %v355 = vld [vmem:[#allocation6 + $0x748] sm:$0xff]
    %v356 = vld [vmem:[#allocation6 + $0x750] sm:$0xff]
    %v357 = vld [vmem:[#allocation6 + $0x758] sm:$0xff]
    %v358 = vld [vmem:[#allocation6 + $0x760] sm:$0xff]
    %v359 = vld [vmem:[#allocation6 + $0x768] sm:$0xff]
    %v360 = vld [vmem:[#allocation6 + $0x770] sm:$0xff]
    %v361 = vld [vmem:[#allocation6 + $0x778] sm:$0xff]
    %v362 = vld [vmem:[#allocation6 + $0x780] sm:$0xff]
    %v363 = vld [vmem:[#allocation6 + $0x788] sm:$0xff]
    %v364 = vld [vmem:[#allocation6 + $0x790] sm:$0xff]
    %v365 = vld [vmem:[#allocation6 + $0x798] sm:$0xff]
    %v366 = vld [vmem:[#allocation6 + $0x7a0] sm:$0xff]
    %v367 = vld [vmem:[#allocation6 + $0x7a8] sm:$0xff]
    %v368 = vld [vmem:[#allocation6 + $0x7b0] sm:$0xff]
    %v369 = vld [vmem:[#allocation6 + $0x7b8] sm:$0xff]
    %v370 = vld [vmem:[#allocation6 + $0x7c0] sm:$0xff]
    %v371 = vld [vmem:[#allocation6 + $0x7c8] sm:$0xff]
    %v372 = vld [vmem:[#allocation6 + $0x7d0] sm:$0xff]
    %v373 = vld [vmem:[#allocation6 + $0x7d8] sm:$0xff]
    %v374 = vld [vmem:[#allocation6 + $0x7e0] sm:$0xff]
    %v375 = vld [vmem:[#allocation6 + $0x7e8] sm:$0xff]
    %v376 = vld [vmem:[#allocation6 + $0x7f0] sm:$0xff]
    %v377 = vld [vmem:[#allocation6 + $0x7f8] sm:$0xff]
    %v378 = vld [vmem:[#allocation6 + $0x800] sm:$0xff]
    %v379 = vld [vmem:[#allocation6 + $0x808] sm:$0xff]
    %v380 = vld [vmem:[#allocation6 + $0x810] sm:$0xff]
    %v381 = vld [vmem:[#allocation6 + $0x818] sm:$0xff]
    %v382 = vld [vmem:[#allocation6 + $0x820] sm:$0xff]
    %v383 = vld [vmem:[#allocation6 + $0x828] sm:$0xff]
    %v384 = vld [vmem:[#allocation6 + $0x830] sm:$0xff]
    %v385 = vld [vmem:[#allocation6 + $0x838] sm:$0xff]
    %v386 = vld [vmem:[#allocation6 + $0x840] sm:$0xff]
    %v387 = vld [vmem:[#allocation6 + $0x848] sm:$0xff]
    %v388 = vld [vmem:[#allocation6 + $0x850] sm:$0xff]
    %v389 = vld [vmem:[#allocation6 + $0x858] sm:$0xff]
    %v390 = vld [vmem:[#allocation6 + $0x860] sm:$0xff]
    %v391 = vld [vmem:[#allocation6 + $0x868] sm:$0xff]
    %v392 = vld [vmem:[#allocation6 + $0x870] sm:$0xff]
    %v393 = vld [vmem:[#allocation6 + $0x878] sm:$0xff]
    %v394 = vld [vmem:[#allocation6 + $0x880] sm:$0xff]
    %v395 = vld [vmem:[#allocation6 + $0x888] sm:$0xff]
    %v396 = vld [vmem:[#allocation6 + $0x890] sm:$0xff]
    %v397 = vld [vmem:[#allocation6 + $0x898] sm:$0xff]
    %v398 = vld [vmem:[#allocation6 + $0x8a0] sm:$0xff]
    %v399 = vld [vmem:[#allocation6 + $0x8a8] sm:$0xff]
    %v400 = vld [vmem:[#allocation6 + $0x8b0] sm:$0xff]
    %v401 = vld [vmem:[#allocation6 + $0x8b8] sm:$0xff]
    %v402 = vld [vmem:[#allocation6 + $0x8c0] sm:$0xff]
    %v403 = vld [vmem:[#allocation6 + $0x8c8] sm:$0xff]
    %v404 = vld [vmem:[#allocation6 + $0x8d0] sm:$0xff]
    %v405 = vld [vmem:[#allocation6 + $0x8d8] sm:$0xff]
    %v406 = vld [vmem:[#allocation6 + $0x8e0] sm:$0xff]
    %v407 = vld [vmem:[#allocation6 + $0x8e8] sm:$0xff]
    %v408 = vld [vmem:[#allocation6 + $0x8f0] sm:$0xff]
    %v409 = vld [vmem:[#allocation6 + $0x8f8] sm:$0xff]
    %v410 = vld [vmem:[#allocation6 + $0x900] sm:$0xff]
    %v411 = vld [vmem:[#allocation6 + $0x908] sm:$0xff]
    %v412 = vld [vmem:[#allocation6 + $0x910] sm:$0xff]
    %v413 = vld [vmem:[#allocation6 + $0x918] sm:$0xff]
    %v414 = vld [vmem:[#allocation6 + $0x920] sm:$0xff]
    %v415 = vld [vmem:[#allocation6 + $0x928] sm:$0xff]
    %v416 = vld [vmem:[#allocation6 + $0x930] sm:$0xff]
    %v417 = vld [vmem:[#allocation6 + $0x938] sm:$0xff]
    %v418 = vld [vmem:[#allocation6 + $0x940] sm:$0xff]
    %v419 = vld [vmem:[#allocation6 + $0x948] sm:$0xff]
    %v420 = vld [vmem:[#allocation6 + $0x950] sm:$0xff]
    %v421 = vld [vmem:[#allocation6 + $0x958] sm:$0xff]
    %v422 = vld [vmem:[#allocation6 + $0x960] sm:$0xff]
    %v423 = vld [vmem:[#allocation6 + $0x968] sm:$0xff]
    %v424 = vld [vmem:[#allocation6 + $0x970] sm:$0xff]
    %v425 = vld [vmem:[#allocation6 + $0x978] sm:$0xff]
    %v426 = vld [vmem:[#allocation6 + $0x980] sm:$0xff]
    %v427 = vld [vmem:[#allocation6 + $0x988] sm:$0xff]
    %v428 = vld [vmem:[#allocation6 + $0x990] sm:$0xff]
    %v429 = vld [vmem:[#allocation6 + $0x998] sm:$0xff]
    %v430 = vld [vmem:[#allocation6 + $0x9a0] sm:$0xff]
    %v431 = vld [vmem:[#allocation6 + $0x9a8] sm:$0xff]
    %v432 = vld [vmem:[#allocation6 + $0x9b0] sm:$0xff]
    %v433 = vld [vmem:[#allocation6 + $0x9b8] sm:$0xff]
    %v434 = vld [vmem:[#allocation6 + $0x9c0] sm:$0xff]
    %v435 = vld [vmem:[#allocation6 + $0x9c8] sm:$0xff]
    %v436 = vld [vmem:[#allocation6 + $0x9d0] sm:$0xff]
    %v437 = vld [vmem:[#allocation6 + $0x9d8] sm:$0xff]
    %v438 = vld [vmem:[#allocation6 + $0x9e0] sm:$0xff]
    %v439 = vld [vmem:[#allocation6 + $0x9e8] sm:$0xff]
    %v440 = vld [vmem:[#allocation6 + $0x9f0] sm:$0xff]
    %v441 = vld [vmem:[#allocation6 + $0x9f8] sm:$0xff]
    %v442 = vld [vmem:[#allocation6 + $0xa00] sm:$0xff]
    %v443 = vld [vmem:[#allocation6 + $0xa08] sm:$0xff]
    %v444 = vld [vmem:[#allocation6 + $0xa10] sm:$0xff]
    %v445 = vld [vmem:[#allocation6 + $0xa18] sm:$0xff]
    %v446 = vld [vmem:[#allocation6 + $0xa20] sm:$0xff]
    %v447 = vld [vmem:[#allocation6 + $0xa28] sm:$0xff]
    %v448 = vld [vmem:[#allocation6 + $0xa30] sm:$0xff]
    %v449 = vld [vmem:[#allocation6 + $0xa38] sm:$0xff]
    %v450 = vld [vmem:[#allocation6 + $0xa40] sm:$0xff]
    %v451 = vld [vmem:[#allocation6 + $0xa48] sm:$0xff]
    %v452 = vld [vmem:[#allocation6 + $0xa50] sm:$0xff]
    %v453 = vld [vmem:[#allocation6 + $0xa58] sm:$0xff]
    %v454 = vld [vmem:[#allocation6 + $0xa60] sm:$0xff]
    %v455 = vld [vmem:[#allocation6 + $0xa68] sm:$0xff]
    %v456 = vld [vmem:[#allocation6 + $0xa70] sm:$0xff]
    %v457 = vld [vmem:[#allocation6 + $0xa78] sm:$0xff]
    %v458 = vld [vmem:[#allocation6 + $0xa80] sm:$0xff]
    %v459 = vld [vmem:[#allocation6 + $0xa88] sm:$0xff]
    %v460 = vld [vmem:[#allocation6 + $0xa90] sm:$0xff]
    %v461 = vld [vmem:[#allocation6 + $0xa98] sm:$0xff]
    %v462 = vld [vmem:[#allocation6 + $0xaa0] sm:$0xff]
    %v463 = vld [vmem:[#allocation6 + $0xaa8] sm:$0xff]
    %v464 = vld [vmem:[#allocation6 + $0xab0] sm:$0xff]
    %v465 = vld [vmem:[#allocation6 + $0xab8] sm:$0xff]
    %v466 = vld [vmem:[#allocation6 + $0xac0] sm:$0xff]
    %v467 = vld [vmem:[#allocation6 + $0xac8] sm:$0xff]
    %v468 = vld [vmem:[#allocation6 + $0xad0] sm:$0xff]
    %v469 = vld [vmem:[#allocation6 + $0xad8] sm:$0xff]
    %v470 = vld [vmem:[#allocation6 + $0xae0] sm:$0xff]
    %v471 = vld [vmem:[#allocation6 + $0xae8] sm:$0xff]
    %v472 = vld [vmem:[#allocation6 + $0xaf0] sm:$0xff]
    %v473 = vld [vmem:[#allocation6 + $0xaf8] sm:$0xff]
    %v474 = vld [vmem:[#allocation6 + $0xb00] sm:$0xff]
    %v475 = vld [vmem:[#allocation6 + $0xb08] sm:$0xff]
    %v476 = vld [vmem:[#allocation6 + $0xb10] sm:$0xff]
    %v477 = vld [vmem:[#allocation6 + $0xb18] sm:$0xff]
    %v478 = vld [vmem:[#allocation6 + $0xb20] sm:$0xff]
    %v479 = vld [vmem:[#allocation6 + $0xb28] sm:$0xff]
    %v480 = vld [vmem:[#allocation6 + $0xb30] sm:$0xff]
    %v481 = vld [vmem:[#allocation6 + $0xb38] sm:$0xff]
    %v482 = vld [vmem:[#allocation6 + $0xb40] sm:$0xff]
    %v483 = vld [vmem:[#allocation6 + $0xb48] sm:$0xff]
    %v484 = vld [vmem:[#allocation6 + $0xb50] sm:$0xff]
    %v485 = vld [vmem:[#allocation6 + $0xb58] sm:$0xff]
    %v486 = vld [vmem:[#allocation6 + $0xb60] sm:$0xff]
    %v487 = vld [vmem:[#allocation6 + $0xb68] sm:$0xff]
    %v488 = vld [vmem:[#allocation6 + $0xb70] sm:$0xff]
    %v489 = vld [vmem:[#allocation6 + $0xb78] sm:$0xff]
    %v490 = vld [vmem:[#allocation6 + $0xb80] sm:$0xff]
    %v491 = vld [vmem:[#allocation6 + $0xb88] sm:$0xff]
    %v492 = vld [vmem:[#allocation6 + $0xb90] sm:$0xff]
    %v493 = vld [vmem:[#allocation6 + $0xb98] sm:$0xff]
    %v494 = vld [vmem:[#allocation6 + $0xba0] sm:$0xff]
    %v495 = vld [vmem:[#allocation6 + $0xba8] sm:$0xff]
    %v496 = vld [vmem:[#allocation6 + $0xbb0] sm:$0xff]
    %v497 = vld [vmem:[#allocation6 + $0xbb8] sm:$0xff]
    %v498 = vld [vmem:[#allocation6 + $0xbc0] sm:$0xff]
    %v499 = vld [vmem:[#allocation6 + $0xbc8] sm:$0xff]
    %v500 = vld [vmem:[#allocation6 + $0xbd0] sm:$0xff]
    %v501 = vld [vmem:[#allocation6 + $0xbd8] sm:$0xff]
    %v502 = vld [vmem:[#allocation6 + $0xbe0] sm:$0xff]
    %v503 = vld [vmem:[#allocation6 + $0xbe8] sm:$0xff]
    %v504 = vld [vmem:[#allocation6 + $0xbf0] sm:$0xff]
    %v505 = vld [vmem:[#allocation6 + $0xbf8] sm:$0xff]
    %v506 = vld [vmem:[#allocation8] sm:$0xff]
    %v508 = vlaneseq
    %v509 = vshrl.u32 %v508, 7
    %v510 = vsub.s32 0, %v509
    %v511 = vrot.slane %v506, %v510
    %v512 = vlaneseq
    %v513 = vshrl.u32 %v512, 7
    %v514 = vsub.s32 1, %v513
    %v515 = vrot.slane %v506, %v514
    %v516 = vlaneseq
    %v517 = vshrl.u32 %v516, 7
    %v518 = vsub.s32 2, %v517
    %v519 = vrot.slane %v506, %v518
    %v520 = vlaneseq
    %v521 = vshrl.u32 %v520, 7
    %v522 = vsub.s32 3, %v521
    %v523 = vrot.slane %v506, %v522
    %v524 = vlaneseq
    %v525 = vshrl.u32 %v524, 7
    %v526 = vsub.s32 4, %v525
    %v527 = vrot.slane %v506, %v526
    %v528 = vlaneseq
    %v529 = vshrl.u32 %v528, 7
    %v530 = vsub.s32 5, %v529
    %v531 = vrot.slane %v506, %v530
    %v532 = vlaneseq
    %v533 = vshrl.u32 %v532, 7
    %v534 = vsub.s32 6, %v533
    %v535 = vrot.slane %v506, %v534
    %v536 = vlaneseq
    %v537 = vshrl.u32 %v536, 7
    %v538 = vsub.s32 7, %v537
    %v539 = vrot.slane %v506, %v538
    %v932 = vunpack.c.l.b16 %v122
    %v933 = vunpack.c.h.b16 %v122
    %v934 = vunpack.c.l.b16 %v123
    %v935 = vunpack.c.h.b16 %v123
    %v936 = vunpack.c.l.b16 %v124
    %v937 = vunpack.c.h.b16 %v124
    %v938 = vunpack.c.l.b16 %v125
    %v939 = vunpack.c.h.b16 %v125
    %v940 = vunpack.c.l.b16 %v126
    %v941 = vunpack.c.h.b16 %v126
    %v942 = vunpack.c.l.b16 %v127
    %v943 = vunpack.c.h.b16 %v127
    %v944 = vunpack.c.l.b16 %v128
    %v945 = vunpack.c.h.b16 %v128
    %v946 = vunpack.c.l.b16 %v129
    %v947 = vunpack.c.h.b16 %v129
    %v948 = vunpack.c.l.b16 %v130
    %v949 = vunpack.c.h.b16 %v130
    %v950 = vunpack.c.l.b16 %v131
    %v951 = vunpack.c.h.b16 %v131
    %v952 = vunpack.c.l.b16 %v132
    %v953 = vunpack.c.h.b16 %v132
    %v954 = vunpack.c.l.b16 %v133
    %v955 = vunpack.c.h.b16 %v133
    %v956 = vunpack.c.l.b16 %v134
    %v957 = vunpack.c.h.b16 %v134
    %v958 = vunpack.c.l.b16 %v135
    %v959 = vunpack.c.h.b16 %v135
    %v960 = vunpack.c.l.b16 %v136
    %v961 = vunpack.c.h.b16 %v136
    %v962 = vunpack.c.l.b16 %v137
    %v963 = vunpack.c.h.b16 %v137
    %v964 = vunpack.c.l.b16 %v138
    %v965 = vunpack.c.h.b16 %v138
    %v966 = vunpack.c.l.b16 %v139
    %v967 = vunpack.c.h.b16 %v139
    %v968 = vunpack.c.l.b16 %v140
    %v969 = vunpack.c.h.b16 %v140
    %v970 = vunpack.c.l.b16 %v141
    %v971 = vunpack.c.h.b16 %v141
    %v972 = vunpack.c.l.b16 %v142
    %v973 = vunpack.c.h.b16 %v142
    %v974 = vunpack.c.l.b16 %v143
    %v975 = vunpack.c.h.b16 %v143
    %v976 = vunpack.c.l.b16 %v144
    %v977 = vunpack.c.h.b16 %v144
    %v978 = vunpack.c.l.b16 %v145
    %v979 = vunpack.c.h.b16 %v145
    %v980 = vunpack.c.l.b16 %v146
    %v981 = vunpack.c.h.b16 %v146
    %v982 = vunpack.c.l.b16 %v147
    %v983 = vunpack.c.h.b16 %v147
    %v984 = vunpack.c.l.b16 %v148
    %v985 = vunpack.c.h.b16 %v148
    %v986 = vunpack.c.l.b16 %v149
    %v987 = vunpack.c.h.b16 %v149
    %v988 = vunpack.c.l.b16 %v150
    %v989 = vunpack.c.h.b16 %v150
    %v990 = vunpack.c.l.b16 %v151
    %v991 = vunpack.c.h.b16 %v151
    %v992 = vunpack.c.l.b16 %v152
    %v993 = vunpack.c.h.b16 %v152
    %v994 = vunpack.c.l.b16 %v153
    %v995 = vunpack.c.h.b16 %v153
    %v996 = vunpack.c.l.b16 %v154
    %v997 = vunpack.c.h.b16 %v154
    %v998 = vunpack.c.l.b16 %v155
    %v999 = vunpack.c.h.b16 %v155
    %v1000 = vunpack.c.l.b16 %v156
    %v1001 = vunpack.c.h.b16 %v156
    %v1002 = vunpack.c.l.b16 %v157
    %v1003 = vunpack.c.h.b16 %v157
    %v1004 = vunpack.c.l.b16 %v158
    %v1005 = vunpack.c.h.b16 %v158
    %v1006 = vunpack.c.l.b16 %v159
    %v1007 = vunpack.c.h.b16 %v159
    %v1008 = vunpack.c.l.b16 %v160
    %v1009 = vunpack.c.h.b16 %v160
    %v1010 = vunpack.c.l.b16 %v161
    %v1011 = vunpack.c.h.b16 %v161
    %v1012 = vunpack.c.l.b16 %v162
    %v1013 = vunpack.c.h.b16 %v162
    %v1014 = vunpack.c.l.b16 %v163
    %v1015 = vunpack.c.h.b16 %v163
    %v1016 = vunpack.c.l.b16 %v164
    %v1017 = vunpack.c.h.b16 %v164
    %v1018 = vunpack.c.l.b16 %v165
    %v1019 = vunpack.c.h.b16 %v165
    %v1020 = vunpack.c.l.b16 %v166
    %v1021 = vunpack.c.h.b16 %v166
    %v1022 = vunpack.c.l.b16 %v167
    %v1023 = vunpack.c.h.b16 %v167
    %v1024 = vunpack.c.l.b16 %v168
    %v1025 = vunpack.c.h.b16 %v168
    %v1026 = vunpack.c.l.b16 %v169
    %v1027 = vunpack.c.h.b16 %v169
    %v1028 = vunpack.c.l.b16 %v170
    %v1029 = vunpack.c.h.b16 %v170
    %v1030 = vunpack.c.l.b16 %v171
    %v1031 = vunpack.c.h.b16 %v171
    %v1032 = vunpack.c.l.b16 %v172
    %v1033 = vunpack.c.h.b16 %v172
    %v1034 = vunpack.c.l.b16 %v173
    %v1035 = vunpack.c.h.b16 %v173
    %v1036 = vunpack.c.l.b16 %v174
    %v1037 = vunpack.c.h.b16 %v174
    %v1038 = vunpack.c.l.b16 %v175
    %v1039 = vunpack.c.h.b16 %v175
    %v1040 = vunpack.c.l.b16 %v176
    %v1041 = vunpack.c.h.b16 %v176
    %v1042 = vunpack.c.l.b16 %v177
    %v1043 = vunpack.c.h.b16 %v177
    %v1044 = vunpack.c.l.b16 %v178
    %v1045 = vunpack.c.h.b16 %v178
    %v1046 = vunpack.c.l.b16 %v179
    %v1047 = vunpack.c.h.b16 %v179
    %v1048 = vunpack.c.l.b16 %v180
    %v1049 = vunpack.c.h.b16 %v180
    %v1050 = vunpack.c.l.b16 %v181
    %v1051 = vunpack.c.h.b16 %v181
    %v1052 = vunpack.c.l.b16 %v182
    %v1053 = vunpack.c.h.b16 %v182
    %v1054 = vunpack.c.l.b16 %v183
    %v1055 = vunpack.c.h.b16 %v183
    %v1056 = vunpack.c.l.b16 %v184
    %v1057 = vunpack.c.h.b16 %v184
    %v1058 = vunpack.c.l.b16 %v185
    %v1059 = vunpack.c.h.b16 %v185
    %v1060 = vunpack.c.l.b16 %v186
    %v1061 = vunpack.c.h.b16 %v186
    %v1062 = vunpack.c.l.b16 %v187
    %v1063 = vunpack.c.h.b16 %v187
    %v1064 = vunpack.c.l.b16 %v188
    %v1065 = vunpack.c.h.b16 %v188
    %v1066 = vunpack.c.l.b16 %v189
    %v1067 = vunpack.c.h.b16 %v189
    %v1068 = vunpack.c.l.b16 %v190
    %v1069 = vunpack.c.h.b16 %v190
    %v1070 = vunpack.c.l.b16 %v191
    %v1071 = vunpack.c.h.b16 %v191
    %v1072 = vunpack.c.l.b16 %v192
    %v1073 = vunpack.c.h.b16 %v192
    %v1074 = vunpack.c.l.b16 %v193
    %v1075 = vunpack.c.h.b16 %v193
    %v1076 = vunpack.c.l.b16 %v194
    %v1077 = vunpack.c.h.b16 %v194
    %v1078 = vunpack.c.l.b16 %v195
    %v1079 = vunpack.c.h.b16 %v195
    %v1080 = vunpack.c.l.b16 %v196
    %v1081 = vunpack.c.h.b16 %v196
    %v1082 = vunpack.c.l.b16 %v197
    %v1083 = vunpack.c.h.b16 %v197
    %v1084 = vunpack.c.l.b16 %v198
    %v1085 = vunpack.c.h.b16 %v198
    %v1086 = vunpack.c.l.b16 %v199
    %v1087 = vunpack.c.h.b16 %v199
    %v1088 = vunpack.c.l.b16 %v200
    %v1089 = vunpack.c.h.b16 %v200
    %v1090 = vunpack.c.l.b16 %v201
    %v1091 = vunpack.c.h.b16 %v201
    %v1092 = vunpack.c.l.b16 %v202
    %v1093 = vunpack.c.h.b16 %v202
    %v1094 = vunpack.c.l.b16 %v203
    %v1095 = vunpack.c.h.b16 %v203
    %v1096 = vunpack.c.l.b16 %v204
    %v1097 = vunpack.c.h.b16 %v204
    %v1098 = vunpack.c.l.b16 %v205
    %v1099 = vunpack.c.h.b16 %v205
    %v1100 = vunpack.c.l.b16 %v206
    %v1101 = vunpack.c.h.b16 %v206
    %v1102 = vunpack.c.l.b16 %v207
    %v1103 = vunpack.c.h.b16 %v207
    %v1104 = vunpack.c.l.b16 %v208
    %v1105 = vunpack.c.h.b16 %v208
    %v1106 = vunpack.c.l.b16 %v209
    %v1107 = vunpack.c.h.b16 %v209
    %v1108 = vunpack.c.l.b16 %v210
    %v1109 = vunpack.c.h.b16 %v210
    %v1110 = vunpack.c.l.b16 %v211
    %v1111 = vunpack.c.h.b16 %v211
    %v1112 = vunpack.c.l.b16 %v212
    %v1113 = vunpack.c.h.b16 %v212
    %v1114 = vunpack.c.l.b16 %v213
    %v1115 = vunpack.c.h.b16 %v213
    %v1116 = vunpack.c.l.b16 %v214
    %v1117 = vunpack.c.h.b16 %v214
    %v1118 = vunpack.c.l.b16 %v215
    %v1119 = vunpack.c.h.b16 %v215
    %v1120 = vunpack.c.l.b16 %v216
    %v1121 = vunpack.c.h.b16 %v216
    %v1122 = vunpack.c.l.b16 %v217
    %v1123 = vunpack.c.h.b16 %v217
    %v1124 = vunpack.c.l.b16 %v218
    %v1125 = vunpack.c.h.b16 %v218
    %v1126 = vunpack.c.l.b16 %v219
    %v1127 = vunpack.c.h.b16 %v219
    %v1128 = vunpack.c.l.b16 %v220
    %v1129 = vunpack.c.h.b16 %v220
    %v1130 = vunpack.c.l.b16 %v221
    %v1131 = vunpack.c.h.b16 %v221
    %v1132 = vunpack.c.l.b16 %v222
    %v1133 = vunpack.c.h.b16 %v222
    %v1134 = vunpack.c.l.b16 %v223
    %v1135 = vunpack.c.h.b16 %v223
    %v1136 = vunpack.c.l.b16 %v224
    %v1137 = vunpack.c.h.b16 %v224
    %v1138 = vunpack.c.l.b16 %v225
    %v1139 = vunpack.c.h.b16 %v225
    %v1140 = vunpack.c.l.b16 %v226
    %v1141 = vunpack.c.h.b16 %v226
    %v1142 = vunpack.c.l.b16 %v227
    %v1143 = vunpack.c.h.b16 %v227
    %v1144 = vunpack.c.l.b16 %v228
    %v1145 = vunpack.c.h.b16 %v228
    %v1146 = vunpack.c.l.b16 %v229
    %v1147 = vunpack.c.h.b16 %v229
    %v1148 = vunpack.c.l.b16 %v230
    %v1149 = vunpack.c.h.b16 %v230
    %v1150 = vunpack.c.l.b16 %v231
    %v1151 = vunpack.c.h.b16 %v231
    %v1152 = vunpack.c.l.b16 %v232
    %v1153 = vunpack.c.h.b16 %v232
    %v1154 = vunpack.c.l.b16 %v233
    %v1155 = vunpack.c.h.b16 %v233
    %v1156 = vunpack.c.l.b16 %v234
    %v1157 = vunpack.c.h.b16 %v234
    %v1158 = vunpack.c.l.b16 %v235
    %v1159 = vunpack.c.h.b16 %v235
    %v1160 = vunpack.c.l.b16 %v236
    %v1161 = vunpack.c.h.b16 %v236
    %v1162 = vunpack.c.l.b16 %v237
    %v1163 = vunpack.c.h.b16 %v237
    %v1164 = vunpack.c.l.b16 %v238
    %v1165 = vunpack.c.h.b16 %v238
    %v1166 = vunpack.c.l.b16 %v239
    %v1167 = vunpack.c.h.b16 %v239
    %v1168 = vunpack.c.l.b16 %v240
    %v1169 = vunpack.c.h.b16 %v240
    %v1170 = vunpack.c.l.b16 %v241
    %v1171 = vunpack.c.h.b16 %v241
    %v1172 = vunpack.c.l.b16 %v242
    %v1173 = vunpack.c.h.b16 %v242
    %v1174 = vunpack.c.l.b16 %v243
    %v1175 = vunpack.c.h.b16 %v243
    %v1176 = vunpack.c.l.b16 %v244
    %v1177 = vunpack.c.h.b16 %v244
    %v1178 = vunpack.c.l.b16 %v245
    %v1179 = vunpack.c.h.b16 %v245
    %v1180 = vunpack.c.l.b16 %v246
    %v1181 = vunpack.c.h.b16 %v246
    %v1182 = vunpack.c.l.b16 %v247
    %v1183 = vunpack.c.h.b16 %v247
    %v1184 = vunpack.c.l.b16 %v248
    %v1185 = vunpack.c.h.b16 %v248
    %v1186 = vunpack.c.l.b16 %v249
    %v1187 = vunpack.c.h.b16 %v249
    %v1188 = vunpack.c.l.b16 %v250
    %v1189 = vunpack.c.h.b16 %v250
    %v1190 = vunpack.c.l.b16 %v251
    %v1191 = vunpack.c.h.b16 %v251
    %v1192 = vunpack.c.l.b16 %v252
    %v1193 = vunpack.c.h.b16 %v252
    %v1194 = vunpack.c.l.b16 %v253
    %v1195 = vunpack.c.h.b16 %v253
    %v1196 = vunpack.c.l.b16 %v254
    %v1197 = vunpack.c.h.b16 %v254
    %v1198 = vunpack.c.l.b16 %v255
    %v1199 = vunpack.c.h.b16 %v255
    %v1200 = vunpack.c.l.b16 %v256
    %v1201 = vunpack.c.h.b16 %v256
    %v1202 = vunpack.c.l.b16 %v257
    %v1203 = vunpack.c.h.b16 %v257
    %v1204 = vunpack.c.l.b16 %v258
    %v1205 = vunpack.c.h.b16 %v258
    %v1206 = vunpack.c.l.b16 %v259
    %v1207 = vunpack.c.h.b16 %v259
    %v1208 = vunpack.c.l.b16 %v260
    %v1209 = vunpack.c.h.b16 %v260
    %v1210 = vunpack.c.l.b16 %v261
    %v1211 = vunpack.c.h.b16 %v261
    %v1212 = vunpack.c.l.b16 %v262
    %v1213 = vunpack.c.h.b16 %v262
    %v1214 = vunpack.c.l.b16 %v263
    %v1215 = vunpack.c.h.b16 %v263
    %v1216 = vunpack.c.l.b16 %v264
    %v1217 = vunpack.c.h.b16 %v264
    %v1218 = vunpack.c.l.b16 %v265
    %v1219 = vunpack.c.h.b16 %v265
    %v1220 = vunpack.c.l.b16 %v266
    %v1221 = vunpack.c.h.b16 %v266
    %v1222 = vunpack.c.l.b16 %v267
    %v1223 = vunpack.c.h.b16 %v267
    %v1224 = vunpack.c.l.b16 %v268
    %v1225 = vunpack.c.h.b16 %v268
    %v1226 = vunpack.c.l.b16 %v269
    %v1227 = vunpack.c.h.b16 %v269
    %v1228 = vunpack.c.l.b16 %v270
    %v1229 = vunpack.c.h.b16 %v270
    %v1230 = vunpack.c.l.b16 %v271
    %v1231 = vunpack.c.h.b16 %v271
    %v1232 = vunpack.c.l.b16 %v272
    %v1233 = vunpack.c.h.b16 %v272
    %v1234 = vunpack.c.l.b16 %v273
    %v1235 = vunpack.c.h.b16 %v273
    %v1236 = vunpack.c.l.b16 %v274
    %v1237 = vunpack.c.h.b16 %v274
    %v1238 = vunpack.c.l.b16 %v275
    %v1239 = vunpack.c.h.b16 %v275
    %v1240 = vunpack.c.l.b16 %v276
    %v1241 = vunpack.c.h.b16 %v276
    %v1242 = vunpack.c.l.b16 %v277
    %v1243 = vunpack.c.h.b16 %v277
    %v1244 = vunpack.c.l.b16 %v278
    %v1245 = vunpack.c.h.b16 %v278
    %v1246 = vunpack.c.l.b16 %v279
    %v1247 = vunpack.c.h.b16 %v279
    %v1248 = vunpack.c.l.b16 %v280
    %v1249 = vunpack.c.h.b16 %v280
    %v1250 = vunpack.c.l.b16 %v281
    %v1251 = vunpack.c.h.b16 %v281
    %v1252 = vunpack.c.l.b16 %v282
    %v1253 = vunpack.c.h.b16 %v282
    %v1254 = vunpack.c.l.b16 %v283
    %v1255 = vunpack.c.h.b16 %v283
    %v1256 = vunpack.c.l.b16 %v284
    %v1257 = vunpack.c.h.b16 %v284
    %v1258 = vunpack.c.l.b16 %v285
    %v1259 = vunpack.c.h.b16 %v285
    %v1260 = vunpack.c.l.b16 %v286
    %v1261 = vunpack.c.h.b16 %v286
    %v1262 = vunpack.c.l.b16 %v287
    %v1263 = vunpack.c.h.b16 %v287
    %v1264 = vunpack.c.l.b16 %v288
    %v1265 = vunpack.c.h.b16 %v288
    %v1266 = vunpack.c.l.b16 %v289
    %v1267 = vunpack.c.h.b16 %v289
    %v1268 = vunpack.c.l.b16 %v290
    %v1269 = vunpack.c.h.b16 %v290
    %v1270 = vunpack.c.l.b16 %v291
    %v1271 = vunpack.c.h.b16 %v291
    %v1272 = vunpack.c.l.b16 %v292
    %v1273 = vunpack.c.h.b16 %v292
    %v1274 = vunpack.c.l.b16 %v293
    %v1275 = vunpack.c.h.b16 %v293
    %v1276 = vunpack.c.l.b16 %v294
    %v1277 = vunpack.c.h.b16 %v294
    %v1278 = vunpack.c.l.b16 %v295
    %v1279 = vunpack.c.h.b16 %v295
    %v1280 = vunpack.c.l.b16 %v296
    %v1281 = vunpack.c.h.b16 %v296
    %v1282 = vunpack.c.l.b16 %v297
    %v1283 = vunpack.c.h.b16 %v297
    %v1284 = vunpack.c.l.b16 %v298
    %v1285 = vunpack.c.h.b16 %v298
    %v1286 = vunpack.c.l.b16 %v299
    %v1287 = vunpack.c.h.b16 %v299
    %v1288 = vunpack.c.l.b16 %v300
    %v1289 = vunpack.c.h.b16 %v300
    %v1290 = vunpack.c.l.b16 %v301
    %v1291 = vunpack.c.h.b16 %v301
    %v1292 = vunpack.c.l.b16 %v302
    %v1293 = vunpack.c.h.b16 %v302
    %v1294 = vunpack.c.l.b16 %v303
    %v1295 = vunpack.c.h.b16 %v303
    %v1296 = vunpack.c.l.b16 %v304
    %v1297 = vunpack.c.h.b16 %v304
    %v1298 = vunpack.c.l.b16 %v305
    %v1299 = vunpack.c.h.b16 %v305
    %v1300 = vunpack.c.l.b16 %v306
    %v1301 = vunpack.c.h.b16 %v306
    %v1302 = vunpack.c.l.b16 %v307
    %v1303 = vunpack.c.h.b16 %v307
    %v1304 = vunpack.c.l.b16 %v308
    %v1305 = vunpack.c.h.b16 %v308
    %v1306 = vunpack.c.l.b16 %v309
    %v1307 = vunpack.c.h.b16 %v309
    %v1308 = vunpack.c.l.b16 %v310
    %v1309 = vunpack.c.h.b16 %v310
    %v1310 = vunpack.c.l.b16 %v311
    %v1311 = vunpack.c.h.b16 %v311
    %v1312 = vunpack.c.l.b16 %v312
    %v1313 = vunpack.c.h.b16 %v312
    %v1314 = vunpack.c.l.b16 %v313
    %v1315 = vunpack.c.h.b16 %v313
    %v1316 = vunpack.c.l.b16 %v314
    %v1317 = vunpack.c.h.b16 %v314
    %v1318 = vunpack.c.l.b16 %v315
    %v1319 = vunpack.c.h.b16 %v315
    %v1320 = vunpack.c.l.b16 %v316
    %v1321 = vunpack.c.h.b16 %v316
    %v1322 = vunpack.c.l.b16 %v317
    %v1323 = vunpack.c.h.b16 %v317
    %v1324 = vunpack.c.l.b16 %v318
    %v1325 = vunpack.c.h.b16 %v318
    %v1326 = vunpack.c.l.b16 %v319
    %v1327 = vunpack.c.h.b16 %v319
    %v1328 = vunpack.c.l.b16 %v320
    %v1329 = vunpack.c.h.b16 %v320
    %v1330 = vunpack.c.l.b16 %v321
    %v1331 = vunpack.c.h.b16 %v321
    %v1332 = vunpack.c.l.b16 %v322
    %v1333 = vunpack.c.h.b16 %v322
    %v1334 = vunpack.c.l.b16 %v323
    %v1335 = vunpack.c.h.b16 %v323
    %v1336 = vunpack.c.l.b16 %v324
    %v1337 = vunpack.c.h.b16 %v324
    %v1338 = vunpack.c.l.b16 %v325
    %v1339 = vunpack.c.h.b16 %v325
    %v1340 = vunpack.c.l.b16 %v326
    %v1341 = vunpack.c.h.b16 %v326
    %v1342 = vunpack.c.l.b16 %v327
    %v1343 = vunpack.c.h.b16 %v327
    %v1344 = vunpack.c.l.b16 %v328
    %v1345 = vunpack.c.h.b16 %v328
    %v1346 = vunpack.c.l.b16 %v329
    %v1347 = vunpack.c.h.b16 %v329
    %v1348 = vunpack.c.l.b16 %v330
    %v1349 = vunpack.c.h.b16 %v330
    %v1350 = vunpack.c.l.b16 %v331
    %v1351 = vunpack.c.h.b16 %v331
    %v1352 = vunpack.c.l.b16 %v332
    %v1353 = vunpack.c.h.b16 %v332
    %v1354 = vunpack.c.l.b16 %v333
    %v1355 = vunpack.c.h.b16 %v333
    %v1356 = vunpack.c.l.b16 %v334
    %v1357 = vunpack.c.h.b16 %v334
    %v1358 = vunpack.c.l.b16 %v335
    %v1359 = vunpack.c.h.b16 %v335
    %v1360 = vunpack.c.l.b16 %v336
    %v1361 = vunpack.c.h.b16 %v336
    %v1362 = vunpack.c.l.b16 %v337
    %v1363 = vunpack.c.h.b16 %v337
    %v1364 = vunpack.c.l.b16 %v338
    %v1365 = vunpack.c.h.b16 %v338
    %v1366 = vunpack.c.l.b16 %v339
    %v1367 = vunpack.c.h.b16 %v339
    %v1368 = vunpack.c.l.b16 %v340
    %v1369 = vunpack.c.h.b16 %v340
    %v1370 = vunpack.c.l.b16 %v341
    %v1371 = vunpack.c.h.b16 %v341
    %v1372 = vunpack.c.l.b16 %v342
    %v1373 = vunpack.c.h.b16 %v342
    %v1374 = vunpack.c.l.b16 %v343
    %v1375 = vunpack.c.h.b16 %v343
    %v1376 = vunpack.c.l.b16 %v344
    %v1377 = vunpack.c.h.b16 %v344
    %v1378 = vunpack.c.l.b16 %v345
    %v1379 = vunpack.c.h.b16 %v345
    %v1380 = vunpack.c.l.b16 %v346
    %v1381 = vunpack.c.h.b16 %v346
    %v1382 = vunpack.c.l.b16 %v347
    %v1383 = vunpack.c.h.b16 %v347
    %v1384 = vunpack.c.l.b16 %v348
    %v1385 = vunpack.c.h.b16 %v348
    %v1386 = vunpack.c.l.b16 %v349
    %v1387 = vunpack.c.h.b16 %v349
    %v1388 = vunpack.c.l.b16 %v350
    %v1389 = vunpack.c.h.b16 %v350
    %v1390 = vunpack.c.l.b16 %v351
    %v1391 = vunpack.c.h.b16 %v351
    %v1392 = vunpack.c.l.b16 %v352
    %v1393 = vunpack.c.h.b16 %v352
    %v1394 = vunpack.c.l.b16 %v353
    %v1395 = vunpack.c.h.b16 %v353
    %v1396 = vunpack.c.l.b16 %v354
    %v1397 = vunpack.c.h.b16 %v354
    %v1398 = vunpack.c.l.b16 %v355
    %v1399 = vunpack.c.h.b16 %v355
    %v1400 = vunpack.c.l.b16 %v356
    %v1401 = vunpack.c.h.b16 %v356
    %v1402 = vunpack.c.l.b16 %v357
    %v1403 = vunpack.c.h.b16 %v357
    %v1404 = vunpack.c.l.b16 %v358
    %v1405 = vunpack.c.h.b16 %v358
    %v1406 = vunpack.c.l.b16 %v359
    %v1407 = vunpack.c.h.b16 %v359
    %v1408 = vunpack.c.l.b16 %v360
    %v1409 = vunpack.c.h.b16 %v360
    %v1410 = vunpack.c.l.b16 %v361
    %v1411 = vunpack.c.h.b16 %v361
    %v1412 = vunpack.c.l.b16 %v362
    %v1413 = vunpack.c.h.b16 %v362
    %v1414 = vunpack.c.l.b16 %v363
    %v1415 = vunpack.c.h.b16 %v363
    %v1416 = vunpack.c.l.b16 %v364
    %v1417 = vunpack.c.h.b16 %v364
    %v1418 = vunpack.c.l.b16 %v365
    %v1419 = vunpack.c.h.b16 %v365
    %v1420 = vunpack.c.l.b16 %v366
    %v1421 = vunpack.c.h.b16 %v366
    %v1422 = vunpack.c.l.b16 %v367
    %v1423 = vunpack.c.h.b16 %v367
    %v1424 = vunpack.c.l.b16 %v368
    %v1425 = vunpack.c.h.b16 %v368
    %v1426 = vunpack.c.l.b16 %v369
    %v1427 = vunpack.c.h.b16 %v369
    %v1428 = vunpack.c.l.b16 %v370
    %v1429 = vunpack.c.h.b16 %v370
    %v1430 = vunpack.c.l.b16 %v371
    %v1431 = vunpack.c.h.b16 %v371
    %v1432 = vunpack.c.l.b16 %v372
    %v1433 = vunpack.c.h.b16 %v372
    %v1434 = vunpack.c.l.b16 %v373
    %v1435 = vunpack.c.h.b16 %v373
    %v1436 = vunpack.c.l.b16 %v374
    %v1437 = vunpack.c.h.b16 %v374
    %v1438 = vunpack.c.l.b16 %v375
    %v1439 = vunpack.c.h.b16 %v375
    %v1440 = vunpack.c.l.b16 %v376
    %v1441 = vunpack.c.h.b16 %v376
    %v1442 = vunpack.c.l.b16 %v377
    %v1443 = vunpack.c.h.b16 %v377
    %v1444 = vunpack.c.l.b16 %v378
    %v1445 = vunpack.c.h.b16 %v378
    %v1446 = vunpack.c.l.b16 %v379
    %v1447 = vunpack.c.h.b16 %v379
    %v1448 = vunpack.c.l.b16 %v380
    %v1449 = vunpack.c.h.b16 %v380
    %v1450 = vunpack.c.l.b16 %v381
    %v1451 = vunpack.c.h.b16 %v381
    %v1452 = vunpack.c.l.b16 %v382
    %v1453 = vunpack.c.h.b16 %v382
    %v1454 = vunpack.c.l.b16 %v383
    %v1455 = vunpack.c.h.b16 %v383
    %v1456 = vunpack.c.l.b16 %v384
    %v1457 = vunpack.c.h.b16 %v384
    %v1458 = vunpack.c.l.b16 %v385
    %v1459 = vunpack.c.h.b16 %v385
    %v1460 = vunpack.c.l.b16 %v386
    %v1461 = vunpack.c.h.b16 %v386
    %v1462 = vunpack.c.l.b16 %v387
    %v1463 = vunpack.c.h.b16 %v387
    %v1464 = vunpack.c.l.b16 %v388
    %v1465 = vunpack.c.h.b16 %v388
    %v1466 = vunpack.c.l.b16 %v389
    %v1467 = vunpack.c.h.b16 %v389
    %v1468 = vunpack.c.l.b16 %v390
    %v1469 = vunpack.c.h.b16 %v390
    %v1470 = vunpack.c.l.b16 %v391
    %v1471 = vunpack.c.h.b16 %v391
    %v1472 = vunpack.c.l.b16 %v392
    %v1473 = vunpack.c.h.b16 %v392
    %v1474 = vunpack.c.l.b16 %v393
    %v1475 = vunpack.c.h.b16 %v393
    %v1476 = vunpack.c.l.b16 %v394
    %v1477 = vunpack.c.h.b16 %v394
    %v1478 = vunpack.c.l.b16 %v395
    %v1479 = vunpack.c.h.b16 %v395
    %v1480 = vunpack.c.l.b16 %v396
    %v1481 = vunpack.c.h.b16 %v396
    %v1482 = vunpack.c.l.b16 %v397
    %v1483 = vunpack.c.h.b16 %v397
    %v1484 = vunpack.c.l.b16 %v398
    %v1485 = vunpack.c.h.b16 %v398
    %v1486 = vunpack.c.l.b16 %v399
    %v1487 = vunpack.c.h.b16 %v399
    %v1488 = vunpack.c.l.b16 %v400
    %v1489 = vunpack.c.h.b16 %v400
    %v1490 = vunpack.c.l.b16 %v401
    %v1491 = vunpack.c.h.b16 %v401
    %v1492 = vunpack.c.l.b16 %v402
    %v1493 = vunpack.c.h.b16 %v402
    %v1494 = vunpack.c.l.b16 %v403
    %v1495 = vunpack.c.h.b16 %v403
    %v1496 = vunpack.c.l.b16 %v404
    %v1497 = vunpack.c.h.b16 %v404
    %v1498 = vunpack.c.l.b16 %v405
    %v1499 = vunpack.c.h.b16 %v405
    %v1500 = vunpack.c.l.b16 %v406
    %v1501 = vunpack.c.h.b16 %v406
    %v1502 = vunpack.c.l.b16 %v407
    %v1503 = vunpack.c.h.b16 %v407
    %v1504 = vunpack.c.l.b16 %v408
    %v1505 = vunpack.c.h.b16 %v408
    %v1506 = vunpack.c.l.b16 %v409
    %v1507 = vunpack.c.h.b16 %v409
    %v1508 = vunpack.c.l.b16 %v410
    %v1509 = vunpack.c.h.b16 %v410
    %v1510 = vunpack.c.l.b16 %v411
    %v1511 = vunpack.c.h.b16 %v411
    %v1512 = vunpack.c.l.b16 %v412
    %v1513 = vunpack.c.h.b16 %v412
    %v1514 = vunpack.c.l.b16 %v413
    %v1515 = vunpack.c.h.b16 %v413
    %v1516 = vunpack.c.l.b16 %v414
    %v1517 = vunpack.c.h.b16 %v414
    %v1518 = vunpack.c.l.b16 %v415
    %v1519 = vunpack.c.h.b16 %v415
    %v1520 = vunpack.c.l.b16 %v416
    %v1521 = vunpack.c.h.b16 %v416
    %v1522 = vunpack.c.l.b16 %v417
    %v1523 = vunpack.c.h.b16 %v417
    %v1524 = vunpack.c.l.b16 %v418
    %v1525 = vunpack.c.h.b16 %v418
    %v1526 = vunpack.c.l.b16 %v419
    %v1527 = vunpack.c.h.b16 %v419
    %v1528 = vunpack.c.l.b16 %v420
    %v1529 = vunpack.c.h.b16 %v420
    %v1530 = vunpack.c.l.b16 %v421
    %v1531 = vunpack.c.h.b16 %v421
    %v1532 = vunpack.c.l.b16 %v422
    %v1533 = vunpack.c.h.b16 %v422
    %v1534 = vunpack.c.l.b16 %v423
    %v1535 = vunpack.c.h.b16 %v423
    %v1536 = vunpack.c.l.b16 %v424
    %v1537 = vunpack.c.h.b16 %v424
    %v1538 = vunpack.c.l.b16 %v425
    %v1539 = vunpack.c.h.b16 %v425
    %v1540 = vunpack.c.l.b16 %v426
    %v1541 = vunpack.c.h.b16 %v426
    %v1542 = vunpack.c.l.b16 %v427
    %v1543 = vunpack.c.h.b16 %v427
    %v1544 = vunpack.c.l.b16 %v428
    %v1545 = vunpack.c.h.b16 %v428
    %v1546 = vunpack.c.l.b16 %v429
    %v1547 = vunpack.c.h.b16 %v429
    %v1548 = vunpack.c.l.b16 %v430
    %v1549 = vunpack.c.h.b16 %v430
    %v1550 = vunpack.c.l.b16 %v431
    %v1551 = vunpack.c.h.b16 %v431
    %v1552 = vunpack.c.l.b16 %v432
    %v1553 = vunpack.c.h.b16 %v432
    %v1554 = vunpack.c.l.b16 %v433
    %v1555 = vunpack.c.h.b16 %v433
    %v1556 = vunpack.c.l.b16 %v434
    %v1557 = vunpack.c.h.b16 %v434
    %v1558 = vunpack.c.l.b16 %v435
    %v1559 = vunpack.c.h.b16 %v435
    %v1560 = vunpack.c.l.b16 %v436
    %v1561 = vunpack.c.h.b16 %v436
    %v1562 = vunpack.c.l.b16 %v437
    %v1563 = vunpack.c.h.b16 %v437
    %v1564 = vunpack.c.l.b16 %v438
    %v1565 = vunpack.c.h.b16 %v438
    %v1566 = vunpack.c.l.b16 %v439
    %v1567 = vunpack.c.h.b16 %v439
    %v1568 = vunpack.c.l.b16 %v440
    %v1569 = vunpack.c.h.b16 %v440
    %v1570 = vunpack.c.l.b16 %v441
    %v1571 = vunpack.c.h.b16 %v441
    %v1572 = vunpack.c.l.b16 %v442
    %v1573 = vunpack.c.h.b16 %v442
    %v1574 = vunpack.c.l.b16 %v443
    %v1575 = vunpack.c.h.b16 %v443
    %v1576 = vunpack.c.l.b16 %v444
    %v1577 = vunpack.c.h.b16 %v444
    %v1578 = vunpack.c.l.b16 %v445
    %v1579 = vunpack.c.h.b16 %v445
    %v1580 = vunpack.c.l.b16 %v446
    %v1581 = vunpack.c.h.b16 %v446
    %v1582 = vunpack.c.l.b16 %v447
    %v1583 = vunpack.c.h.b16 %v447
    %v1584 = vunpack.c.l.b16 %v448
    %v1585 = vunpack.c.h.b16 %v448
    %v1586 = vunpack.c.l.b16 %v449
    %v1587 = vunpack.c.h.b16 %v449
    %v1588 = vunpack.c.l.b16 %v450
    %v1589 = vunpack.c.h.b16 %v450
    %v1590 = vunpack.c.l.b16 %v451
    %v1591 = vunpack.c.h.b16 %v451
    %v1592 = vunpack.c.l.b16 %v452
    %v1593 = vunpack.c.h.b16 %v452
    %v1594 = vunpack.c.l.b16 %v453
    %v1595 = vunpack.c.h.b16 %v453
    %v1596 = vunpack.c.l.b16 %v454
    %v1597 = vunpack.c.h.b16 %v454
    %v1598 = vunpack.c.l.b16 %v455
    %v1599 = vunpack.c.h.b16 %v455
    %v1600 = vunpack.c.l.b16 %v456
    %v1601 = vunpack.c.h.b16 %v456
    %v1602 = vunpack.c.l.b16 %v457
    %v1603 = vunpack.c.h.b16 %v457
    %v1604 = vunpack.c.l.b16 %v458
    %v1605 = vunpack.c.h.b16 %v458
    %v1606 = vunpack.c.l.b16 %v459
    %v1607 = vunpack.c.h.b16 %v459
    %v1608 = vunpack.c.l.b16 %v460
    %v1609 = vunpack.c.h.b16 %v460
    %v1610 = vunpack.c.l.b16 %v461
    %v1611 = vunpack.c.h.b16 %v461
    %v1612 = vunpack.c.l.b16 %v462
    %v1613 = vunpack.c.h.b16 %v462
    %v1614 = vunpack.c.l.b16 %v463
    %v1615 = vunpack.c.h.b16 %v463
    %v1616 = vunpack.c.l.b16 %v464
    %v1617 = vunpack.c.h.b16 %v464
    %v1618 = vunpack.c.l.b16 %v465
    %v1619 = vunpack.c.h.b16 %v465
    %v1620 = vunpack.c.l.b16 %v466
    %v1621 = vunpack.c.h.b16 %v466
    %v1622 = vunpack.c.l.b16 %v467
    %v1623 = vunpack.c.h.b16 %v467
    %v1624 = vunpack.c.l.b16 %v468
    %v1625 = vunpack.c.h.b16 %v468
    %v1626 = vunpack.c.l.b16 %v469
    %v1627 = vunpack.c.h.b16 %v469
    %v1628 = vunpack.c.l.b16 %v470
    %v1629 = vunpack.c.h.b16 %v470
    %v1630 = vunpack.c.l.b16 %v471
    %v1631 = vunpack.c.h.b16 %v471
    %v1632 = vunpack.c.l.b16 %v472
    %v1633 = vunpack.c.h.b16 %v472
    %v1634 = vunpack.c.l.b16 %v473
    %v1635 = vunpack.c.h.b16 %v473
    %v1636 = vunpack.c.l.b16 %v474
    %v1637 = vunpack.c.h.b16 %v474
    %v1638 = vunpack.c.l.b16 %v475
    %v1639 = vunpack.c.h.b16 %v475
    %v1640 = vunpack.c.l.b16 %v476
    %v1641 = vunpack.c.h.b16 %v476
    %v1642 = vunpack.c.l.b16 %v477
    %v1643 = vunpack.c.h.b16 %v477
    %v1644 = vunpack.c.l.b16 %v478
    %v1645 = vunpack.c.h.b16 %v478
    %v1646 = vunpack.c.l.b16 %v479
    %v1647 = vunpack.c.h.b16 %v479
    %v1648 = vunpack.c.l.b16 %v480
    %v1649 = vunpack.c.h.b16 %v480
    %v1650 = vunpack.c.l.b16 %v481
    %v1651 = vunpack.c.h.b16 %v481
    %v1652 = vunpack.c.l.b16 %v482
    %v1653 = vunpack.c.h.b16 %v482
    %v1654 = vunpack.c.l.b16 %v483
    %v1655 = vunpack.c.h.b16 %v483
    %v1656 = vunpack.c.l.b16 %v484
    %v1657 = vunpack.c.h.b16 %v484
    %v1658 = vunpack.c.l.b16 %v485
    %v1659 = vunpack.c.h.b16 %v485
    %v1660 = vunpack.c.l.b16 %v486
    %v1661 = vunpack.c.h.b16 %v486
    %v1662 = vunpack.c.l.b16 %v487
    %v1663 = vunpack.c.h.b16 %v487
    %v1664 = vunpack.c.l.b16 %v488
    %v1665 = vunpack.c.h.b16 %v488
    %v1666 = vunpack.c.l.b16 %v489
    %v1667 = vunpack.c.h.b16 %v489
    %v1668 = vunpack.c.l.b16 %v490
    %v1669 = vunpack.c.h.b16 %v490
    %v1670 = vunpack.c.l.b16 %v491
    %v1671 = vunpack.c.h.b16 %v491
    %v1672 = vunpack.c.l.b16 %v492
    %v1673 = vunpack.c.h.b16 %v492
    %v1674 = vunpack.c.l.b16 %v493
    %v1675 = vunpack.c.h.b16 %v493
    %v1676 = vunpack.c.l.b16 %v494
    %v1677 = vunpack.c.h.b16 %v494
    %v1678 = vunpack.c.l.b16 %v495
    %v1679 = vunpack.c.h.b16 %v495
    %v1680 = vunpack.c.l.b16 %v496
    %v1681 = vunpack.c.h.b16 %v496
    %v1682 = vunpack.c.l.b16 %v497
    %v1683 = vunpack.c.h.b16 %v497
    %v1684 = vunpack.c.l.b16 %v498
    %v1685 = vunpack.c.h.b16 %v498
    %v1686 = vunpack.c.l.b16 %v499
    %v1687 = vunpack.c.h.b16 %v499
    %v1688 = vunpack.c.l.b16 %v500
    %v1689 = vunpack.c.h.b16 %v500
    %v1690 = vunpack.c.l.b16 %v501
    %v1691 = vunpack.c.h.b16 %v501
    %v1692 = vunpack.c.l.b16 %v502
    %v1693 = vunpack.c.h.b16 %v502
    %v1694 = vunpack.c.l.b16 %v503
    %v1695 = vunpack.c.h.b16 %v503
    %v1696 = vunpack.c.l.b16 %v504
    %v1697 = vunpack.c.h.b16 %v504
    %v1698 = vunpack.c.l.b16 %v505
    %v1699 = vunpack.c.h.b16 %v505
    %v1700 = vpack.c.b16 %v940, %v932
    %v1701 = vpack.c.b16 %v941, %v933
    %v1702 = vpack.c.b16 %v942, %v934
    %v1703 = vpack.c.b16 %v943, %v935
    %v1704 = vpack.c.b16 %v944, %v936
    %v1705 = vpack.c.b16 %v945, %v937
    %v1706 = vpack.c.b16 %v946, %v938
    %v1707 = vpack.c.b16 %v947, %v939
    %v1708 = vpack.c.b16 %v956, %v948
    %v1709 = vpack.c.b16 %v957, %v949
    %v1710 = vpack.c.b16 %v958, %v950
    %v1711 = vpack.c.b16 %v959, %v951
    %v1712 = vpack.c.b16 %v960, %v952
    %v1713 = vpack.c.b16 %v961, %v953
    %v1714 = vpack.c.b16 %v962, %v954
    %v1715 = vpack.c.b16 %v963, %v955
    %v1716 = vpack.c.b16 %v972, %v964
    %v1717 = vpack.c.b16 %v973, %v965
    %v1718 = vpack.c.b16 %v974, %v966
    %v1719 = vpack.c.b16 %v975, %v967
    %v1720 = vpack.c.b16 %v976, %v968
    %v1721 = vpack.c.b16 %v977, %v969
    %v1722 = vpack.c.b16 %v978, %v970
    %v1723 = vpack.c.b16 %v979, %v971
    %v1724 = vpack.c.b16 %v988, %v980
    %v1725 = vpack.c.b16 %v989, %v981
    %v1726 = vpack.c.b16 %v990, %v982
    %v1727 = vpack.c.b16 %v991, %v983
    %v1728 = vpack.c.b16 %v992, %v984
    %v1729 = vpack.c.b16 %v993, %v985
    %v1730 = vpack.c.b16 %v994, %v986
    %v1731 = vpack.c.b16 %v995, %v987
    %v1732 = vpack.c.b16 %v1004, %v996
    %v1733 = vpack.c.b16 %v1005, %v997
    %v1734 = vpack.c.b16 %v1006, %v998
    %v1735 = vpack.c.b16 %v1007, %v999
    %v1736 = vpack.c.b16 %v1008, %v1000
    %v1737 = vpack.c.b16 %v1009, %v1001
    %v1738 = vpack.c.b16 %v1010, %v1002
    %v1739 = vpack.c.b16 %v1011, %v1003
    %v1740 = vpack.c.b16 %v1020, %v1012
    %v1741 = vpack.c.b16 %v1021, %v1013
    %v1742 = vpack.c.b16 %v1022, %v1014
    %v1743 = vpack.c.b16 %v1023, %v1015
    %v1744 = vpack.c.b16 %v1024, %v1016
    %v1745 = vpack.c.b16 %v1025, %v1017
    %v1746 = vpack.c.b16 %v1026, %v1018
    %v1747 = vpack.c.b16 %v1027, %v1019
    %v1748 = vpack.c.b16 %v1036, %v1028
    %v1749 = vpack.c.b16 %v1037, %v1029
    %v1750 = vpack.c.b16 %v1038, %v1030
    %v1751 = vpack.c.b16 %v1039, %v1031
    %v1752 = vpack.c.b16 %v1040, %v1032
    %v1753 = vpack.c.b16 %v1041, %v1033
    %v1754 = vpack.c.b16 %v1042, %v1034
    %v1755 = vpack.c.b16 %v1043, %v1035
    %v1756 = vpack.c.b16 %v1052, %v1044
    %v1757 = vpack.c.b16 %v1053, %v1045
    %v1758 = vpack.c.b16 %v1054, %v1046
    %v1759 = vpack.c.b16 %v1055, %v1047
    %v1760 = vpack.c.b16 %v1056, %v1048
    %v1761 = vpack.c.b16 %v1057, %v1049
    %v1762 = vpack.c.b16 %v1058, %v1050
    %v1763 = vpack.c.b16 %v1059, %v1051
    %v1764 = vpack.c.b16 %v1068, %v1060
    %v1765 = vpack.c.b16 %v1069, %v1061
    %v1766 = vpack.c.b16 %v1070, %v1062
    %v1767 = vpack.c.b16 %v1071, %v1063
    %v1768 = vpack.c.b16 %v1072, %v1064
    %v1769 = vpack.c.b16 %v1073, %v1065
    %v1770 = vpack.c.b16 %v1074, %v1066
    %v1771 = vpack.c.b16 %v1075, %v1067
    %v1772 = vpack.c.b16 %v1084, %v1076
    %v1773 = vpack.c.b16 %v1085, %v1077
    %v1774 = vpack.c.b16 %v1086, %v1078
    %v1775 = vpack.c.b16 %v1087, %v1079
    %v1776 = vpack.c.b16 %v1088, %v1080
    %v1777 = vpack.c.b16 %v1089, %v1081
    %v1778 = vpack.c.b16 %v1090, %v1082
    %v1779 = vpack.c.b16 %v1091, %v1083
    %v1780 = vpack.c.b16 %v1100, %v1092
    %v1781 = vpack.c.b16 %v1101, %v1093
    %v1782 = vpack.c.b16 %v1102, %v1094
    %v1783 = vpack.c.b16 %v1103, %v1095
    %v1784 = vpack.c.b16 %v1104, %v1096
    %v1785 = vpack.c.b16 %v1105, %v1097
    %v1786 = vpack.c.b16 %v1106, %v1098
    %v1787 = vpack.c.b16 %v1107, %v1099
    %v1788 = vpack.c.b16 %v1116, %v1108
    %v1789 = vpack.c.b16 %v1117, %v1109
    %v1790 = vpack.c.b16 %v1118, %v1110
    %v1791 = vpack.c.b16 %v1119, %v1111
    %v1792 = vpack.c.b16 %v1120, %v1112
    %v1793 = vpack.c.b16 %v1121, %v1113
    %v1794 = vpack.c.b16 %v1122, %v1114
    %v1795 = vpack.c.b16 %v1123, %v1115
    %v1796 = vpack.c.b16 %v1132, %v1124
    %v1797 = vpack.c.b16 %v1133, %v1125
    %v1798 = vpack.c.b16 %v1134, %v1126
    %v1799 = vpack.c.b16 %v1135, %v1127
    %v1800 = vpack.c.b16 %v1136, %v1128
    %v1801 = vpack.c.b16 %v1137, %v1129
    %v1802 = vpack.c.b16 %v1138, %v1130
    %v1803 = vpack.c.b16 %v1139, %v1131
    %v1804 = vpack.c.b16 %v1148, %v1140
    %v1805 = vpack.c.b16 %v1149, %v1141
    %v1806 = vpack.c.b16 %v1150, %v1142
    %v1807 = vpack.c.b16 %v1151, %v1143
    %v1808 = vpack.c.b16 %v1152, %v1144
    %v1809 = vpack.c.b16 %v1153, %v1145
    %v1810 = vpack.c.b16 %v1154, %v1146
    %v1811 = vpack.c.b16 %v1155, %v1147
    %v1812 = vpack.c.b16 %v1164, %v1156
    %v1813 = vpack.c.b16 %v1165, %v1157
    %v1814 = vpack.c.b16 %v1166, %v1158
    %v1815 = vpack.c.b16 %v1167, %v1159
    %v1816 = vpack.c.b16 %v1168, %v1160
    %v1817 = vpack.c.b16 %v1169, %v1161
    %v1818 = vpack.c.b16 %v1170, %v1162
    %v1819 = vpack.c.b16 %v1171, %v1163
    %v1820 = vpack.c.b16 %v1180, %v1172
    %v1821 = vpack.c.b16 %v1181, %v1173
    %v1822 = vpack.c.b16 %v1182, %v1174
    %v1823 = vpack.c.b16 %v1183, %v1175
    %v1824 = vpack.c.b16 %v1184, %v1176
    %v1825 = vpack.c.b16 %v1185, %v1177
    %v1826 = vpack.c.b16 %v1186, %v1178
    %v1827 = vpack.c.b16 %v1187, %v1179
    %v1828 = vpack.c.b16 %v1196, %v1188
    %v1829 = vpack.c.b16 %v1197, %v1189
    %v1830 = vpack.c.b16 %v1198, %v1190
    %v1831 = vpack.c.b16 %v1199, %v1191
    %v1832 = vpack.c.b16 %v1200, %v1192
    %v1833 = vpack.c.b16 %v1201, %v1193
    %v1834 = vpack.c.b16 %v1202, %v1194
    %v1835 = vpack.c.b16 %v1203, %v1195
    %v1836 = vpack.c.b16 %v1212, %v1204
    %v1837 = vpack.c.b16 %v1213, %v1205
    %v1838 = vpack.c.b16 %v1214, %v1206
    %v1839 = vpack.c.b16 %v1215, %v1207
    %v1840 = vpack.c.b16 %v1216, %v1208
    %v1841 = vpack.c.b16 %v1217, %v1209
    %v1842 = vpack.c.b16 %v1218, %v1210
    %v1843 = vpack.c.b16 %v1219, %v1211
    %v1844 = vpack.c.b16 %v1228, %v1220
    %v1845 = vpack.c.b16 %v1229, %v1221
    %v1846 = vpack.c.b16 %v1230, %v1222
    %v1847 = vpack.c.b16 %v1231, %v1223
    %v1848 = vpack.c.b16 %v1232, %v1224
    %v1849 = vpack.c.b16 %v1233, %v1225
    %v1850 = vpack.c.b16 %v1234, %v1226
    %v1851 = vpack.c.b16 %v1235, %v1227
    %v1852 = vpack.c.b16 %v1244, %v1236
    %v1853 = vpack.c.b16 %v1245, %v1237
    %v1854 = vpack.c.b16 %v1246, %v1238
    %v1855 = vpack.c.b16 %v1247, %v1239
    %v1856 = vpack.c.b16 %v1248, %v1240
    %v1857 = vpack.c.b16 %v1249, %v1241
    %v1858 = vpack.c.b16 %v1250, %v1242
    %v1859 = vpack.c.b16 %v1251, %v1243
    %v1860 = vpack.c.b16 %v1260, %v1252
    %v1861 = vpack.c.b16 %v1261, %v1253
    %v1862 = vpack.c.b16 %v1262, %v1254
    %v1863 = vpack.c.b16 %v1263, %v1255
    %v1864 = vpack.c.b16 %v1264, %v1256
    %v1865 = vpack.c.b16 %v1265, %v1257
    %v1866 = vpack.c.b16 %v1266, %v1258
    %v1867 = vpack.c.b16 %v1267, %v1259
    %v1868 = vpack.c.b16 %v1276, %v1268
    %v1869 = vpack.c.b16 %v1277, %v1269
    %v1870 = vpack.c.b16 %v1278, %v1270
    %v1871 = vpack.c.b16 %v1279, %v1271
    %v1872 = vpack.c.b16 %v1280, %v1272
    %v1873 = vpack.c.b16 %v1281, %v1273
    %v1874 = vpack.c.b16 %v1282, %v1274
    %v1875 = vpack.c.b16 %v1283, %v1275
    %v1876 = vpack.c.b16 %v1292, %v1284
    %v1877 = vpack.c.b16 %v1293, %v1285
    %v1878 = vpack.c.b16 %v1294, %v1286
    %v1879 = vpack.c.b16 %v1295, %v1287
    %v1880 = vpack.c.b16 %v1296, %v1288
    %v1881 = vpack.c.b16 %v1297, %v1289
    %v1882 = vpack.c.b16 %v1298, %v1290
    %v1883 = vpack.c.b16 %v1299, %v1291
    %v1884 = vpack.c.b16 %v1308, %v1300
    %v1885 = vpack.c.b16 %v1309, %v1301
    %v1886 = vpack.c.b16 %v1310, %v1302
    %v1887 = vpack.c.b16 %v1311, %v1303
    %v1888 = vpack.c.b16 %v1312, %v1304
    %v1889 = vpack.c.b16 %v1313, %v1305
    %v1890 = vpack.c.b16 %v1314, %v1306
    %v1891 = vpack.c.b16 %v1315, %v1307
    %v1892 = vpack.c.b16 %v1324, %v1316
    %v1893 = vpack.c.b16 %v1325, %v1317
    %v1894 = vpack.c.b16 %v1326, %v1318
    %v1895 = vpack.c.b16 %v1327, %v1319
    %v1896 = vpack.c.b16 %v1328, %v1320
    %v1897 = vpack.c.b16 %v1329, %v1321
    %v1898 = vpack.c.b16 %v1330, %v1322
    %v1899 = vpack.c.b16 %v1331, %v1323
    %v1900 = vpack.c.b16 %v1340, %v1332
    %v1901 = vpack.c.b16 %v1341, %v1333
    %v1902 = vpack.c.b16 %v1342, %v1334
    %v1903 = vpack.c.b16 %v1343, %v1335
    %v1904 = vpack.c.b16 %v1344, %v1336
    %v1905 = vpack.c.b16 %v1345, %v1337
    %v1906 = vpack.c.b16 %v1346, %v1338
    %v1907 = vpack.c.b16 %v1347, %v1339
    %v1908 = vpack.c.b16 %v1356, %v1348
    %v1909 = vpack.c.b16 %v1357, %v1349
    %v1910 = vpack.c.b16 %v1358, %v1350
    %v1911 = vpack.c.b16 %v1359, %v1351
    %v1912 = vpack.c.b16 %v1360, %v1352
    %v1913 = vpack.c.b16 %v1361, %v1353
    %v1914 = vpack.c.b16 %v1362, %v1354
    %v1915 = vpack.c.b16 %v1363, %v1355
    %v1916 = vpack.c.b16 %v1372, %v1364
    %v1917 = vpack.c.b16 %v1373, %v1365
    %v1918 = vpack.c.b16 %v1374, %v1366
    %v1919 = vpack.c.b16 %v1375, %v1367
    %v1920 = vpack.c.b16 %v1376, %v1368
    %v1921 = vpack.c.b16 %v1377, %v1369
    %v1922 = vpack.c.b16 %v1378, %v1370
    %v1923 = vpack.c.b16 %v1379, %v1371
    %v1924 = vpack.c.b16 %v1388, %v1380
    %v1925 = vpack.c.b16 %v1389, %v1381
    %v1926 = vpack.c.b16 %v1390, %v1382
    %v1927 = vpack.c.b16 %v1391, %v1383
    %v1928 = vpack.c.b16 %v1392, %v1384
    %v1929 = vpack.c.b16 %v1393, %v1385
    %v1930 = vpack.c.b16 %v1394, %v1386
    %v1931 = vpack.c.b16 %v1395, %v1387
    %v1932 = vpack.c.b16 %v1404, %v1396
    %v1933 = vpack.c.b16 %v1405, %v1397
    %v1934 = vpack.c.b16 %v1406, %v1398
    %v1935 = vpack.c.b16 %v1407, %v1399
    %v1936 = vpack.c.b16 %v1408, %v1400
    %v1937 = vpack.c.b16 %v1409, %v1401
    %v1938 = vpack.c.b16 %v1410, %v1402
    %v1939 = vpack.c.b16 %v1411, %v1403
    %v1940 = vpack.c.b16 %v1420, %v1412
    %v1941 = vpack.c.b16 %v1421, %v1413
    %v1942 = vpack.c.b16 %v1422, %v1414
    %v1943 = vpack.c.b16 %v1423, %v1415
    %v1944 = vpack.c.b16 %v1424, %v1416
    %v1945 = vpack.c.b16 %v1425, %v1417
    %v1946 = vpack.c.b16 %v1426, %v1418
    %v1947 = vpack.c.b16 %v1427, %v1419
    %v1948 = vpack.c.b16 %v1436, %v1428
    %v1949 = vpack.c.b16 %v1437, %v1429
    %v1950 = vpack.c.b16 %v1438, %v1430
    %v1951 = vpack.c.b16 %v1439, %v1431
    %v1952 = vpack.c.b16 %v1440, %v1432
    %v1953 = vpack.c.b16 %v1441, %v1433
    %v1954 = vpack.c.b16 %v1442, %v1434
    %v1955 = vpack.c.b16 %v1443, %v1435
    %v1956 = vpack.c.b16 %v1452, %v1444
    %v1957 = vpack.c.b16 %v1453, %v1445
    %v1958 = vpack.c.b16 %v1454, %v1446
    %v1959 = vpack.c.b16 %v1455, %v1447
    %v1960 = vpack.c.b16 %v1456, %v1448
    %v1961 = vpack.c.b16 %v1457, %v1449
    %v1962 = vpack.c.b16 %v1458, %v1450
    %v1963 = vpack.c.b16 %v1459, %v1451
    %v1964 = vpack.c.b16 %v1468, %v1460
    %v1965 = vpack.c.b16 %v1469, %v1461
    %v1966 = vpack.c.b16 %v1470, %v1462
    %v1967 = vpack.c.b16 %v1471, %v1463
    %v1968 = vpack.c.b16 %v1472, %v1464
    %v1969 = vpack.c.b16 %v1473, %v1465
    %v1970 = vpack.c.b16 %v1474, %v1466
    %v1971 = vpack.c.b16 %v1475, %v1467
    %v1972 = vpack.c.b16 %v1484, %v1476
    %v1973 = vpack.c.b16 %v1485, %v1477
    %v1974 = vpack.c.b16 %v1486, %v1478
    %v1975 = vpack.c.b16 %v1487, %v1479
    %v1976 = vpack.c.b16 %v1488, %v1480
    %v1977 = vpack.c.b16 %v1489, %v1481
    %v1978 = vpack.c.b16 %v1490, %v1482
    %v1979 = vpack.c.b16 %v1491, %v1483
    %v1980 = vpack.c.b16 %v1500, %v1492
    %v1981 = vpack.c.b16 %v1501, %v1493
    %v1982 = vpack.c.b16 %v1502, %v1494
    %v1983 = vpack.c.b16 %v1503, %v1495
    %v1984 = vpack.c.b16 %v1504, %v1496
    %v1985 = vpack.c.b16 %v1505, %v1497
    %v1986 = vpack.c.b16 %v1506, %v1498
    %v1987 = vpack.c.b16 %v1507, %v1499
    %v1988 = vpack.c.b16 %v1516, %v1508
    %v1989 = vpack.c.b16 %v1517, %v1509
    %v1990 = vpack.c.b16 %v1518, %v1510
    %v1991 = vpack.c.b16 %v1519, %v1511
    %v1992 = vpack.c.b16 %v1520, %v1512
    %v1993 = vpack.c.b16 %v1521, %v1513
    %v1994 = vpack.c.b16 %v1522, %v1514
    %v1995 = vpack.c.b16 %v1523, %v1515
    %v1996 = vpack.c.b16 %v1532, %v1524
    %v1997 = vpack.c.b16 %v1533, %v1525
    %v1998 = vpack.c.b16 %v1534, %v1526
    %v1999 = vpack.c.b16 %v1535, %v1527
    %v2000 = vpack.c.b16 %v1536, %v1528
    %v2001 = vpack.c.b16 %v1537, %v1529
    %v2002 = vpack.c.b16 %v1538, %v1530
    %v2003 = vpack.c.b16 %v1539, %v1531
    %v2004 = vpack.c.b16 %v1548, %v1540
    %v2005 = vpack.c.b16 %v1549, %v1541
    %v2006 = vpack.c.b16 %v1550, %v1542
    %v2007 = vpack.c.b16 %v1551, %v1543
    %v2008 = vpack.c.b16 %v1552, %v1544
    %v2009 = vpack.c.b16 %v1553, %v1545
    %v2010 = vpack.c.b16 %v1554, %v1546
    %v2011 = vpack.c.b16 %v1555, %v1547
    %v2012 = vpack.c.b16 %v1564, %v1556
    %v2013 = vpack.c.b16 %v1565, %v1557
    %v2014 = vpack.c.b16 %v1566, %v1558
    %v2015 = vpack.c.b16 %v1567, %v1559
    %v2016 = vpack.c.b16 %v1568, %v1560
    %v2017 = vpack.c.b16 %v1569, %v1561
    %v2018 = vpack.c.b16 %v1570, %v1562
    %v2019 = vpack.c.b16 %v1571, %v1563
    %v2020 = vpack.c.b16 %v1580, %v1572
    %v2021 = vpack.c.b16 %v1581, %v1573
    %v2022 = vpack.c.b16 %v1582, %v1574
    %v2023 = vpack.c.b16 %v1583, %v1575
    %v2024 = vpack.c.b16 %v1584, %v1576
    %v2025 = vpack.c.b16 %v1585, %v1577
    %v2026 = vpack.c.b16 %v1586, %v1578
    %v2027 = vpack.c.b16 %v1587, %v1579
    %v2028 = vpack.c.b16 %v1596, %v1588
    %v2029 = vpack.c.b16 %v1597, %v1589
    %v2030 = vpack.c.b16 %v1598, %v1590
    %v2031 = vpack.c.b16 %v1599, %v1591
    %v2032 = vpack.c.b16 %v1600, %v1592
    %v2033 = vpack.c.b16 %v1601, %v1593
    %v2034 = vpack.c.b16 %v1602, %v1594
    %v2035 = vpack.c.b16 %v1603, %v1595
    %v2036 = vpack.c.b16 %v1612, %v1604
    %v2037 = vpack.c.b16 %v1613, %v1605
    %v2038 = vpack.c.b16 %v1614, %v1606
    %v2039 = vpack.c.b16 %v1615, %v1607
    %v2040 = vpack.c.b16 %v1616, %v1608
    %v2041 = vpack.c.b16 %v1617, %v1609
    %v2042 = vpack.c.b16 %v1618, %v1610
    %v2043 = vpack.c.b16 %v1619, %v1611
    %v2044 = vpack.c.b16 %v1628, %v1620
    %v2045 = vpack.c.b16 %v1629, %v1621
    %v2046 = vpack.c.b16 %v1630, %v1622
    %v2047 = vpack.c.b16 %v1631, %v1623
    %v2048 = vpack.c.b16 %v1632, %v1624
    %v2049 = vpack.c.b16 %v1633, %v1625
    %v2050 = vpack.c.b16 %v1634, %v1626
    %v2051 = vpack.c.b16 %v1635, %v1627
    %v2052 = vpack.c.b16 %v1644, %v1636
    %v2053 = vpack.c.b16 %v1645, %v1637
    %v2054 = vpack.c.b16 %v1646, %v1638
    %v2055 = vpack.c.b16 %v1647, %v1639
    %v2056 = vpack.c.b16 %v1648, %v1640
    %v2057 = vpack.c.b16 %v1649, %v1641
    %v2058 = vpack.c.b16 %v1650, %v1642
    %v2059 = vpack.c.b16 %v1651, %v1643
    %v2060 = vpack.c.b16 %v1660, %v1652
    %v2061 = vpack.c.b16 %v1661, %v1653
    %v2062 = vpack.c.b16 %v1662, %v1654
    %v2063 = vpack.c.b16 %v1663, %v1655
    %v2064 = vpack.c.b16 %v1664, %v1656
    %v2065 = vpack.c.b16 %v1665, %v1657
    %v2066 = vpack.c.b16 %v1666, %v1658
    %v2067 = vpack.c.b16 %v1667, %v1659
    %v2068 = vpack.c.b16 %v1676, %v1668
    %v2069 = vpack.c.b16 %v1677, %v1669
    %v2070 = vpack.c.b16 %v1678, %v1670
    %v2071 = vpack.c.b16 %v1679, %v1671
    %v2072 = vpack.c.b16 %v1680, %v1672
    %v2073 = vpack.c.b16 %v1681, %v1673
    %v2074 = vpack.c.b16 %v1682, %v1674
    %v2075 = vpack.c.b16 %v1683, %v1675
    %v2076 = vpack.c.b16 %v1692, %v1684
    %v2077 = vpack.c.b16 %v1693, %v1685
    %v2078 = vpack.c.b16 %v1694, %v1686
    %v2079 = vpack.c.b16 %v1695, %v1687
    %v2080 = vpack.c.b16 %v1696, %v1688
    %v2081 = vpack.c.b16 %v1697, %v1689
    %v2082 = vpack.c.b16 %v1698, %v1690
    %v2083 = vpack.c.b16 %v1699, %v1691
    %2468 = vmatprep.subr.bf16.mxu0 %v1757
    %2469 = vmatpush1.bf16.msra.mxu0 %v1756
    %2470 = vmatprep.subr.bf16.mxu0 %v1749
    %2471 = vmatpush1.bf16.msra.mxu0 %v1748
    %2472 = vmatprep.subr.bf16.mxu0 %v1741
    %2473 = vmatpush1.bf16.msra.mxu0 %v1740
    %2474 = vmatprep.subr.bf16.mxu0 %v1733
    %2475 = vmatpush1.bf16.msra.mxu0 %v1732
    %2476 = vmatprep.subr.bf16.mxu0 %v1725
    %2477 = vmatpush1.bf16.msra.mxu0 %v1724
    %2478 = vmatprep.subr.bf16.mxu0 %v1717
    %2479 = vmatpush1.bf16.msra.mxu0 %v1716
    %2480 = vmatprep.subr.bf16.mxu0 %v1709
    %2481 = vmatpush1.bf16.msra.mxu0 %v1708
    %2482 = vmatprep.subr.bf16.mxu0 %v1701
    %2483 = vmatpush1.bf16.msra.mxu0 %v1700
    %2484 = vmatprep.subr.bf16.mxu0 %v1821
    %2485 = vmatpush2.bf16.msra.mxu0 %v1820
    %2486 = vmatprep.subr.bf16.mxu0 %v1813
    %2487 = vmatpush2.bf16.msra.mxu0 %v1812
    %2488 = vmatprep.subr.bf16.mxu0 %v1805
    %2489 = vmatpush2.bf16.msra.mxu0 %v1804
    %2490 = vmatprep.subr.bf16.mxu0 %v1797
    %2491 = vmatpush2.bf16.msra.mxu0 %v1796
    %2492 = vmatprep.subr.bf16.mxu0 %v1789
    %2493 = vmatpush2.bf16.msra.mxu0 %v1788
    %2494 = vmatprep.subr.bf16.mxu0 %v1781
    %2495 = vmatpush2.bf16.msra.mxu0 %v1780
    %2496 = vmatprep.subr.bf16.mxu0 %v1773
    %2497 = vmatpush2.bf16.msra.mxu0 %v1772
    %2498 = vmatprep.subr.bf16.mxu0 %v1765
    %2499 = vmatpush2.bf16.msra.mxu0 %v1764
    %2500 = vmatprep.mubr.bf16.mxu0 %v117
    %2501 = vmatmul.mubr.bf16.gmra.mxu0 %v116
    %v2502 = vpop.f32.mrf.mxu0
    %v2503 = vadd.f32 %v511, %v2502
    %v2504 = vpop.f32.mrf.mxu0
    %v2505 = vadd.f32 %v515, %v2504
    %v2506 = vpop.f32.mrf.mxu0
    %v2507 = vadd.f32 %v511, %v2506
    %v2508 = vpop.f32.mrf.mxu0
    %v2509 = vadd.f32 %v515, %v2508
    %2510 = vdwg.mxu0
    %2511 = vmatprep.subr.bf16.mxu0 %v1885
    %2512 = vmatpush1.bf16.msra.mxu0 %v1884
    %2513 = vmatprep.subr.bf16.mxu0 %v1877
    %2514 = vmatpush1.bf16.msra.mxu0 %v1876
    %2515 = vmatprep.subr.bf16.mxu0 %v1869
    %2516 = vmatpush1.bf16.msra.mxu0 %v1868
    %2517 = vmatprep.subr.bf16.mxu0 %v1861
    %2518 = vmatpush1.bf16.msra.mxu0 %v1860
    %2519 = vmatprep.subr.bf16.mxu0 %v1853
    %2520 = vmatpush1.bf16.msra.mxu0 %v1852
    %2521 = vmatprep.subr.bf16.mxu0 %v1845
    %2522 = vmatpush1.bf16.msra.mxu0 %v1844
    %2523 = vmatprep.subr.bf16.mxu0 %v1837
    %2524 = vmatpush1.bf16.msra.mxu0 %v1836
    %2525 = vmatprep.subr.bf16.mxu0 %v1829
    %2526 = vmatpush1.bf16.msra.mxu0 %v1828
    %2527 = vmatprep.subr.bf16.mxu0 %v1949
    %2528 = vmatpush2.bf16.msra.mxu0 %v1948
    %2529 = vmatprep.subr.bf16.mxu0 %v1941
    %2530 = vmatpush2.bf16.msra.mxu0 %v1940
    %2531 = vmatprep.subr.bf16.mxu0 %v1933
    %2532 = vmatpush2.bf16.msra.mxu0 %v1932
    %2533 = vmatprep.subr.bf16.mxu0 %v1925
    %2534 = vmatpush2.bf16.msra.mxu0 %v1924
    %2535 = vmatprep.subr.bf16.mxu0 %v1917
    %2536 = vmatpush2.bf16.msra.mxu0 %v1916
    %2537 = vmatprep.subr.bf16.mxu0 %v1909
    %2538 = vmatpush2.bf16.msra.mxu0 %v1908
    %2539 = vmatprep.subr.bf16.mxu0 %v1901
    %2540 = vmatpush2.bf16.msra.mxu0 %v1900
    %2541 = vmatprep.subr.bf16.mxu0 %v1893
    %2542 = vmatpush2.bf16.msra.mxu0 %v1892
    %2543 = vmatprep.mubr.bf16.mxu0 %v119
    %2544 = vmatmul.mubr.bf16.gmra.mxu0 %v118
    %v2545 = vpop.f32.mrf.mxu0
    %v2546 = vadd.f32 %v2503, %v2545
    %v2547 = vpop.f32.mrf.mxu0
    %v2548 = vadd.f32 %v2505, %v2547
    %v2549 = vpop.f32.mrf.mxu0
    %v2550 = vadd.f32 %v2507, %v2549
    %v2551 = vpop.f32.mrf.mxu0
    %v2552 = vadd.f32 %v2509, %v2551
    %2553 = vdwg.mxu0
    %2554 = vmatprep.subr.bf16.mxu0 %v2013
    %2555 = vmatpush1.bf16.msra.mxu0 %v2012
    %2556 = vmatprep.subr.bf16.mxu0 %v2005
    %2557 = vmatpush1.bf16.msra.mxu0 %v2004
    %2558 = vmatprep.subr.bf16.mxu0 %v1997
    %2559 = vmatpush1.bf16.msra.mxu0 %v1996
    %2560 = vmatprep.subr.bf16.mxu0 %v1989
    %2561 = vmatpush1.bf16.msra.mxu0 %v1988
    %2562 = vmatprep.subr.bf16.mxu0 %v1981
    %2563 = vmatpush1.bf16.msra.mxu0 %v1980
    %2564 = vmatprep.subr.bf16.mxu0 %v1973
    %2565 = vmatpush1.bf16.msra.mxu0 %v1972
    %2566 = vmatprep.subr.bf16.mxu0 %v1965
    %2567 = vmatpush1.bf16.msra.mxu0 %v1964
    %2568 = vmatprep.subr.bf16.mxu0 %v1957
    %2569 = vmatpush1.bf16.msra.mxu0 %v1956
    %2570 = vmatprep.subr.bf16.mxu0 %v2077
    %2571 = vmatpush2.bf16.msra.mxu0 %v2076
    %2572 = vmatprep.subr.bf16.mxu0 %v2069
    %2573 = vmatpush2.bf16.msra.mxu0 %v2068
    %2574 = vmatprep.subr.bf16.mxu0 %v2061
    %2575 = vmatpush2.bf16.msra.mxu0 %v2060
    %2576 = vmatprep.subr.bf16.mxu0 %v2053
    %2577 = vmatpush2.bf16.msra.mxu0 %v2052
    %2578 = vmatprep.subr.bf16.mxu0 %v2045
    %2579 = vmatpush2.bf16.msra.mxu0 %v2044
    %2580 = vmatprep.subr.bf16.mxu0 %v2037
    %2581 = vmatpush2.bf16.msra.mxu0 %v2036
    %2582 = vmatprep.subr.bf16.mxu0 %v2029
    %2583 = vmatpush2.bf16.msra.mxu0 %v2028
    %2584 = vmatprep.subr.bf16.mxu0 %v2021
    %2585 = vmatpush2.bf16.msra.mxu0 %v2020
    %2586 = vmatprep.mubr.bf16.mxu0 %v121
    %2587 = vmatmul.mubr.bf16.gmra.mxu0 %v120
    %v2588 = vpop.f32.mrf.mxu0
    %v2589 = vadd.f32 %v2546, %v2588
    %v2590 = vpop.f32.mrf.mxu0
    %v2591 = vadd.f32 %v2548, %v2590
    %v2592 = vpop.f32.mrf.mxu0
    %v2593 = vadd.f32 %v2550, %v2592
    %v2594 = vpop.f32.mrf.mxu0
    %v2595 = vadd.f32 %v2552, %v2594
    %2596 = vdwg.mxu0
    %2597 = vmatprep.subr.bf16.mxu0 %v1759
    %2598 = vmatpush1.bf16.msra.mxu0 %v1758
    %2599 = vmatprep.subr.bf16.mxu0 %v1751
    %2600 = vmatpush1.bf16.msra.mxu0 %v1750
    %2601 = vmatprep.subr.bf16.mxu0 %v1743
    %2602 = vmatpush1.bf16.msra.mxu0 %v1742
    %2603 = vmatprep.subr.bf16.mxu0 %v1735
    %2604 = vmatpush1.bf16.msra.mxu0 %v1734
    %2605 = vmatprep.subr.bf16.mxu0 %v1727
    %2606 = vmatpush1.bf16.msra.mxu0 %v1726
    %2607 = vmatprep.subr.bf16.mxu0 %v1719
    %2608 = vmatpush1.bf16.msra.mxu0 %v1718
    %2609 = vmatprep.subr.bf16.mxu0 %v1711
    %2610 = vmatpush1.bf16.msra.mxu0 %v1710
    %2611 = vmatprep.subr.bf16.mxu0 %v1703
    %2612 = vmatpush1.bf16.msra.mxu0 %v1702
    %2613 = vmatprep.subr.bf16.mxu0 %v1823
    %2614 = vmatpush2.bf16.msra.mxu0 %v1822
    %2615 = vmatprep.subr.bf16.mxu0 %v1815
    %2616 = vmatpush2.bf16.msra.mxu0 %v1814
    %2617 = vmatprep.subr.bf16.mxu0 %v1807
    %2618 = vmatpush2.bf16.msra.mxu0 %v1806
    %2619 = vmatprep.subr.bf16.mxu0 %v1799
    %2620 = vmatpush2.bf16.msra.mxu0 %v1798
    %2621 = vmatprep.subr.bf16.mxu0 %v1791
    %2622 = vmatpush2.bf16.msra.mxu0 %v1790
    %2623 = vmatprep.subr.bf16.mxu0 %v1783
    %2624 = vmatpush2.bf16.msra.mxu0 %v1782
    %2625 = vmatprep.subr.bf16.mxu0 %v1775
    %2626 = vmatpush2.bf16.msra.mxu0 %v1774
    %2627 = vmatprep.subr.bf16.mxu0 %v1767
    %2628 = vmatpush2.bf16.msra.mxu0 %v1766
    %2629 = vmatprep.mubr.bf16.mxu0 %v117
    %2630 = vmatmul.mubr.bf16.gmra.mxu0 %v116
    %v2631 = vpop.f32.mrf.mxu0
    %v2632 = vadd.f32 %v519, %v2631
    %v2633 = vpop.f32.mrf.mxu0
    %v2634 = vadd.f32 %v523, %v2633
    %v2635 = vpop.f32.mrf.mxu0
    %v2636 = vadd.f32 %v519, %v2635
    %v2637 = vpop.f32.mrf.mxu0
    %v2638 = vadd.f32 %v523, %v2637
    %2639 = vdwg.mxu0
    %2640 = vmatprep.subr.bf16.mxu0 %v1887
    %2641 = vmatpush1.bf16.msra.mxu0 %v1886
    %2642 = vmatprep.subr.bf16.mxu0 %v1879
    %2643 = vmatpush1.bf16.msra.mxu0 %v1878
    %2644 = vmatprep.subr.bf16.mxu0 %v1871
    %2645 = vmatpush1.bf16.msra.mxu0 %v1870
    %2646 = vmatprep.subr.bf16.mxu0 %v1863
    %2647 = vmatpush1.bf16.msra.mxu0 %v1862
    %2648 = vmatprep.subr.bf16.mxu0 %v1855
    %2649 = vmatpush1.bf16.msra.mxu0 %v1854
    %2650 = vmatprep.subr.bf16.mxu0 %v1847
    %2651 = vmatpush1.bf16.msra.mxu0 %v1846
    %2652 = vmatprep.subr.bf16.mxu0 %v1839
    %2653 = vmatpush1.bf16.msra.mxu0 %v1838
    %2654 = vmatprep.subr.bf16.mxu0 %v1831
    %2655 = vmatpush1.bf16.msra.mxu0 %v1830
    %2656 = vmatprep.subr.bf16.mxu0 %v1951
    %2657 = vmatpush2.bf16.msra.mxu0 %v1950
    %2658 = vmatprep.subr.bf16.mxu0 %v1943
    %2659 = vmatpush2.bf16.msra.mxu0 %v1942
    %2660 = vmatprep.subr.bf16.mxu0 %v1935
    %2661 = vmatpush2.bf16.msra.mxu0 %v1934
    %2662 = vmatprep.subr.bf16.mxu0 %v1927
    %2663 = vmatpush2.bf16.msra.mxu0 %v1926
    %2664 = vmatprep.subr.bf16.mxu0 %v1919
    %2665 = vmatpush2.bf16.msra.mxu0 %v1918
    %2666 = vmatprep.subr.bf16.mxu0 %v1911
    %2667 = vmatpush2.bf16.msra.mxu0 %v1910
    %2668 = vmatprep.subr.bf16.mxu0 %v1903
    %2669 = vmatpush2.bf16.msra.mxu0 %v1902
    %2670 = vmatprep.subr.bf16.mxu0 %v1895
    %2671 = vmatpush2.bf16.msra.mxu0 %v1894
    %2672 = vmatprep.mubr.bf16.mxu0 %v119
    %2673 = vmatmul.mubr.bf16.gmra.mxu0 %v118
    %v2674 = vpop.f32.mrf.mxu0
    %v2675 = vadd.f32 %v2632, %v2674
    %v2676 = vpop.f32.mrf.mxu0
    %v2677 = vadd.f32 %v2634, %v2676
    %v2678 = vpop.f32.mrf.mxu0
    %v2679 = vadd.f32 %v2636, %v2678
    %v2680 = vpop.f32.mrf.mxu0
    %v2681 = vadd.f32 %v2638, %v2680
    %2682 = vdwg.mxu0
    %2683 = vmatprep.subr.bf16.mxu0 %v2015
    %2684 = vmatpush1.bf16.msra.mxu0 %v2014
    %2685 = vmatprep.subr.bf16.mxu0 %v2007
    %2686 = vmatpush1.bf16.msra.mxu0 %v2006
    %2687 = vmatprep.subr.bf16.mxu0 %v1999
    %2688 = vmatpush1.bf16.msra.mxu0 %v1998
    %2689 = vmatprep.subr.bf16.mxu0 %v1991
    %2690 = vmatpush1.bf16.msra.mxu0 %v1990
    %2691 = vmatprep.subr.bf16.mxu0 %v1983
    %2692 = vmatpush1.bf16.msra.mxu0 %v1982
    %2693 = vmatprep.subr.bf16.mxu0 %v1975
    %2694 = vmatpush1.bf16.msra.mxu0 %v1974
    %2695 = vmatprep.subr.bf16.mxu0 %v1967
    %2696 = vmatpush1.bf16.msra.mxu0 %v1966
    %2697 = vmatprep.subr.bf16.mxu0 %v1959
    %2698 = vmatpush1.bf16.msra.mxu0 %v1958
    %2699 = vmatprep.subr.bf16.mxu0 %v2079
    %2700 = vmatpush2.bf16.msra.mxu0 %v2078
    %2701 = vmatprep.subr.bf16.mxu0 %v2071
    %2702 = vmatpush2.bf16.msra.mxu0 %v2070
    %2703 = vmatprep.subr.bf16.mxu0 %v2063
    %2704 = vmatpush2.bf16.msra.mxu0 %v2062
    %2705 = vmatprep.subr.bf16.mxu0 %v2055
    %2706 = vmatpush2.bf16.msra.mxu0 %v2054
    %2707 = vmatprep.subr.bf16.mxu0 %v2047
    %2708 = vmatpush2.bf16.msra.mxu0 %v2046
    %2709 = vmatprep.subr.bf16.mxu0 %v2039
    %2710 = vmatpush2.bf16.msra.mxu0 %v2038
    %2711 = vmatprep.subr.bf16.mxu0 %v2031
    %2712 = vmatpush2.bf16.msra.mxu0 %v2030
    %2713 = vmatprep.subr.bf16.mxu0 %v2023
    %2714 = vmatpush2.bf16.msra.mxu0 %v2022
    %2715 = vmatprep.mubr.bf16.mxu0 %v121
    %2716 = vmatmul.mubr.bf16.gmra.mxu0 %v120
    %v2717 = vpop.f32.mrf.mxu0
    %v2718 = vadd.f32 %v2675, %v2717
    %v2719 = vpop.f32.mrf.mxu0
    %v2720 = vadd.f32 %v2677, %v2719
    %v2721 = vpop.f32.mrf.mxu0
    %v2722 = vadd.f32 %v2679, %v2721
    %v2723 = vpop.f32.mrf.mxu0
    %v2724 = vadd.f32 %v2681, %v2723
    %2725 = vdwg.mxu0
    %2726 = vmatprep.subr.bf16.mxu0 %v1761
    %2727 = vmatpush1.bf16.msra.mxu0 %v1760
    %2728 = vmatprep.subr.bf16.mxu0 %v1753
    %2729 = vmatpush1.bf16.msra.mxu0 %v1752
    %2730 = vmatprep.subr.bf16.mxu0 %v1745
    %2731 = vmatpush1.bf16.msra.mxu0 %v1744
    %2732 = vmatprep.subr.bf16.mxu0 %v1737
    %2733 = vmatpush1.bf16.msra.mxu0 %v1736
    %2734 = vmatprep.subr.bf16.mxu0 %v1729
    %2735 = vmatpush1.bf16.msra.mxu0 %v1728
    %2736 = vmatprep.subr.bf16.mxu0 %v1721
    %2737 = vmatpush1.bf16.msra.mxu0 %v1720
    %2738 = vmatprep.subr.bf16.mxu0 %v1713
    %2739 = vmatpush1.bf16.msra.mxu0 %v1712
    %2740 = vmatprep.subr.bf16.mxu0 %v1705
    %2741 = vmatpush1.bf16.msra.mxu0 %v1704
    %2742 = vmatprep.subr.bf16.mxu0 %v1825
    %2743 = vmatpush2.bf16.msra.mxu0 %v1824
    %2744 = vmatprep.subr.bf16.mxu0 %v1817
    %2745 = vmatpush2.bf16.msra.mxu0 %v1816
    %2746 = vmatprep.subr.bf16.mxu0 %v1809
    %2747 = vmatpush2.bf16.msra.mxu0 %v1808
    %2748 = vmatprep.subr.bf16.mxu0 %v1801
    %2749 = vmatpush2.bf16.msra.mxu0 %v1800
    %2750 = vmatprep.subr.bf16.mxu0 %v1793
    %2751 = vmatpush2.bf16.msra.mxu0 %v1792
    %2752 = vmatprep.subr.bf16.mxu0 %v1785
    %2753 = vmatpush2.bf16.msra.mxu0 %v1784
    %2754 = vmatprep.subr.bf16.mxu0 %v1777
    %2755 = vmatpush2.bf16.msra.mxu0 %v1776
    %2756 = vmatprep.subr.bf16.mxu0 %v1769
    %2757 = vmatpush2.bf16.msra.mxu0 %v1768
    %2758 = vmatprep.mubr.bf16.mxu0 %v117
    %2759 = vmatmul.mubr.bf16.gmra.mxu0 %v116
    %v2760 = vpop.f32.mrf.mxu0
    %v2761 = vadd.f32 %v527, %v2760
    %v2762 = vpop.f32.mrf.mxu0
    %v2763 = vadd.f32 %v531, %v2762
    %v2764 = vpop.f32.mrf.mxu0
    %v2765 = vadd.f32 %v527, %v2764
    %v2766 = vpop.f32.mrf.mxu0
    %v2767 = vadd.f32 %v531, %v2766
    %2768 = vdwg.mxu0
    %2769 = vmatprep.subr.bf16.mxu0 %v1889
    %2770 = vmatpush1.bf16.msra.mxu0 %v1888
    %2771 = vmatprep.subr.bf16.mxu0 %v1881
    %2772 = vmatpush1.bf16.msra.mxu0 %v1880
    %2773 = vmatprep.subr.bf16.mxu0 %v1873
    %2774 = vmatpush1.bf16.msra.mxu0 %v1872
    %2775 = vmatprep.subr.bf16.mxu0 %v1865
    %2776 = vmatpush1.bf16.msra.mxu0 %v1864
    %2777 = vmatprep.subr.bf16.mxu0 %v1857
    %2778 = vmatpush1.bf16.msra.mxu0 %v1856
    %2779 = vmatprep.subr.bf16.mxu0 %v1849
    %2780 = vmatpush1.bf16.msra.mxu0 %v1848
    %2781 = vmatprep.subr.bf16.mxu0 %v1841
    %2782 = vmatpush1.bf16.msra.mxu0 %v1840
    %2783 = vmatprep.subr.bf16.mxu0 %v1833
    %2784 = vmatpush1.bf16.msra.mxu0 %v1832
    %2785 = vmatprep.subr.bf16.mxu0 %v1953
    %2786 = vmatpush2.bf16.msra.mxu0 %v1952
    %2787 = vmatprep.subr.bf16.mxu0 %v1945
    %2788 = vmatpush2.bf16.msra.mxu0 %v1944
    %2789 = vmatprep.subr.bf16.mxu0 %v1937
    %2790 = vmatpush2.bf16.msra.mxu0 %v1936
    %2791 = vmatprep.subr.bf16.mxu0 %v1929
    %2792 = vmatpush2.bf16.msra.mxu0 %v1928
    %2793 = vmatprep.subr.bf16.mxu0 %v1921
    %2794 = vmatpush2.bf16.msra.mxu0 %v1920
    %2795 = vmatprep.subr.bf16.mxu0 %v1913
    %2796 = vmatpush2.bf16.msra.mxu0 %v1912
    %2797 = vmatprep.subr.bf16.mxu0 %v1905
    %2798 = vmatpush2.bf16.msra.mxu0 %v1904
    %2799 = vmatprep.subr.bf16.mxu0 %v1897
    %2800 = vmatpush2.bf16.msra.mxu0 %v1896
    %2801 = vmatprep.mubr.bf16.mxu0 %v119
    %2802 = vmatmul.mubr.bf16.gmra.mxu0 %v118
    %v2803 = vpop.f32.mrf.mxu0
    %v2804 = vadd.f32 %v2761, %v2803
    %v2805 = vpop.f32.mrf.mxu0
    %v2806 = vadd.f32 %v2763, %v2805
    %v2807 = vpop.f32.mrf.mxu0
    %v2808 = vadd.f32 %v2765, %v2807
    %v2809 = vpop.f32.mrf.mxu0
    %v2810 = vadd.f32 %v2767, %v2809
    %2811 = vdwg.mxu0
    %2812 = vmatprep.subr.bf16.mxu0 %v2017
    %2813 = vmatpush1.bf16.msra.mxu0 %v2016
    %2814 = vmatprep.subr.bf16.mxu0 %v2009
    %2815 = vmatpush1.bf16.msra.mxu0 %v2008
    %2816 = vmatprep.subr.bf16.mxu0 %v2001
    %2817 = vmatpush1.bf16.msra.mxu0 %v2000
    %2818 = vmatprep.subr.bf16.mxu0 %v1993
    %2819 = vmatpush1.bf16.msra.mxu0 %v1992
    %2820 = vmatprep.subr.bf16.mxu0 %v1985
    %2821 = vmatpush1.bf16.msra.mxu0 %v1984
    %2822 = vmatprep.subr.bf16.mxu0 %v1977
    %2823 = vmatpush1.bf16.msra.mxu0 %v1976
    %2824 = vmatprep.subr.bf16.mxu0 %v1969
    %2825 = vmatpush1.bf16.msra.mxu0 %v1968
    %2826 = vmatprep.subr.bf16.mxu0 %v1961
    %2827 = vmatpush1.bf16.msra.mxu0 %v1960
    %2828 = vmatprep.subr.bf16.mxu0 %v2081
    %2829 = vmatpush2.bf16.msra.mxu0 %v2080
    %2830 = vmatprep.subr.bf16.mxu0 %v2073
    %2831 = vmatpush2.bf16.msra.mxu0 %v2072
    %2832 = vmatprep.subr.bf16.mxu0 %v2065
    %2833 = vmatpush2.bf16.msra.mxu0 %v2064
    %2834 = vmatprep.subr.bf16.mxu0 %v2057
    %2835 = vmatpush2.bf16.msra.mxu0 %v2056
    %2836 = vmatprep.subr.bf16.mxu0 %v2049
    %2837 = vmatpush2.bf16.msra.mxu0 %v2048
    %2838 = vmatprep.subr.bf16.mxu0 %v2041
    %2839 = vmatpush2.bf16.msra.mxu0 %v2040
    %2840 = vmatprep.subr.bf16.mxu0 %v2033
    %2841 = vmatpush2.bf16.msra.mxu0 %v2032
    %2842 = vmatprep.subr.bf16.mxu0 %v2025
    %2843 = vmatpush2.bf16.msra.mxu0 %v2024
    %2844 = vmatprep.mubr.bf16.mxu0 %v121
    %2845 = vmatmul.mubr.bf16.gmra.mxu0 %v120
    %v2846 = vpop.f32.mrf.mxu0
    %v2847 = vadd.f32 %v2804, %v2846
    %v2848 = vpop.f32.mrf.mxu0
    %v2849 = vadd.f32 %v2806, %v2848
    %v2850 = vpop.f32.mrf.mxu0
    %v2851 = vadd.f32 %v2808, %v2850
    %v2852 = vpop.f32.mrf.mxu0
    %v2853 = vadd.f32 %v2810, %v2852
    %2854 = vdwg.mxu0
    %2855 = vmatprep.subr.bf16.mxu0 %v1763
    %2856 = vmatpush1.bf16.msra.mxu0 %v1762
    %2857 = vmatprep.subr.bf16.mxu0 %v1755
    %2858 = vmatpush1.bf16.msra.mxu0 %v1754
    %2859 = vmatprep.subr.bf16.mxu0 %v1747
    %2860 = vmatpush1.bf16.msra.mxu0 %v1746
    %2861 = vmatprep.subr.bf16.mxu0 %v1739
    %2862 = vmatpush1.bf16.msra.mxu0 %v1738
    %2863 = vmatprep.subr.bf16.mxu0 %v1731
    %2864 = vmatpush1.bf16.msra.mxu0 %v1730
    %2865 = vmatprep.subr.bf16.mxu0 %v1723
    %2866 = vmatpush1.bf16.msra.mxu0 %v1722
    %2867 = vmatprep.subr.bf16.mxu0 %v1715
    %2868 = vmatpush1.bf16.msra.mxu0 %v1714
    %2869 = vmatprep.subr.bf16.mxu0 %v1707
    %2870 = vmatpush1.bf16.msra.mxu0 %v1706
    %2871 = vmatprep.subr.bf16.mxu0 %v1827
    %2872 = vmatpush2.bf16.msra.mxu0 %v1826
    %2873 = vmatprep.subr.bf16.mxu0 %v1819
    %2874 = vmatpush2.bf16.msra.mxu0 %v1818
    %2875 = vmatprep.subr.bf16.mxu0 %v1811
    %2876 = vmatpush2.bf16.msra.mxu0 %v1810
    %2877 = vmatprep.subr.bf16.mxu0 %v1803
    %2878 = vmatpush2.bf16.msra.mxu0 %v1802
    %2879 = vmatprep.subr.bf16.mxu0 %v1795
    %2880 = vmatpush2.bf16.msra.mxu0 %v1794
    %2881 = vmatprep.subr.bf16.mxu0 %v1787
    %2882 = vmatpush2.bf16.msra.mxu0 %v1786
    %2883 = vmatprep.subr.bf16.mxu0 %v1779
    %2884 = vmatpush2.bf16.msra.mxu0 %v1778
    %2885 = vmatprep.subr.bf16.mxu0 %v1771
    %2886 = vmatpush2.bf16.msra.mxu0 %v1770
    %2887 = vmatprep.mubr.bf16.mxu0 %v117
    %2888 = vmatmul.mubr.bf16.gmra.mxu0 %v116
    %v2889 = vpop.f32.mrf.mxu0
    %v2890 = vadd.f32 %v535, %v2889
    %v2891 = vpop.f32.mrf.mxu0
    %v2892 = vadd.f32 %v539, %v2891
    %v2893 = vpop.f32.mrf.mxu0
    %v2894 = vadd.f32 %v535, %v2893
    %v2895 = vpop.f32.mrf.mxu0
    %v2896 = vadd.f32 %v539, %v2895
    %2897 = vdwg.mxu0
    %2898 = vmatprep.subr.bf16.mxu0 %v1891
    %2899 = vmatpush1.bf16.msra.mxu0 %v1890
    %2900 = vmatprep.subr.bf16.mxu0 %v1883
    %2901 = vmatpush1.bf16.msra.mxu0 %v1882
    %2902 = vmatprep.subr.bf16.mxu0 %v1875
    %2903 = vmatpush1.bf16.msra.mxu0 %v1874
    %2904 = vmatprep.subr.bf16.mxu0 %v1867
    %2905 = vmatpush1.bf16.msra.mxu0 %v1866
    %2906 = vmatprep.subr.bf16.mxu0 %v1859
    %2907 = vmatpush1.bf16.msra.mxu0 %v1858
    %2908 = vmatprep.subr.bf16.mxu0 %v1851
    %2909 = vmatpush1.bf16.msra.mxu0 %v1850
    %2910 = vmatprep.subr.bf16.mxu0 %v1843
    %2911 = vmatpush1.bf16.msra.mxu0 %v1842
    %2912 = vmatprep.subr.bf16.mxu0 %v1835
    %2913 = vmatpush1.bf16.msra.mxu0 %v1834
    %2914 = vmatprep.subr.bf16.mxu0 %v1955
    %2915 = vmatpush2.bf16.msra.mxu0 %v1954
    %2916 = vmatprep.subr.bf16.mxu0 %v1947
    %2917 = vmatpush2.bf16.msra.mxu0 %v1946
    %2918 = vmatprep.subr.bf16.mxu0 %v1939
    %2919 = vmatpush2.bf16.msra.mxu0 %v1938
    %2920 = vmatprep.subr.bf16.mxu0 %v1931
    %2921 = vmatpush2.bf16.msra.mxu0 %v1930
    %2922 = vmatprep.subr.bf16.mxu0 %v1923
    %2923 = vmatpush2.bf16.msra.mxu0 %v1922
    %2924 = vmatprep.subr.bf16.mxu0 %v1915
    %2925 = vmatpush2.bf16.msra.mxu0 %v1914
    %2926 = vmatprep.subr.bf16.mxu0 %v1907
    %2927 = vmatpush2.bf16.msra.mxu0 %v1906
    %2928 = vmatprep.subr.bf16.mxu0 %v1899
    %2929 = vmatpush2.bf16.msra.mxu0 %v1898
    %2930 = vmatprep.mubr.bf16.mxu0 %v119
    %2931 = vmatmul.mubr.bf16.gmra.mxu0 %v118
    %v2932 = vpop.f32.mrf.mxu0
    %v2933 = vadd.f32 %v2890, %v2932
    %v2934 = vpop.f32.mrf.mxu0
    %v2935 = vadd.f32 %v2892, %v2934
    %v2936 = vpop.f32.mrf.mxu0
    %v2937 = vadd.f32 %v2894, %v2936
    %v2938 = vpop.f32.mrf.mxu0
    %v2939 = vadd.f32 %v2896, %v2938
    %2940 = vdwg.mxu0
    %2941 = vmatprep.subr.bf16.mxu0 %v2019
    %2942 = vmatpush1.bf16.msra.mxu0 %v2018
    %2943 = vmatprep.subr.bf16.mxu0 %v2011
    %2944 = vmatpush1.bf16.msra.mxu0 %v2010
    %2945 = vmatprep.subr.bf16.mxu0 %v2003
    %2946 = vmatpush1.bf16.msra.mxu0 %v2002
    %2947 = vmatprep.subr.bf16.mxu0 %v1995
    %2948 = vmatpush1.bf16.msra.mxu0 %v1994
    %2949 = vmatprep.subr.bf16.mxu0 %v1987
    %2950 = vmatpush1.bf16.msra.mxu0 %v1986
    %2951 = vmatprep.subr.bf16.mxu0 %v1979
    %2952 = vmatpush1.bf16.msra.mxu0 %v1978
    %2953 = vmatprep.subr.bf16.mxu0 %v1971
    %2954 = vmatpush1.bf16.msra.mxu0 %v1970
    %2955 = vmatprep.subr.bf16.mxu0 %v1963
    %2956 = vmatpush1.bf16.msra.mxu0 %v1962
    %2957 = vmatprep.subr.bf16.mxu0 %v2083
    %2958 = vmatpush2.bf16.msra.mxu0 %v2082
    %2959 = vmatprep.subr.bf16.mxu0 %v2075
    %2960 = vmatpush2.bf16.msra.mxu0 %v2074
    %2961 = vmatprep.subr.bf16.mxu0 %v2067
    %2962 = vmatpush2.bf16.msra.mxu0 %v2066
    %2963 = vmatprep.subr.bf16.mxu0 %v2059
    %2964 = vmatpush2.bf16.msra.mxu0 %v2058
    %2965 = vmatprep.subr.bf16.mxu0 %v2051
    %2966 = vmatpush2.bf16.msra.mxu0 %v2050
    %2967 = vmatprep.subr.bf16.mxu0 %v2043
    %2968 = vmatpush2.bf16.msra.mxu0 %v2042
    %2969 = vmatprep.subr.bf16.mxu0 %v2035
    %2970 = vmatpush2.bf16.msra.mxu0 %v2034
    %2971 = vmatprep.subr.bf16.mxu0 %v2027
    %2972 = vmatpush2.bf16.msra.mxu0 %v2026
    %2973 = vmatprep.mubr.bf16.mxu0 %v121
    %2974 = vmatmul.mubr.bf16.gmra.mxu0 %v120
    %v2975 = vpop.f32.mrf.mxu0
    %v2976 = vadd.f32 %v2933, %v2975
    %v2977 = vpop.f32.mrf.mxu0
    %v2978 = vadd.f32 %v2935, %v2977
    %v2979 = vpop.f32.mrf.mxu0
    %v2980 = vadd.f32 %v2937, %v2979
    %v2981 = vpop.f32.mrf.mxu0
    %v2982 = vadd.f32 %v2939, %v2981
    %2983 = vdwg.mxu0
    %v2984 = vpack.c.bf16 %v2593, %v2589
    %v2985 = vpack.c.bf16 %v2595, %v2591
    %v2986 = vpack.c.bf16 %v2722, %v2718
    %v2987 = vpack.c.bf16 %v2724, %v2720
    %v2988 = vpack.c.bf16 %v2851, %v2847
    %v2989 = vpack.c.bf16 %v2853, %v2849
    %v2990 = vpack.c.bf16 %v2980, %v2976
    %v2991 = vpack.c.bf16 %v2982, %v2978
    %v2992 = vld [vmem:[#allocation9] sm:$0xff]
    %v2993 = vld [vmem:[#allocation9 + $0x8] sm:$0xff]
    %v2994 = vld [vmem:[#allocation9 + $0x10] sm:$0xff]
    %v2995 = vld [vmem:[#allocation9 + $0x18] sm:$0xff]
    %v2996 = vld [vmem:[#allocation9 + $0x20] sm:$0xff]
    %v2997 = vld [vmem:[#allocation9 + $0x28] sm:$0xff]
    %v2998 = vld [vmem:[#allocation9 + $0x30] sm:$0xff]
    %v2999 = vld [vmem:[#allocation9 + $0x38] sm:$0xff]
    %v3000 = vld [vmem:[#allocation9 + $0x40] sm:$0xff]
    %v3001 = vld [vmem:[#allocation9 + $0x48] sm:$0xff]
    %v3002 = vld [vmem:[#allocation9 + $0x50] sm:$0xff]
    %v3003 = vld [vmem:[#allocation9 + $0x58] sm:$0xff]
    %v3004 = vld [vmem:[#allocation9 + $0x60] sm:$0xff]
    %v3005 = vld [vmem:[#allocation9 + $0x68] sm:$0xff]
    %v3006 = vld [vmem:[#allocation9 + $0x70] sm:$0xff]
    %v3007 = vld [vmem:[#allocation9 + $0x78] sm:$0xff]
    %v3008 = vld [vmem:[#allocation9 + $0x80] sm:$0xff]
    %v3009 = vld [vmem:[#allocation9 + $0x88] sm:$0xff]
    %v3010 = vld [vmem:[#allocation9 + $0x90] sm:$0xff]
    %v3011 = vld [vmem:[#allocation9 + $0x98] sm:$0xff]
    %v3012 = vld [vmem:[#allocation9 + $0xa0] sm:$0xff]
    %v3013 = vld [vmem:[#allocation9 + $0xa8] sm:$0xff]
    %v3014 = vld [vmem:[#allocation9 + $0xb0] sm:$0xff]
    %v3015 = vld [vmem:[#allocation9 + $0xb8] sm:$0xff]
    %v3016 = vld [vmem:[#allocation9 + $0xc0] sm:$0xff]
    %v3017 = vld [vmem:[#allocation9 + $0xc8] sm:$0xff]
    %v3018 = vld [vmem:[#allocation9 + $0xd0] sm:$0xff]
    %v3019 = vld [vmem:[#allocation9 + $0xd8] sm:$0xff]
    %v3020 = vld [vmem:[#allocation9 + $0xe0] sm:$0xff]
    %v3021 = vld [vmem:[#allocation9 + $0xe8] sm:$0xff]
    %v3022 = vld [vmem:[#allocation9 + $0xf0] sm:$0xff]
    %v3023 = vld [vmem:[#allocation9 + $0xf8] sm:$0xff]
    %v3024 = vld [vmem:[#allocation9 + $0x100] sm:$0xff]
    %v3025 = vld [vmem:[#allocation9 + $0x108] sm:$0xff]
    %v3026 = vld [vmem:[#allocation9 + $0x110] sm:$0xff]
    %v3027 = vld [vmem:[#allocation9 + $0x118] sm:$0xff]
    %v3028 = vld [vmem:[#allocation9 + $0x120] sm:$0xff]
    %v3029 = vld [vmem:[#allocation9 + $0x128] sm:$0xff]
    %v3030 = vld [vmem:[#allocation9 + $0x130] sm:$0xff]
    %v3031 = vld [vmem:[#allocation9 + $0x138] sm:$0xff]
    %v3032 = vld [vmem:[#allocation9 + $0x140] sm:$0xff]
    %v3033 = vld [vmem:[#allocation9 + $0x148] sm:$0xff]
    %v3034 = vld [vmem:[#allocation9 + $0x150] sm:$0xff]
    %v3035 = vld [vmem:[#allocation9 + $0x158] sm:$0xff]
    %v3036 = vld [vmem:[#allocation9 + $0x160] sm:$0xff]
    %v3037 = vld [vmem:[#allocation9 + $0x168] sm:$0xff]
    %v3038 = vld [vmem:[#allocation9 + $0x170] sm:$0xff]
    %v3039 = vld [vmem:[#allocation9 + $0x178] sm:$0xff]
    %v3040 = vld [vmem:[#allocation9 + $0x180] sm:$0xff]
    %v3041 = vld [vmem:[#allocation9 + $0x188] sm:$0xff]
    %v3042 = vld [vmem:[#allocation9 + $0x190] sm:$0xff]
    %v3043 = vld [vmem:[#allocation9 + $0x198] sm:$0xff]
    %v3044 = vld [vmem:[#allocation9 + $0x1a0] sm:$0xff]
    %v3045 = vld [vmem:[#allocation9 + $0x1a8] sm:$0xff]
    %v3046 = vld [vmem:[#allocation9 + $0x1b0] sm:$0xff]
    %v3047 = vld [vmem:[#allocation9 + $0x1b8] sm:$0xff]
    %v3048 = vld [vmem:[#allocation9 + $0x1c0] sm:$0xff]
    %v3049 = vld [vmem:[#allocation9 + $0x1c8] sm:$0xff]
    %v3050 = vld [vmem:[#allocation9 + $0x1d0] sm:$0xff]
    %v3051 = vld [vmem:[#allocation9 + $0x1d8] sm:$0xff]
    %v3052 = vld [vmem:[#allocation9 + $0x1e0] sm:$0xff]
    %v3053 = vld [vmem:[#allocation9 + $0x1e8] sm:$0xff]
    %v3054 = vld [vmem:[#allocation9 + $0x1f0] sm:$0xff]
    %v3055 = vld [vmem:[#allocation9 + $0x1f8] sm:$0xff]
    %v3056 = vld [vmem:[#allocation9 + $0x200] sm:$0xff]
    %v3057 = vld [vmem:[#allocation9 + $0x208] sm:$0xff]
    %v3058 = vld [vmem:[#allocation9 + $0x210] sm:$0xff]
    %v3059 = vld [vmem:[#allocation9 + $0x218] sm:$0xff]
    %v3060 = vld [vmem:[#allocation9 + $0x220] sm:$0xff]
    %v3061 = vld [vmem:[#allocation9 + $0x228] sm:$0xff]
    %v3062 = vld [vmem:[#allocation9 + $0x230] sm:$0xff]
    %v3063 = vld [vmem:[#allocation9 + $0x238] sm:$0xff]
    %v3064 = vld [vmem:[#allocation9 + $0x240] sm:$0xff]
    %v3065 = vld [vmem:[#allocation9 + $0x248] sm:$0xff]
    %v3066 = vld [vmem:[#allocation9 + $0x250] sm:$0xff]
    %v3067 = vld [vmem:[#allocation9 + $0x258] sm:$0xff]
    %v3068 = vld [vmem:[#allocation9 + $0x260] sm:$0xff]
    %v3069 = vld [vmem:[#allocation9 + $0x268] sm:$0xff]
    %v3070 = vld [vmem:[#allocation9 + $0x270] sm:$0xff]
    %v3071 = vld [vmem:[#allocation9 + $0x278] sm:$0xff]
    %v3072 = vld [vmem:[#allocation9 + $0x280] sm:$0xff]
    %v3073 = vld [vmem:[#allocation9 + $0x288] sm:$0xff]
    %v3074 = vld [vmem:[#allocation9 + $0x290] sm:$0xff]
    %v3075 = vld [vmem:[#allocation9 + $0x298] sm:$0xff]
    %v3076 = vld [vmem:[#allocation9 + $0x2a0] sm:$0xff]
    %v3077 = vld [vmem:[#allocation9 + $0x2a8] sm:$0xff]
    %v3078 = vld [vmem:[#allocation9 + $0x2b0] sm:$0xff]
    %v3079 = vld [vmem:[#allocation9 + $0x2b8] sm:$0xff]
    %v3080 = vld [vmem:[#allocation9 + $0x2c0] sm:$0xff]
    %v3081 = vld [vmem:[#allocation9 + $0x2c8] sm:$0xff]
    %v3082 = vld [vmem:[#allocation9 + $0x2d0] sm:$0xff]
    %v3083 = vld [vmem:[#allocation9 + $0x2d8] sm:$0xff]
    %v3084 = vld [vmem:[#allocation9 + $0x2e0] sm:$0xff]
    %v3085 = vld [vmem:[#allocation9 + $0x2e8] sm:$0xff]
    %v3086 = vld [vmem:[#allocation9 + $0x2f0] sm:$0xff]
    %v3087 = vld [vmem:[#allocation9 + $0x2f8] sm:$0xff]
    %v3088 = vld [vmem:[#allocation9 + $0x300] sm:$0xff]
    %v3089 = vld [vmem:[#allocation9 + $0x308] sm:$0xff]
    %v3090 = vld [vmem:[#allocation9 + $0x310] sm:$0xff]
    %v3091 = vld [vmem:[#allocation9 + $0x318] sm:$0xff]
    %v3092 = vld [vmem:[#allocation9 + $0x320] sm:$0xff]
    %v3093 = vld [vmem:[#allocation9 + $0x328] sm:$0xff]
    %v3094 = vld [vmem:[#allocation9 + $0x330] sm:$0xff]
    %v3095 = vld [vmem:[#allocation9 + $0x338] sm:$0xff]
    %v3096 = vld [vmem:[#allocation9 + $0x340] sm:$0xff]
    %v3097 = vld [vmem:[#allocation9 + $0x348] sm:$0xff]
    %v3098 = vld [vmem:[#allocation9 + $0x350] sm:$0xff]
    %v3099 = vld [vmem:[#allocation9 + $0x358] sm:$0xff]
    %v3100 = vld [vmem:[#allocation9 + $0x360] sm:$0xff]
    %v3101 = vld [vmem:[#allocation9 + $0x368] sm:$0xff]
    %v3102 = vld [vmem:[#allocation9 + $0x370] sm:$0xff]
    %v3103 = vld [vmem:[#allocation9 + $0x378] sm:$0xff]
    %v3104 = vld [vmem:[#allocation9 + $0x380] sm:$0xff]
    %v3105 = vld [vmem:[#allocation9 + $0x388] sm:$0xff]
    %v3106 = vld [vmem:[#allocation9 + $0x390] sm:$0xff]
    %v3107 = vld [vmem:[#allocation9 + $0x398] sm:$0xff]
    %v3108 = vld [vmem:[#allocation9 + $0x3a0] sm:$0xff]
    %v3109 = vld [vmem:[#allocation9 + $0x3a8] sm:$0xff]
    %v3110 = vld [vmem:[#allocation9 + $0x3b0] sm:$0xff]
    %v3111 = vld [vmem:[#allocation9 + $0x3b8] sm:$0xff]
    %v3112 = vld [vmem:[#allocation9 + $0x3c0] sm:$0xff]
    %v3113 = vld [vmem:[#allocation9 + $0x3c8] sm:$0xff]
    %v3114 = vld [vmem:[#allocation9 + $0x3d0] sm:$0xff]
    %v3115 = vld [vmem:[#allocation9 + $0x3d8] sm:$0xff]
    %v3116 = vld [vmem:[#allocation9 + $0x3e0] sm:$0xff]
    %v3117 = vld [vmem:[#allocation9 + $0x3e8] sm:$0xff]
    %v3118 = vld [vmem:[#allocation9 + $0x3f0] sm:$0xff]
    %v3119 = vld [vmem:[#allocation9 + $0x3f8] sm:$0xff]
    %v3120 = vld [vmem:[#allocation11] sm:$0x3]
    %v3122 = vlaneseq
    %v3123 = vshrl.u32 %v3122, 7
    %v3124 = vsub.s32 0, %v3123
    %v3125 = vrot.slane %v3120, %v3124
    %v3126 = vlaneseq
    %v3127 = vshrl.u32 %v3126, 7
    %v3128 = vsub.s32 1, %v3127
    %v3129 = vrot.slane %v3120, %v3128
    %v3260 = vunpack.c.l.b16 %v2992
    %v3261 = vunpack.c.h.b16 %v2992
    %v3262 = vunpack.c.l.b16 %v2993
    %v3263 = vunpack.c.h.b16 %v2993
    %v3264 = vunpack.c.l.b16 %v2994
    %v3265 = vunpack.c.h.b16 %v2994
    %v3266 = vunpack.c.l.b16 %v2995
    %v3267 = vunpack.c.h.b16 %v2995
    %v3268 = vunpack.c.l.b16 %v2996
    %v3269 = vunpack.c.h.b16 %v2996
    %v3270 = vunpack.c.l.b16 %v2997
    %v3271 = vunpack.c.h.b16 %v2997
    %v3272 = vunpack.c.l.b16 %v2998
    %v3273 = vunpack.c.h.b16 %v2998
    %v3274 = vunpack.c.l.b16 %v2999
    %v3275 = vunpack.c.h.b16 %v2999
    %v3276 = vunpack.c.l.b16 %v3000
    %v3277 = vunpack.c.h.b16 %v3000
    %v3278 = vunpack.c.l.b16 %v3001
    %v3279 = vunpack.c.h.b16 %v3001
    %v3280 = vunpack.c.l.b16 %v3002
    %v3281 = vunpack.c.h.b16 %v3002
    %v3282 = vunpack.c.l.b16 %v3003
    %v3283 = vunpack.c.h.b16 %v3003
    %v3284 = vunpack.c.l.b16 %v3004
    %v3285 = vunpack.c.h.b16 %v3004
    %v3286 = vunpack.c.l.b16 %v3005
    %v3287 = vunpack.c.h.b16 %v3005
    %v3288 = vunpack.c.l.b16 %v3006
    %v3289 = vunpack.c.h.b16 %v3006
    %v3290 = vunpack.c.l.b16 %v3007
    %v3291 = vunpack.c.h.b16 %v3007
    %v3292 = vunpack.c.l.b16 %v3008
    %v3293 = vunpack.c.h.b16 %v3008
    %v3294 = vunpack.c.l.b16 %v3009
    %v3295 = vunpack.c.h.b16 %v3009
    %v3296 = vunpack.c.l.b16 %v3010
    %v3297 = vunpack.c.h.b16 %v3010
    %v3298 = vunpack.c.l.b16 %v3011
    %v3299 = vunpack.c.h.b16 %v3011
    %v3300 = vunpack.c.l.b16 %v3012
    %v3301 = vunpack.c.h.b16 %v3012
    %v3302 = vunpack.c.l.b16 %v3013
    %v3303 = vunpack.c.h.b16 %v3013
    %v3304 = vunpack.c.l.b16 %v3014
    %v3305 = vunpack.c.h.b16 %v3014
    %v3306 = vunpack.c.l.b16 %v3015
    %v3307 = vunpack.c.h.b16 %v3015
    %v3308 = vunpack.c.l.b16 %v3016
    %v3309 = vunpack.c.h.b16 %v3016
    %v3310 = vunpack.c.l.b16 %v3017
    %v3311 = vunpack.c.h.b16 %v3017
    %v3312 = vunpack.c.l.b16 %v3018
    %v3313 = vunpack.c.h.b16 %v3018
    %v3314 = vunpack.c.l.b16 %v3019
    %v3315 = vunpack.c.h.b16 %v3019
    %v3316 = vunpack.c.l.b16 %v3020
    %v3317 = vunpack.c.h.b16 %v3020
    %v3318 = vunpack.c.l.b16 %v3021
    %v3319 = vunpack.c.h.b16 %v3021
    %v3320 = vunpack.c.l.b16 %v3022
    %v3321 = vunpack.c.h.b16 %v3022
    %v3322 = vunpack.c.l.b16 %v3023
    %v3323 = vunpack.c.h.b16 %v3023
    %v3324 = vunpack.c.l.b16 %v3024
    %v3325 = vunpack.c.h.b16 %v3024
    %v3326 = vunpack.c.l.b16 %v3025
    %v3327 = vunpack.c.h.b16 %v3025
    %v3328 = vunpack.c.l.b16 %v3026
    %v3329 = vunpack.c.h.b16 %v3026
    %v3330 = vunpack.c.l.b16 %v3027
    %v3331 = vunpack.c.h.b16 %v3027
    %v3332 = vunpack.c.l.b16 %v3028
    %v3333 = vunpack.c.h.b16 %v3028
    %v3334 = vunpack.c.l.b16 %v3029
    %v3335 = vunpack.c.h.b16 %v3029
    %v3336 = vunpack.c.l.b16 %v3030
    %v3337 = vunpack.c.h.b16 %v3030
    %v3338 = vunpack.c.l.b16 %v3031
    %v3339 = vunpack.c.h.b16 %v3031
    %v3340 = vunpack.c.l.b16 %v3032
    %v3341 = vunpack.c.h.b16 %v3032
    %v3342 = vunpack.c.l.b16 %v3033
    %v3343 = vunpack.c.h.b16 %v3033
    %v3344 = vunpack.c.l.b16 %v3034
    %v3345 = vunpack.c.h.b16 %v3034
    %v3346 = vunpack.c.l.b16 %v3035
    %v3347 = vunpack.c.h.b16 %v3035
    %v3348 = vunpack.c.l.b16 %v3036
    %v3349 = vunpack.c.h.b16 %v3036
    %v3350 = vunpack.c.l.b16 %v3037
    %v3351 = vunpack.c.h.b16 %v3037
    %v3352 = vunpack.c.l.b16 %v3038
    %v3353 = vunpack.c.h.b16 %v3038
    %v3354 = vunpack.c.l.b16 %v3039
    %v3355 = vunpack.c.h.b16 %v3039
    %v3356 = vunpack.c.l.b16 %v3040
    %v3357 = vunpack.c.h.b16 %v3040
    %v3358 = vunpack.c.l.b16 %v3041
    %v3359 = vunpack.c.h.b16 %v3041
    %v3360 = vunpack.c.l.b16 %v3042
    %v3361 = vunpack.c.h.b16 %v3042
    %v3362 = vunpack.c.l.b16 %v3043
    %v3363 = vunpack.c.h.b16 %v3043
    %v3364 = vunpack.c.l.b16 %v3044
    %v3365 = vunpack.c.h.b16 %v3044
    %v3366 = vunpack.c.l.b16 %v3045
    %v3367 = vunpack.c.h.b16 %v3045
    %v3368 = vunpack.c.l.b16 %v3046
    %v3369 = vunpack.c.h.b16 %v3046
    %v3370 = vunpack.c.l.b16 %v3047
    %v3371 = vunpack.c.h.b16 %v3047
    %v3372 = vunpack.c.l.b16 %v3048
    %v3373 = vunpack.c.h.b16 %v3048
    %v3374 = vunpack.c.l.b16 %v3049
    %v3375 = vunpack.c.h.b16 %v3049
    %v3376 = vunpack.c.l.b16 %v3050
    %v3377 = vunpack.c.h.b16 %v3050
    %v3378 = vunpack.c.l.b16 %v3051
    %v3379 = vunpack.c.h.b16 %v3051
    %v3380 = vunpack.c.l.b16 %v3052
    %v3381 = vunpack.c.h.b16 %v3052
    %v3382 = vunpack.c.l.b16 %v3053
    %v3383 = vunpack.c.h.b16 %v3053
    %v3384 = vunpack.c.l.b16 %v3054
    %v3385 = vunpack.c.h.b16 %v3054
    %v3386 = vunpack.c.l.b16 %v3055
    %v3387 = vunpack.c.h.b16 %v3055
    %v3388 = vunpack.c.l.b16 %v3056
    %v3389 = vunpack.c.h.b16 %v3056
    %v3390 = vunpack.c.l.b16 %v3057
    %v3391 = vunpack.c.h.b16 %v3057
    %v3392 = vunpack.c.l.b16 %v3058
    %v3393 = vunpack.c.h.b16 %v3058
    %v3394 = vunpack.c.l.b16 %v3059
    %v3395 = vunpack.c.h.b16 %v3059
    %v3396 = vunpack.c.l.b16 %v3060
    %v3397 = vunpack.c.h.b16 %v3060
    %v3398 = vunpack.c.l.b16 %v3061
    %v3399 = vunpack.c.h.b16 %v3061
    %v3400 = vunpack.c.l.b16 %v3062
    %v3401 = vunpack.c.h.b16 %v3062
    %v3402 = vunpack.c.l.b16 %v3063
    %v3403 = vunpack.c.h.b16 %v3063
    %v3404 = vunpack.c.l.b16 %v3064
    %v3405 = vunpack.c.h.b16 %v3064
    %v3406 = vunpack.c.l.b16 %v3065
    %v3407 = vunpack.c.h.b16 %v3065
    %v3408 = vunpack.c.l.b16 %v3066
    %v3409 = vunpack.c.h.b16 %v3066
    %v3410 = vunpack.c.l.b16 %v3067
    %v3411 = vunpack.c.h.b16 %v3067
    %v3412 = vunpack.c.l.b16 %v3068
    %v3413 = vunpack.c.h.b16 %v3068
    %v3414 = vunpack.c.l.b16 %v3069
    %v3415 = vunpack.c.h.b16 %v3069
    %v3416 = vunpack.c.l.b16 %v3070
    %v3417 = vunpack.c.h.b16 %v3070
    %v3418 = vunpack.c.l.b16 %v3071
    %v3419 = vunpack.c.h.b16 %v3071
    %v3420 = vunpack.c.l.b16 %v3072
    %v3421 = vunpack.c.h.b16 %v3072
    %v3422 = vunpack.c.l.b16 %v3073
    %v3423 = vunpack.c.h.b16 %v3073
    %v3424 = vunpack.c.l.b16 %v3074
    %v3425 = vunpack.c.h.b16 %v3074
    %v3426 = vunpack.c.l.b16 %v3075
    %v3427 = vunpack.c.h.b16 %v3075
    %v3428 = vunpack.c.l.b16 %v3076
    %v3429 = vunpack.c.h.b16 %v3076
    %v3430 = vunpack.c.l.b16 %v3077
    %v3431 = vunpack.c.h.b16 %v3077
    %v3432 = vunpack.c.l.b16 %v3078
    %v3433 = vunpack.c.h.b16 %v3078
    %v3434 = vunpack.c.l.b16 %v3079
    %v3435 = vunpack.c.h.b16 %v3079
    %v3436 = vunpack.c.l.b16 %v3080
    %v3437 = vunpack.c.h.b16 %v3080
    %v3438 = vunpack.c.l.b16 %v3081
    %v3439 = vunpack.c.h.b16 %v3081
    %v3440 = vunpack.c.l.b16 %v3082
    %v3441 = vunpack.c.h.b16 %v3082
    %v3442 = vunpack.c.l.b16 %v3083
    %v3443 = vunpack.c.h.b16 %v3083
    %v3444 = vunpack.c.l.b16 %v3084
    %v3445 = vunpack.c.h.b16 %v3084
    %v3446 = vunpack.c.l.b16 %v3085
    %v3447 = vunpack.c.h.b16 %v3085
    %v3448 = vunpack.c.l.b16 %v3086
    %v3449 = vunpack.c.h.b16 %v3086
    %v3450 = vunpack.c.l.b16 %v3087
    %v3451 = vunpack.c.h.b16 %v3087
    %v3452 = vunpack.c.l.b16 %v3088
    %v3453 = vunpack.c.h.b16 %v3088
    %v3454 = vunpack.c.l.b16 %v3089
    %v3455 = vunpack.c.h.b16 %v3089
    %v3456 = vunpack.c.l.b16 %v3090
    %v3457 = vunpack.c.h.b16 %v3090
    %v3458 = vunpack.c.l.b16 %v3091
    %v3459 = vunpack.c.h.b16 %v3091
    %v3460 = vunpack.c.l.b16 %v3092
    %v3461 = vunpack.c.h.b16 %v3092
    %v3462 = vunpack.c.l.b16 %v3093
    %v3463 = vunpack.c.h.b16 %v3093
    %v3464 = vunpack.c.l.b16 %v3094
    %v3465 = vunpack.c.h.b16 %v3094
    %v3466 = vunpack.c.l.b16 %v3095
    %v3467 = vunpack.c.h.b16 %v3095
    %v3468 = vunpack.c.l.b16 %v3096
    %v3469 = vunpack.c.h.b16 %v3096
    %v3470 = vunpack.c.l.b16 %v3097
    %v3471 = vunpack.c.h.b16 %v3097
    %v3472 = vunpack.c.l.b16 %v3098
    %v3473 = vunpack.c.h.b16 %v3098
    %v3474 = vunpack.c.l.b16 %v3099
    %v3475 = vunpack.c.h.b16 %v3099
    %v3476 = vunpack.c.l.b16 %v3100
    %v3477 = vunpack.c.h.b16 %v3100
    %v3478 = vunpack.c.l.b16 %v3101
    %v3479 = vunpack.c.h.b16 %v3101
    %v3480 = vunpack.c.l.b16 %v3102
    %v3481 = vunpack.c.h.b16 %v3102
    %v3482 = vunpack.c.l.b16 %v3103
    %v3483 = vunpack.c.h.b16 %v3103
    %v3484 = vunpack.c.l.b16 %v3104
    %v3485 = vunpack.c.h.b16 %v3104
    %v3486 = vunpack.c.l.b16 %v3105
    %v3487 = vunpack.c.h.b16 %v3105
    %v3488 = vunpack.c.l.b16 %v3106
    %v3489 = vunpack.c.h.b16 %v3106
    %v3490 = vunpack.c.l.b16 %v3107
    %v3491 = vunpack.c.h.b16 %v3107
    %v3492 = vunpack.c.l.b16 %v3108
    %v3493 = vunpack.c.h.b16 %v3108
    %v3494 = vunpack.c.l.b16 %v3109
    %v3495 = vunpack.c.h.b16 %v3109
    %v3496 = vunpack.c.l.b16 %v3110
    %v3497 = vunpack.c.h.b16 %v3110
    %v3498 = vunpack.c.l.b16 %v3111
    %v3499 = vunpack.c.h.b16 %v3111
    %v3500 = vunpack.c.l.b16 %v3112
    %v3501 = vunpack.c.h.b16 %v3112
    %v3502 = vunpack.c.l.b16 %v3113
    %v3503 = vunpack.c.h.b16 %v3113
    %v3504 = vunpack.c.l.b16 %v3114
    %v3505 = vunpack.c.h.b16 %v3114
    %v3506 = vunpack.c.l.b16 %v3115
    %v3507 = vunpack.c.h.b16 %v3115
    %v3508 = vunpack.c.l.b16 %v3116
    %v3509 = vunpack.c.h.b16 %v3116
    %v3510 = vunpack.c.l.b16 %v3117
    %v3511 = vunpack.c.h.b16 %v3117
    %v3512 = vunpack.c.l.b16 %v3118
    %v3513 = vunpack.c.h.b16 %v3118
    %v3514 = vunpack.c.l.b16 %v3119
    %v3515 = vunpack.c.h.b16 %v3119
    %v3516 = vpack.c.b16 %v3262, %v3260
    %v3517 = vpack.c.b16 %v3263, %v3261
    %v3518 = vpack.c.b16 %v3266, %v3264
    %v3519 = vpack.c.b16 %v3267, %v3265
    %v3520 = vpack.c.b16 %v3270, %v3268
    %v3521 = vpack.c.b16 %v3271, %v3269
    %v3522 = vpack.c.b16 %v3274, %v3272
    %v3523 = vpack.c.b16 %v3275, %v3273
    %v3524 = vpack.c.b16 %v3278, %v3276
    %v3525 = vpack.c.b16 %v3279, %v3277
    %v3526 = vpack.c.b16 %v3282, %v3280
    %v3527 = vpack.c.b16 %v3283, %v3281
    %v3528 = vpack.c.b16 %v3286, %v3284
    %v3529 = vpack.c.b16 %v3287, %v3285
    %v3530 = vpack.c.b16 %v3290, %v3288
    %v3531 = vpack.c.b16 %v3291, %v3289
    %v3532 = vpack.c.b16 %v3294, %v3292
    %v3533 = vpack.c.b16 %v3295, %v3293
    %v3534 = vpack.c.b16 %v3298, %v3296
    %v3535 = vpack.c.b16 %v3299, %v3297
    %v3536 = vpack.c.b16 %v3302, %v3300
    %v3537 = vpack.c.b16 %v3303, %v3301
    %v3538 = vpack.c.b16 %v3306, %v3304
    %v3539 = vpack.c.b16 %v3307, %v3305
    %v3540 = vpack.c.b16 %v3310, %v3308
    %v3541 = vpack.c.b16 %v3311, %v3309
    %v3542 = vpack.c.b16 %v3314, %v3312
    %v3543 = vpack.c.b16 %v3315, %v3313
    %v3544 = vpack.c.b16 %v3318, %v3316
    %v3545 = vpack.c.b16 %v3319, %v3317
    %v3546 = vpack.c.b16 %v3322, %v3320
    %v3547 = vpack.c.b16 %v3323, %v3321
    %v3548 = vpack.c.b16 %v3326, %v3324
    %v3549 = vpack.c.b16 %v3327, %v3325
    %v3550 = vpack.c.b16 %v3330, %v3328
    %v3551 = vpack.c.b16 %v3331, %v3329
    %v3552 = vpack.c.b16 %v3334, %v3332
    %v3553 = vpack.c.b16 %v3335, %v3333
    %v3554 = vpack.c.b16 %v3338, %v3336
    %v3555 = vpack.c.b16 %v3339, %v3337
    %v3556 = vpack.c.b16 %v3342, %v3340
    %v3557 = vpack.c.b16 %v3343, %v3341
    %v3558 = vpack.c.b16 %v3346, %v3344
    %v3559 = vpack.c.b16 %v3347, %v3345
    %v3560 = vpack.c.b16 %v3350, %v3348
    %v3561 = vpack.c.b16 %v3351, %v3349
    %v3562 = vpack.c.b16 %v3354, %v3352
    %v3563 = vpack.c.b16 %v3355, %v3353
    %v3564 = vpack.c.b16 %v3358, %v3356
    %v3565 = vpack.c.b16 %v3359, %v3357
    %v3566 = vpack.c.b16 %v3362, %v3360
    %v3567 = vpack.c.b16 %v3363, %v3361
    %v3568 = vpack.c.b16 %v3366, %v3364
    %v3569 = vpack.c.b16 %v3367, %v3365
    %v3570 = vpack.c.b16 %v3370, %v3368
    %v3571 = vpack.c.b16 %v3371, %v3369
    %v3572 = vpack.c.b16 %v3374, %v3372
    %v3573 = vpack.c.b16 %v3375, %v3373
    %v3574 = vpack.c.b16 %v3378, %v3376
    %v3575 = vpack.c.b16 %v3379, %v3377
    %v3576 = vpack.c.b16 %v3382, %v3380
    %v3577 = vpack.c.b16 %v3383, %v3381
    %v3578 = vpack.c.b16 %v3386, %v3384
    %v3579 = vpack.c.b16 %v3387, %v3385
    %v3580 = vpack.c.b16 %v3390, %v3388
    %v3581 = vpack.c.b16 %v3391, %v3389
    %v3582 = vpack.c.b16 %v3394, %v3392
    %v3583 = vpack.c.b16 %v3395, %v3393
    %v3584 = vpack.c.b16 %v3398, %v3396
    %v3585 = vpack.c.b16 %v3399, %v3397
    %v3586 = vpack.c.b16 %v3402, %v3400
    %v3587 = vpack.c.b16 %v3403, %v3401
    %v3588 = vpack.c.b16 %v3406, %v3404
    %v3589 = vpack.c.b16 %v3407, %v3405
    %v3590 = vpack.c.b16 %v3410, %v3408
    %v3591 = vpack.c.b16 %v3411, %v3409
    %v3592 = vpack.c.b16 %v3414, %v3412
    %v3593 = vpack.c.b16 %v3415, %v3413
    %v3594 = vpack.c.b16 %v3418, %v3416
    %v3595 = vpack.c.b16 %v3419, %v3417
    %v3596 = vpack.c.b16 %v3422, %v3420
    %v3597 = vpack.c.b16 %v3423, %v3421
    %v3598 = vpack.c.b16 %v3426, %v3424
    %v3599 = vpack.c.b16 %v3427, %v3425
    %v3600 = vpack.c.b16 %v3430, %v3428
    %v3601 = vpack.c.b16 %v3431, %v3429
    %v3602 = vpack.c.b16 %v3434, %v3432
    %v3603 = vpack.c.b16 %v3435, %v3433
    %v3604 = vpack.c.b16 %v3438, %v3436
    %v3605 = vpack.c.b16 %v3439, %v3437
    %v3606 = vpack.c.b16 %v3442, %v3440
    %v3607 = vpack.c.b16 %v3443, %v3441
    %v3608 = vpack.c.b16 %v3446, %v3444
    %v3609 = vpack.c.b16 %v3447, %v3445
    %v3610 = vpack.c.b16 %v3450, %v3448
    %v3611 = vpack.c.b16 %v3451, %v3449
    %v3612 = vpack.c.b16 %v3454, %v3452
    %v3613 = vpack.c.b16 %v3455, %v3453
    %v3614 = vpack.c.b16 %v3458, %v3456
    %v3615 = vpack.c.b16 %v3459, %v3457
    %v3616 = vpack.c.b16 %v3462, %v3460
    %v3617 = vpack.c.b16 %v3463, %v3461
    %v3618 = vpack.c.b16 %v3466, %v3464
    %v3619 = vpack.c.b16 %v3467, %v3465
    %v3620 = vpack.c.b16 %v3470, %v3468
    %v3621 = vpack.c.b16 %v3471, %v3469
    %v3622 = vpack.c.b16 %v3474, %v3472
    %v3623 = vpack.c.b16 %v3475, %v3473
    %v3624 = vpack.c.b16 %v3478, %v3476
    %v3625 = vpack.c.b16 %v3479, %v3477
    %v3626 = vpack.c.b16 %v3482, %v3480
    %v3627 = vpack.c.b16 %v3483, %v3481
    %v3628 = vpack.c.b16 %v3486, %v3484
    %v3629 = vpack.c.b16 %v3487, %v3485
    %v3630 = vpack.c.b16 %v3490, %v3488
    %v3631 = vpack.c.b16 %v3491, %v3489
    %v3632 = vpack.c.b16 %v3494, %v3492
    %v3633 = vpack.c.b16 %v3495, %v3493
    %v3634 = vpack.c.b16 %v3498, %v3496
    %v3635 = vpack.c.b16 %v3499, %v3497
    %v3636 = vpack.c.b16 %v3502, %v3500
    %v3637 = vpack.c.b16 %v3503, %v3501
    %v3638 = vpack.c.b16 %v3506, %v3504
    %v3639 = vpack.c.b16 %v3507, %v3505
    %v3640 = vpack.c.b16 %v3510, %v3508
    %v3641 = vpack.c.b16 %v3511, %v3509
    %v3642 = vpack.c.b16 %v3514, %v3512
    %v3643 = vpack.c.b16 %v3515, %v3513
    %3772 = vmatprep.subr.bf16.mxu0 %v3531
    %3773 = vmatpush1.bf16.msra.mxu0 %v3530
    %3774 = vmatprep.subr.bf16.mxu0 %v3529
    %3775 = vmatpush1.bf16.msra.mxu0 %v3528
    %3776 = vmatprep.subr.bf16.mxu0 %v3527
    %3777 = vmatpush1.bf16.msra.mxu0 %v3526
    %3778 = vmatprep.subr.bf16.mxu0 %v3525
    %3779 = vmatpush1.bf16.msra.mxu0 %v3524
    %3780 = vmatprep.subr.bf16.mxu0 %v3523
    %3781 = vmatpush1.bf16.msra.mxu0 %v3522
    %3782 = vmatprep.subr.bf16.mxu0 %v3521
    %3783 = vmatpush1.bf16.msra.mxu0 %v3520
    %3784 = vmatprep.subr.bf16.mxu0 %v3519
    %3785 = vmatpush1.bf16.msra.mxu0 %v3518
    %3786 = vmatprep.subr.bf16.mxu0 %v3517
    %3787 = vmatpush1.bf16.msra.mxu0 %v3516
    %3788 = vmatprep.subr.bf16.mxu0 %v3547
    %3789 = vmatpush2.bf16.msra.mxu0 %v3546
    %3790 = vmatprep.subr.bf16.mxu0 %v3545
    %3791 = vmatpush2.bf16.msra.mxu0 %v3544
    %3792 = vmatprep.subr.bf16.mxu0 %v3543
    %3793 = vmatpush2.bf16.msra.mxu0 %v3542
    %3794 = vmatprep.subr.bf16.mxu0 %v3541
    %3795 = vmatpush2.bf16.msra.mxu0 %v3540
    %3796 = vmatprep.subr.bf16.mxu0 %v3539
    %3797 = vmatpush2.bf16.msra.mxu0 %v3538
    %3798 = vmatprep.subr.bf16.mxu0 %v3537
    %3799 = vmatpush2.bf16.msra.mxu0 %v3536
    %3800 = vmatprep.subr.bf16.mxu0 %v3535
    %3801 = vmatpush2.bf16.msra.mxu0 %v3534
    %3802 = vmatprep.subr.bf16.mxu0 %v3533
    %3803 = vmatpush2.bf16.msra.mxu0 %v3532
    %3804 = vmatprep.mubr.bf16.mxu0 %v2985
    %3805 = vmatmul.mubr.bf16.gmra.mxu0 %v2984
    %v3806 = vpop.f32.mrf.mxu0
    %v3807 = vadd.f32 %v3125, %v3806
    %v3808 = vpop.f32.mrf.mxu0
    %v3809 = vadd.f32 %v3129, %v3808
    %v3810 = vpop.f32.mrf.mxu0
    %v3811 = vadd.f32 %v3125, %v3810
    %v3812 = vpop.f32.mrf.mxu0
    %v3813 = vadd.f32 %v3129, %v3812
    %3814 = vdwg.mxu0
    %3815 = vmatprep.subr.bf16.mxu0 %v3563
    %3816 = vmatpush1.bf16.msra.mxu0 %v3562
    %3817 = vmatprep.subr.bf16.mxu0 %v3561
    %3818 = vmatpush1.bf16.msra.mxu0 %v3560
    %3819 = vmatprep.subr.bf16.mxu0 %v3559
    %3820 = vmatpush1.bf16.msra.mxu0 %v3558
    %3821 = vmatprep.subr.bf16.mxu0 %v3557
    %3822 = vmatpush1.bf16.msra.mxu0 %v3556
    %3823 = vmatprep.subr.bf16.mxu0 %v3555
    %3824 = vmatpush1.bf16.msra.mxu0 %v3554
    %3825 = vmatprep.subr.bf16.mxu0 %v3553
    %3826 = vmatpush1.bf16.msra.mxu0 %v3552
    %3827 = vmatprep.subr.bf16.mxu0 %v3551
    %3828 = vmatpush1.bf16.msra.mxu0 %v3550
    %3829 = vmatprep.subr.bf16.mxu0 %v3549
    %3830 = vmatpush1.bf16.msra.mxu0 %v3548
    %3831 = vmatprep.subr.bf16.mxu0 %v3579
    %3832 = vmatpush2.bf16.msra.mxu0 %v3578
    %3833 = vmatprep.subr.bf16.mxu0 %v3577
    %3834 = vmatpush2.bf16.msra.mxu0 %v3576
    %3835 = vmatprep.subr.bf16.mxu0 %v3575
    %3836 = vmatpush2.bf16.msra.mxu0 %v3574
    %3837 = vmatprep.subr.bf16.mxu0 %v3573
    %3838 = vmatpush2.bf16.msra.mxu0 %v3572
    %3839 = vmatprep.subr.bf16.mxu0 %v3571
    %3840 = vmatpush2.bf16.msra.mxu0 %v3570
    %3841 = vmatprep.subr.bf16.mxu0 %v3569
    %3842 = vmatpush2.bf16.msra.mxu0 %v3568
    %3843 = vmatprep.subr.bf16.mxu0 %v3567
    %3844 = vmatpush2.bf16.msra.mxu0 %v3566
    %3845 = vmatprep.subr.bf16.mxu0 %v3565
    %3846 = vmatpush2.bf16.msra.mxu0 %v3564
    %3847 = vmatprep.mubr.bf16.mxu0 %v2987
    %3848 = vmatmul.mubr.bf16.gmra.mxu0 %v2986
    %v3849 = vpop.f32.mrf.mxu0
    %v3850 = vadd.f32 %v3807, %v3849
    %v3851 = vpop.f32.mrf.mxu0
    %v3852 = vadd.f32 %v3809, %v3851
    %v3853 = vpop.f32.mrf.mxu0
    %v3854 = vadd.f32 %v3811, %v3853
    %v3855 = vpop.f32.mrf.mxu0
    %v3856 = vadd.f32 %v3813, %v3855
    %3857 = vdwg.mxu0
    %3858 = vmatprep.subr.bf16.mxu0 %v3595
    %3859 = vmatpush1.bf16.msra.mxu0 %v3594
    %3860 = vmatprep.subr.bf16.mxu0 %v3593
    %3861 = vmatpush1.bf16.msra.mxu0 %v3592
    %3862 = vmatprep.subr.bf16.mxu0 %v3591
    %3863 = vmatpush1.bf16.msra.mxu0 %v3590
    %3864 = vmatprep.subr.bf16.mxu0 %v3589
    %3865 = vmatpush1.bf16.msra.mxu0 %v3588
    %3866 = vmatprep.subr.bf16.mxu0 %v3587
    %3867 = vmatpush1.bf16.msra.mxu0 %v3586
    %3868 = vmatprep.subr.bf16.mxu0 %v3585
    %3869 = vmatpush1.bf16.msra.mxu0 %v3584
    %3870 = vmatprep.subr.bf16.mxu0 %v3583
    %3871 = vmatpush1.bf16.msra.mxu0 %v3582
    %3872 = vmatprep.subr.bf16.mxu0 %v3581
    %3873 = vmatpush1.bf16.msra.mxu0 %v3580
    %3874 = vmatprep.subr.bf16.mxu0 %v3611
    %3875 = vmatpush2.bf16.msra.mxu0 %v3610
    %3876 = vmatprep.subr.bf16.mxu0 %v3609
    %3877 = vmatpush2.bf16.msra.mxu0 %v3608
    %3878 = vmatprep.subr.bf16.mxu0 %v3607
    %3879 = vmatpush2.bf16.msra.mxu0 %v3606
    %3880 = vmatprep.subr.bf16.mxu0 %v3605
    %3881 = vmatpush2.bf16.msra.mxu0 %v3604
    %3882 = vmatprep.subr.bf16.mxu0 %v3603
    %3883 = vmatpush2.bf16.msra.mxu0 %v3602
    %3884 = vmatprep.subr.bf16.mxu0 %v3601
    %3885 = vmatpush2.bf16.msra.mxu0 %v3600
    %3886 = vmatprep.subr.bf16.mxu0 %v3599
    %3887 = vmatpush2.bf16.msra.mxu0 %v3598
    %3888 = vmatprep.subr.bf16.mxu0 %v3597
    %3889 = vmatpush2.bf16.msra.mxu0 %v3596
    %3890 = vmatprep.mubr.bf16.mxu0 %v2989
    %3891 = vmatmul.mubr.bf16.gmra.mxu0 %v2988
    %v3892 = vpop.f32.mrf.mxu0
    %v3893 = vadd.f32 %v3850, %v3892
    %v3894 = vpop.f32.mrf.mxu0
    %v3895 = vadd.f32 %v3852, %v3894
    %v3896 = vpop.f32.mrf.mxu0
    %v3897 = vadd.f32 %v3854, %v3896
    %v3898 = vpop.f32.mrf.mxu0
    %v3899 = vadd.f32 %v3856, %v3898
    %3900 = vdwg.mxu0
    %3901 = vmatprep.subr.bf16.mxu0 %v3627
    %3902 = vmatpush1.bf16.msra.mxu0 %v3626
    %3903 = vmatprep.subr.bf16.mxu0 %v3625
    %3904 = vmatpush1.bf16.msra.mxu0 %v3624
    %3905 = vmatprep.subr.bf16.mxu0 %v3623
    %3906 = vmatpush1.bf16.msra.mxu0 %v3622
    %3907 = vmatprep.subr.bf16.mxu0 %v3621
    %3908 = vmatpush1.bf16.msra.mxu0 %v3620
    %3909 = vmatprep.subr.bf16.mxu0 %v3619
    %3910 = vmatpush1.bf16.msra.mxu0 %v3618
    %3911 = vmatprep.subr.bf16.mxu0 %v3617
    %3912 = vmatpush1.bf16.msra.mxu0 %v3616
    %3913 = vmatprep.subr.bf16.mxu0 %v3615
    %3914 = vmatpush1.bf16.msra.mxu0 %v3614
    %3915 = vmatprep.subr.bf16.mxu0 %v3613
    %3916 = vmatpush1.bf16.msra.mxu0 %v3612
    %3917 = vmatprep.subr.bf16.mxu0 %v3643
    %3918 = vmatpush2.bf16.msra.mxu0 %v3642
    %3919 = vmatprep.subr.bf16.mxu0 %v3641
    %3920 = vmatpush2.bf16.msra.mxu0 %v3640
    %3921 = vmatprep.subr.bf16.mxu0 %v3639
    %3922 = vmatpush2.bf16.msra.mxu0 %v3638
    %3923 = vmatprep.subr.bf16.mxu0 %v3637
    %3924 = vmatpush2.bf16.msra.mxu0 %v3636
    %3925 = vmatprep.subr.bf16.mxu0 %v3635
    %3926 = vmatpush2.bf16.msra.mxu0 %v3634
    %3927 = vmatprep.subr.bf16.mxu0 %v3633
    %3928 = vmatpush2.bf16.msra.mxu0 %v3632
    %3929 = vmatprep.subr.bf16.mxu0 %v3631
    %3930 = vmatpush2.bf16.msra.mxu0 %v3630
    %3931 = vmatprep.subr.bf16.mxu0 %v3629
    %3932 = vmatpush2.bf16.msra.mxu0 %v3628
    %3933 = vmatprep.mubr.bf16.mxu0 %v2991
    %3934 = vmatmul.mubr.bf16.gmra.mxu0 %v2990
    %v3935 = vpop.f32.mrf.mxu0
    %v3936 = vadd.f32 %v3893, %v3935
    %v3937 = vpop.f32.mrf.mxu0
    %v3938 = vadd.f32 %v3895, %v3937
    %v3939 = vpop.f32.mrf.mxu0
    %v3940 = vadd.f32 %v3897, %v3939
    %v3941 = vpop.f32.mrf.mxu0
    %v3942 = vadd.f32 %v3899, %v3941
    %3943 = vdwg.mxu0
    %v3944 = vtanh.pop %v3936
    %v3945 = vtanh.pop %v3938
    %v3946 = vtanh.pop %v3940
    %v3947 = vtanh.pop %v3942
    %v3948 = vld [vmem:[#allocation12] sm:$0x3]
    %v3950 = vlaneseq
    %v3951 = vshrl.u32 %v3950, 7
    %v3952 = vsub.s32 0, %v3951
    %v3953 = vrot.slane %v3948, %v3952
    %v3954 = vlaneseq
    %v3955 = vshrl.u32 %v3954, 7
    %v3956 = vsub.s32 1, %v3955
    %v3957 = vrot.slane %v3948, %v3956
    %v3960 = vmul.f32 %v3944, %v3953
    %v3961 = vmul.f32 %v3945, %v3957
    %v3962 = vmul.f32 %v3946, %v3953
    %v3963 = vmul.f32 %v3947, %v3957
    %v3964 = vadd.f32 %v3960, %v3961
    %3965 = vadd.xlane.f32.xlu0 %v3964
    %v3966 = vpop.xlane.xlu0 %3965
    %v3967 = vadd.f32 %v3962, %v3963
    %3968 = vadd.xlane.f32.xlu0 %v3967
    %v3969 = vpop.xlane.xlu0 %3968
    %s3970 = sld [smem:[#allocation2]]
    %v3971 = vstv %s3970
    %v3972 = vadd.f32 %v3966, %v3971
    %v3973 = vadd.f32 %v3969, %v3971
    %v3974 = vrot.slane %v3972, 4
    %v3975 = vmax.f32 %v3972, %v3974
    %v3976 = vrot.slane %v3975, 2
    %v3977 = vmax.f32 %v3975, %v3976
    %v3978 = vrot.slane %v3977, 1
    %v3979 = vmax.f32 %v3977, %v3978
    %v3980 = vrot.slane %v3973, 4
    %v3981 = vmax.f32 %v3973, %v3980
    %v3982 = vrot.slane %v3981, 2
    %v3983 = vmax.f32 %v3981, %v3982
    %v3984 = vrot.slane %v3983, 1
    %v3985 = vmax.f32 %v3983, %v3984
    %v3986 = vsub.f32 %v3972, %v3979
    %v3987 = vsub.f32 %v3973, %v3985
    %v3988 = vmul.f32 %v3986, 1.442695
    %v3989 = vpow.pop %v3988
    %v3990 = vmul.f32 %v3987, 1.442695
    %v3991 = vpow.pop %v3990
    %v3992 = vrot.slane %v3989, 4
    %v3993 = vadd.f32 %v3989, %v3992
    %v3994 = vrot.slane %v3993, 2
    %v3995 = vadd.f32 %v3993, %v3994
    %v3996 = vrot.slane %v3995, 1
    %v3997 = vadd.f32 %v3995, %v3996
    %v3998 = vrot.slane %v3991, 4
    %v3999 = vadd.f32 %v3991, %v3998
    %v4000 = vrot.slane %v3999, 2
    %v4001 = vadd.f32 %v3999, %v4000
    %v4002 = vrot.slane %v4001, 1
    %v4003 = vadd.f32 %v4001, %v4002
    %v4004 = vrcp.pop %v3997
    %v4005 = vmul.f32 %v3989, %v4004
    %v4006 = vrcp.pop %v4003
    %v4007 = vmul.f32 %v3991, %v4006
    %v4008 = vmul.f32 %v4005, %v2589
    %v4009 = vmul.f32 %v4005, %v2591
    %v4010 = vmul.f32 %v4005, %v2718
    %v4011 = vmul.f32 %v4005, %v2720
    %v4012 = vmul.f32 %v4005, %v2847
    %v4013 = vmul.f32 %v4005, %v2849
    %v4014 = vmul.f32 %v4005, %v2976
    %v4015 = vmul.f32 %v4005, %v2978
    %v4016 = vmul.f32 %v4007, %v2593
    %v4017 = vmul.f32 %v4007, %v2595
    %v4018 = vmul.f32 %v4007, %v2722
    %v4019 = vmul.f32 %v4007, %v2724
    %v4020 = vmul.f32 %v4007, %v2851
    %v4021 = vmul.f32 %v4007, %v2853
    %v4022 = vmul.f32 %v4007, %v2980
    %v4023 = vmul.f32 %v4007, %v2982
    %v4024 = vrot.slane %v4008, 4
    %v4025 = vadd.f32 %v4008, %v4024
    %v4026 = vrot.slane %v4025, 2
    %v4027 = vadd.f32 %v4025, %v4026
    %v4028 = vrot.slane %v4027, 1
    %v4029 = vadd.f32 %v4027, %v4028
    %v4030 = vrot.slane %v4009, 4
    %v4031 = vadd.f32 %v4009, %v4030
    %v4032 = vrot.slane %v4031, 2
    %v4033 = vadd.f32 %v4031, %v4032
    %v4034 = vrot.slane %v4033, 1
    %v4035 = vadd.f32 %v4033, %v4034
    %v4036 = vrot.slane %v4010, 4
    %v4037 = vadd.f32 %v4010, %v4036
    %v4038 = vrot.slane %v4037, 2
    %v4039 = vadd.f32 %v4037, %v4038
    %v4040 = vrot.slane %v4039, 1
    %v4041 = vadd.f32 %v4039, %v4040
    %v4042 = vrot.slane %v4011, 4
    %v4043 = vadd.f32 %v4011, %v4042
    %v4044 = vrot.slane %v4043, 2
    %v4045 = vadd.f32 %v4043, %v4044
    %v4046 = vrot.slane %v4045, 1
    %v4047 = vadd.f32 %v4045, %v4046
    %v4048 = vrot.slane %v4012, 4
    %v4049 = vadd.f32 %v4012, %v4048
    %v4050 = vrot.slane %v4049, 2
    %v4051 = vadd.f32 %v4049, %v4050
    %v4052 = vrot.slane %v4051, 1
    %v4053 = vadd.f32 %v4051, %v4052
    %v4054 = vrot.slane %v4013, 4
    %v4055 = vadd.f32 %v4013, %v4054
    %v4056 = vrot.slane %v4055, 2
    %v4057 = vadd.f32 %v4055, %v4056
    %v4058 = vrot.slane %v4057, 1
    %v4059 = vadd.f32 %v4057, %v4058
    %v4060 = vrot.slane %v4014, 4
    %v4061 = vadd.f32 %v4014, %v4060
    %v4062 = vrot.slane %v4061, 2
    %v4063 = vadd.f32 %v4061, %v4062
    %v4064 = vrot.slane %v4063, 1
    %v4065 = vadd.f32 %v4063, %v4064
    %v4066 = vrot.slane %v4015, 4
    %v4067 = vadd.f32 %v4015, %v4066
    %v4068 = vrot.slane %v4067, 2
    %v4069 = vadd.f32 %v4067, %v4068
    %v4070 = vrot.slane %v4069, 1
    %v4071 = vadd.f32 %v4069, %v4070
    %v4072 = vrot.slane %v4016, 4
    %v4073 = vadd.f32 %v4016, %v4072
    %v4074 = vrot.slane %v4073, 2
    %v4075 = vadd.f32 %v4073, %v4074
    %v4076 = vrot.slane %v4075, 1
    %v4077 = vadd.f32 %v4075, %v4076
    %v4078 = vrot.slane %v4017, 4
    %v4079 = vadd.f32 %v4017, %v4078
    %v4080 = vrot.slane %v4079, 2
    %v4081 = vadd.f32 %v4079, %v4080
    %v4082 = vrot.slane %v4081, 1
    %v4083 = vadd.f32 %v4081, %v4082
    %v4084 = vrot.slane %v4018, 4
    %v4085 = vadd.f32 %v4018, %v4084
    %v4086 = vrot.slane %v4085, 2
    %v4087 = vadd.f32 %v4085, %v4086
    %v4088 = vrot.slane %v4087, 1
    %v4089 = vadd.f32 %v4087, %v4088
    %v4090 = vrot.slane %v4019, 4
    %v4091 = vadd.f32 %v4019, %v4090
    %v4092 = vrot.slane %v4091, 2
    %v4093 = vadd.f32 %v4091, %v4092
    %v4094 = vrot.slane %v4093, 1
    %v4095 = vadd.f32 %v4093, %v4094
    %v4096 = vrot.slane %v4020, 4
    %v4097 = vadd.f32 %v4020, %v4096
    %v4098 = vrot.slane %v4097, 2
    %v4099 = vadd.f32 %v4097, %v4098
    %v4100 = vrot.slane %v4099, 1
    %v4101 = vadd.f32 %v4099, %v4100
    %v4102 = vrot.slane %v4021, 4
    %v4103 = vadd.f32 %v4021, %v4102
    %v4104 = vrot.slane %v4103, 2
    %v4105 = vadd.f32 %v4103, %v4104
    %v4106 = vrot.slane %v4105, 1
    %v4107 = vadd.f32 %v4105, %v4106
    %v4108 = vrot.slane %v4022, 4
    %v4109 = vadd.f32 %v4022, %v4108
    %v4110 = vrot.slane %v4109, 2
    %v4111 = vadd.f32 %v4109, %v4110
    %v4112 = vrot.slane %v4111, 1
    %v4113 = vadd.f32 %v4111, %v4112
    %v4114 = vrot.slane %v4023, 4
    %v4115 = vadd.f32 %v4023, %v4114
    %v4116 = vrot.slane %v4115, 2
    %v4117 = vadd.f32 %v4115, %v4116
    %v4118 = vrot.slane %v4117, 1
    %v4119 = vadd.f32 %v4117, %v4118
    %v4136 = vcombine.low %v4029, %v4035
    %v4137 = vcombine.low %v4041, %v4047
    %v4139 = vunpack.c.l.s4 1983009808
    %v4140 = vunpack.c.0.s8 %v4139
    %v4141 = vlaneseq
    %v4142 = vshrl.u32 %v4141, 7
    %v4143 = vsub.s32 %v4140, %v4142
    %v4144 = vrot.slane %v4136, %v4143
    %v4146 = vunpack.c.l.s4 1983009808
    %v4147 = vunpack.c.0.s8 %v4146
    %v4148 = vlaneseq
    %v4149 = vshrl.u32 %v4148, 7
    %v4150 = vsub.s32 %v4147, %v4149
    %v4151 = vrot.slane %v4137, %v4150
    %v4152 = vcombine.low %v4144, %v4151
    %v4153 = vcombine.low %v4053, %v4059
    %v4154 = vcombine.low %v4065, %v4071
    %v4156 = vunpack.c.l.s4 1983009808
    %v4157 = vunpack.c.0.s8 %v4156
    %v4158 = vlaneseq
    %v4159 = vshrl.u32 %v4158, 7
    %v4160 = vsub.s32 %v4157, %v4159
    %v4161 = vrot.slane %v4153, %v4160
    %v4163 = vunpack.c.l.s4 1983009808
    %v4164 = vunpack.c.0.s8 %v4163
    %v4165 = vlaneseq
    %v4166 = vshrl.u32 %v4165, 7
    %v4167 = vsub.s32 %v4164, %v4166
    %v4168 = vrot.slane %v4154, %v4167
    %v4169 = vcombine.low %v4161, %v4168
    %v4170 = vcombine.low %v4077, %v4083
    %v4171 = vcombine.low %v4089, %v4095
    %v4173 = vunpack.c.l.s4 1983009808
    %v4174 = vunpack.c.0.s8 %v4173
    %v4175 = vlaneseq
    %v4176 = vshrl.u32 %v4175, 7
    %v4177 = vsub.s32 %v4174, %v4176
    %v4178 = vrot.slane %v4170, %v4177
    %v4180 = vunpack.c.l.s4 1983009808
    %v4181 = vunpack.c.0.s8 %v4180
    %v4182 = vlaneseq
    %v4183 = vshrl.u32 %v4182, 7
    %v4184 = vsub.s32 %v4181, %v4183
    %v4185 = vrot.slane %v4171, %v4184
    %v4186 = vcombine.low %v4178, %v4185
    %v4187 = vcombine.low %v4101, %v4107
    %v4188 = vcombine.low %v4113, %v4119
    %v4190 = vunpack.c.l.s4 1983009808
    %v4191 = vunpack.c.0.s8 %v4190
    %v4192 = vlaneseq
    %v4193 = vshrl.u32 %v4192, 7
    %v4194 = vsub.s32 %v4191, %v4193
    %v4195 = vrot.slane %v4187, %v4194
    %v4197 = vunpack.c.l.s4 1983009808
    %v4198 = vunpack.c.0.s8 %v4197
    %v4199 = vlaneseq
    %v4200 = vshrl.u32 %v4199, 7
    %v4201 = vsub.s32 %v4198, %v4200
    %v4202 = vrot.slane %v4188, %v4201
    %v4203 = vcombine.low %v4195, %v4202
    %vm4204 = vcmask 1044484
    %v4205 = vsel %vm4204, %v4152, %v4152
    %vm4206 = vcmask 1046534
    %v4207 = vsel %vm4206, %v4152, %v4205
    %v4208 = vrot.slane %v4186, 7
    %vm4209 = vcmask 1041409
    %v4210 = vsel %vm4209, %v4208, %v4207
    %vm4211 = vcmask 1043459
    %v4212 = vsel %vm4211, %v4208, %v4210
    %vm4213 = vcmask 1045509
    %v4214 = vsel %vm4213, %v4208, %v4212
    %vm4215 = vcmask 1047559
    %v4216 = vsel %vm4215, %v4208, %v4214
    %v4217 = vsel %vm4204, %v4169, %v4169
    %v4218 = vsel %vm4206, %v4169, %v4217
    %v4219 = vrot.slane %v4203, 7
    %v4220 = vsel %vm4209, %v4219, %v4218
    %v4221 = vsel %vm4211, %v4219, %v4220
    %v4222 = vsel %vm4213, %v4219, %v4221
    %v4223 = vsel %vm4215, %v4219, %v4222
    %4226 = vst [vmem:[#allocation14] sm:$0xff] %v4216
    %4227 = vst [vmem:[#allocation14 + $0x8] sm:$0xff] %v4223
    // Predicated region
    $region54: #{tpu_custom_call.1} parent=1 // pred_check
      _
    $region55: #{tpu_custom_call.1} parent=1 // pred_check_branch
      %4229 = sbr.rel (0) target = $region57
    $region56: #{tpu_custom_call.1} parent=1 // pred_region
      %s4231 = ssub.s32 256, 256
      %4232 = vsyncadd [#allocation5], %s4231
      %s4234 = sshll.u32 [#allocation14], 4
      %s4235 = int_to_ptr.vmem [resolvable:$true] %s4234
      %4237 = dma.vmem_to_hbm [thread:$0]  %s4235, 256, %s7, [#allocation5]
    $region57: #{tpu_custom_call.1} parent=1 // pred_fallthru
      _
    // Predicated region
    $region58: #{tpu_custom_call.1} parent=1 // pred_check
      _
    $region59: #{tpu_custom_call.1} parent=1 // pred_check_branch
      %4239 = sbr.rel (0) target = $region61
    $region60: #{tpu_custom_call.1} parent=1 // pred_region
      %4240 = dma.done [#allocation5], 256
    $region61: #{tpu_custom_call.1} parent=1 // pred_fallthru
      _
    %4241 = vsyncpa [#allocation4], 1
    %4242 = vsyncpa [#allocation7], 1
    %4243 = vsyncpa [#allocation10], 1
    %4244 = vsyncpa [#allocation13], 1
    %4245 = vsyncpa [#allocation5], 1

</llo_original>
